<compile_context>
chip_gen: v6e
topology: v6e:2x2x1
jax: 0.10.0
libtpu: 0.0.40
codegen_flags: <defaults>
</compile_context>

<pallas_src>
import functools
import itertools

import jax
import jax.numpy as jnp
import numpy as np
from jax import lax
from jax.experimental import pallas as pl
from jax.experimental.pallas import tpu as pltpu

# ---- hyper-params: SnapML_Meta3D(dim=DIM) with SnapML_Attention defaults ----
DIM        = 64                        # Meta3D dim (small, user chosen)
MLP_RATIO  = 4.0
HIDDEN     = int(DIM * MLP_RATIO)      # 256
NUM_HEADS  = 8                         # SnapML_Attention default
KEY_DIM    = 32                        # SnapML_Attention default
ATTN_RATIO = 4
D_HEAD     = ATTN_RATIO * KEY_DIM      # 128
NH_KD      = NUM_HEADS * KEY_DIM       # 256
DH         = NUM_HEADS * D_HEAD        # 1024
RESOLUTION = 7
TOKENS     = RESOLUTION * RESOLUTION   # 49 == batch N of the torch module
T_PAD      = 56                        # tokens padded to a sublane multiple
SCALE      = KEY_DIM ** (-0.5)
BN_EPS     = 1e-5
NEG_INF    = -1e9
MAX_INSTANCES_PER_BLOCK = 4            # instances stacked per grid step


def meta3d_kernel(x_ref,
                  bn1s_ref, bn1b_ref,
                  wqk_ref, bqk_ref, wv_ref, bv_ref,
                  ab_ref, wp_ref, bp_ref,
                  bn2s_ref, bn2b_ref,
                  w1_ref, b1_ref, w2_ref, b2_ref,
                  out_ref, hvo_ref,
                  *, ib, exp_dtype):
    dot = functools.partial(jnp.dot, preferred_element_type=jnp.float32)
    rows = ib * T_PAD

    x = x_ref[...].reshape(rows, DIM)                        # (R, C) f32

    # ---------------- token mixer (attention) branch ----------------
    y = x * bn1s_ref[...] + bn1b_ref[...]                    # norm1 (BN eval affine)
    y_bf = y.astype(jnp.bfloat16)                            # MXU input dtype

    # fused q||k projection: one (R,64)@(64,512) MXU pass (scale in q half).
    qk = (dot(y_bf, wqk_ref[...]) + bqk_ref[...]).astype(jnp.bfloat16)

    # TODO(synk): if a v5e bundle dump shows spill vst/vld in this unrolled
    # loop, switch to lax.fori_loop with ref-indexed per-head weights.
    for h in range(NUM_HEADS):
        # per-head 32-lane slices of the fused q/k projection (static offsets)
        qh = qk[:, h * KEY_DIM:(h + 1) * KEY_DIM].reshape(ib, T_PAD, KEY_DIM)
        kh = qk[:, NH_KD + h * KEY_DIM:NH_KD + (h + 1) * KEY_DIM]
        kh = kh.reshape(ib, T_PAD, KEY_DIM)
        # per-head V projection (128-lane-aligned output); overlaps with the
        # previous head's EUP softmax work.
        vh = (dot(y_bf, wv_ref[h]) + bv_ref[h]).astype(jnp.bfloat16)
        vh = vh.reshape(ib, T_PAD, D_HEAD)
        # per-instance attention scores (batched over the instance axis only)
        att = jnp.einsum('bik,bjk->bij', qh, kh,
                         preferred_element_type=jnp.float32)  # (ib, Tp, Tp)
        att = att + ab_ref[h]                                 # bias (bf16->f32); -1e9 pad cols
        att = att - jnp.max(att, axis=-1, keepdims=True)      # keep: guards padded rows
        e = jnp.exp(att.astype(exp_dtype)).astype(jnp.float32)
        p = (e * pl.reciprocal(jnp.sum(e, axis=-1, keepdims=True), approx=True)
             ).astype(jnp.bfloat16)
        head_out = jnp.einsum('bij,bjd->bid', p, vh,
                              preferred_element_type=jnp.float32)  # (ib, Tp, d)
        # lane-aligned (128-wide) store into the concat scratch
        hvo_ref[:, h * D_HEAD:(h + 1) * D_HEAD] = (
            head_out.astype(jnp.bfloat16).reshape(rows, D_HEAD))

    # single fused output projection over K = 1024, plus residual 1
    x = x + dot(hvo_ref[...], wp_ref[...]) + bp_ref[...]

    # ---------------- MLP branch ----------------
    y2 = x * bn2s_ref[...] + bn2b_ref[...]                    # norm2
    h1 = jnp.maximum(dot(y2.astype(jnp.bfloat16), w1_ref[...]) + b1_ref[...], 0.0)
    m = dot(h1.astype(jnp.bfloat16), w2_ref[...]) + b2_ref[...]
    out_ref[...] = (x + m).reshape(ib, T_PAD, DIM)            # residual 2


KERNEL_ARGS = ('bn1_s', 'bn1_b',
               'wqk', 'bqk', 'wv_h', 'bv_h',
               'ab_pad', 'wp', 'bp',
               'bn2_s', 'bn2_b',
               'w1', 'b1', 'w2', 'b2')


def prepare_kernel_params(p):
    """Host-side repack: fused q||k, per-head V, bf16 weights, padded bf16 bias."""
    kp = {}
    kp['bn1_s'], kp['bn1_b'] = p['bn1_s'], p['bn1_b']
    kp['bn2_s'], kp['bn2_b'] = p['bn2_s'], p['bn2_b']
    # fused q||k projection (Cin, 2*nh_kd); softmax scale folded into q half
    kp['wqk'] = jnp.concatenate([p['wq_t'] * SCALE, p['wk_t']],
                                axis=1).astype(jnp.bfloat16)               # (64, 512)
    kp['bqk'] = jnp.concatenate([p['bq'] * SCALE, p['bk']], axis=1)        # (1, 512) f32
    # per-head V weights (h, Cin, d) -> 128-lane-aligned per-head outputs
    kp['wv_h'] = p['wv_t'].reshape(DIM, NUM_HEADS, D_HEAD) \
                          .transpose(1, 0, 2).astype(jnp.bfloat16)         # (8, 64, 128)
    kp['bv_h'] = p['bv'].reshape(NUM_HEADS, 1, D_HEAD)
    # single fused output projection
    kp['wp'] = p['wp_t'].astype(jnp.bfloat16)                              # (1024, 64)
    kp['bp'] = p['bp']
    kp['w1'] = p['w1_t'].astype(jnp.bfloat16)
    kp['b1'] = p['b1']
    kp['w2'] = p['w2_t'].astype(jnp.bfloat16)
    kp['b2'] = p['b2']
    # positional bias padded to (nh, Tp, Tp), stored bf16 (largest input);
    # padded key columns carry -1e9 so softmax weights them ~0 for every row.
    ab_pad = jnp.full((NUM_HEADS, T_PAD, T_PAD), NEG_INF, dtype=jnp.float32)
    ab_pad = ab_pad.at[:, :TOKENS, :TOKENS].set(p['ab'])
    kp['ab_pad'] = ab_pad.astype(jnp.bfloat16)
    return kp


def _use_bf16_exp():
    """bf16 EUP path exists on v6e / v7x; keep f32 exp elsewhere (v5e, unknown)."""
    try:
        kind = jax.devices()[0].device_kind.lower()
    except Exception:
        return False
    return ("v6" in kind) or ("v7" in kind)


def _cost_estimate(num_instances):
    matmul_flops = 2 * T_PAD * (
        DIM * (2 * NH_KD)                 # fused q||k projection
        + NUM_HEADS * DIM * D_HEAD        # per-head V projections
        + DH * DIM                        # output projection
        + DIM * HIDDEN + HIDDEN * DIM)    # MLP
    attn_flops = 2 * NUM_HEADS * T_PAD * T_PAD * (KEY_DIM + D_HEAD)
    flops = int(num_instances * (matmul_flops + attn_flops))
    transcendentals = int(num_instances * NUM_HEADS * T_PAD * (T_PAD + 1))
    weight_bytes = 600_000
    act_bytes = num_instances * 2 * T_PAD * DIM * 4
    return pl.CostEstimate(flops=flops, transcendentals=transcendentals,
                           bytes_accessed=int(weight_bytes + act_bytes))


def meta3d_forward_batched(xb_nchw, kernel_params):
    """Batch of independent Meta3D instances, shape (B, 49, 64, 1, 1)."""
    b, t, c, hh, ww = xb_nchw.shape
    assert hh == 1 and ww == 1 and t == TOKENS and c == DIM
    ib = min(b, MAX_INSTANCES_PER_BLOCK)            # instances per grid step
    nblk = -(-b // ib)
    b_pad = nblk * ib

    x = xb_nchw.reshape(b, t, c)
    x = jnp.pad(x, ((0, b_pad - b), (0, T_PAD - t), (0, 0)))   # sublane-align tokens

    args = [x] + [kernel_params[k] for k in KERNEL_ARGS]

    def resident(a):
        # full-array block, constant index map -> weight stays resident in VMEM
        z = (0,) * a.ndim
        return pl.BlockSpec(a.shape, lambda i, _z=z: _z)

    in_specs = ([pl.BlockSpec((ib, T_PAD, DIM), lambda i: (i, 0, 0))]
                + [resident(a) for a in args[1:]])
    out_spec = pl.BlockSpec((ib, T_PAD, DIM), lambda i: (i, 0, 0))

    exp_dtype = jnp.bfloat16 if _use_bf16_exp() else jnp.float32
    kernel = functools.partial(meta3d_kernel, ib=ib, exp_dtype=exp_dtype)

    out = pl.pallas_call(
        kernel,
        grid=(nblk,),
        out_shape=jax.ShapeDtypeStruct((b_pad, T_PAD, DIM), jnp.float32),
        in_specs=in_specs,
        out_specs=out_spec,
        scratch_shapes=[pltpu.VMEM((ib * T_PAD, DH), jnp.bfloat16)],
        compiler_params=pltpu.CompilerParams(dimension_semantics=("parallel",)),
        cost_estimate=_cost_estimate(b_pad),
    )(*args)
    return out[:b, :t].reshape(b, t, c, 1, 1)


def meta3d_forward(x_nchw, kernel_params):
    """Single instance, exactly the torch module's (49, 64, 1, 1) input."""
    return meta3d_forward_batched(x_nchw[None], kernel_params)[0]


def init_params(key):
    """f32 model parameters mirroring the torch module (weights as (in, out))."""
    keys = iter(jax.random.split(key, 64))

    def nrm(shape, s=0.1):
        return s * jax.random.normal(next(keys), shape, dtype=jnp.float32)

    def bn_affine(dim):
        gamma = 1.0 + nrm((dim,), 0.05)
        beta = nrm((dim,), 0.05)
        mean = nrm((dim,), 0.05)
        var = jnp.abs(nrm((dim,), 0.05)) + 1.0
        scale = gamma / jnp.sqrt(var + BN_EPS)
        shift = beta - mean * scale
        return scale.reshape(1, dim), shift.reshape(1, dim)

    p = {}
    p['bn1_s'], p['bn1_b'] = bn_affine(DIM)
    p['bn2_s'], p['bn2_b'] = bn_affine(DIM)
    # 1x1 convs == linear layers; weights stored pre-transposed as (in, out)
    p['wq_t'] = nrm((DIM, NH_KD));   p['bq'] = nrm((1, NH_KD))
    p['wk_t'] = nrm((DIM, NH_KD));   p['bk'] = nrm((1, NH_KD))
    p['wv_t'] = nrm((DIM, DH));      p['bv'] = nrm((1, DH))
    p['wp_t'] = nrm((DH, DIM));      p['bp'] = nrm((1, DIM))
    p['w1_t'] = nrm((DIM, HIDDEN));  p['b1'] = nrm((1, HIDDEN))
    p['w2_t'] = nrm((HIDDEN, DIM));  p['b2'] = nrm((1, DIM))

    # attention positional bias: biases (nh, 1, n_offsets) gathered by idxs (49,49)
    points = list(itertools.product(range(RESOLUTION), range(RESOLUTION)))
    offsets, idxs = {}, []
    for p1 in points:
        for p2 in points:
            off = (abs(p1[0] - p2[0]), abs(p1[1] - p2[1]))
            if off not in offsets:
                offsets[off] = len(offsets)
            idxs.append(offsets[off])
    idxs = np.asarray(idxs, dtype=np.int32).reshape(TOKENS, TOKENS)
    biases = nrm((NUM_HEADS, 1, len(offsets)), 0.05)
    # gather is glue (plain JAX): ab[h, i, j] = biases[h, 0, idxs[i, j]]
    p['ab'] = biases[:, 0, :][:, idxs]                     # (nh, 49, 49)
    return p


def reference(x_nchw, p):
    """Pure-JAX f32 mirror of the torch forward (for validation)."""
    t, c = x_nchw.shape[0], x_nchw.shape[1]
    dot = functools.partial(jnp.dot, preferred_element_type=jnp.float32,
                            precision=lax.Precision.HIGHEST)
    x = x_nchw.reshape(t, c)
    y = x * p['bn1_s'] + p['bn1_b']
    q = (dot(y, p['wq_t']) + p['bq']).reshape(t, NUM_HEADS, KEY_DIM).transpose(1, 0, 2)
    k = (dot(y, p['wk_t']) + p['bk']).reshape(t, NUM_HEADS, KEY_DIM).transpose(1, 0, 2)
    v = (dot(y, p['wv_t']) + p['bv']).reshape(t, NUM_HEADS, D_HEAD).transpose(1, 0, 2)
    att = jnp.einsum('hik,hjk->hij', q, k,
                     preferred_element_type=jnp.float32,
                     precision=lax.Precision.HIGHEST) * SCALE + p['ab']
    att = jax.nn.softmax(att, axis=-1)
    o = jnp.einsum('hij,hjd->hid', att, v,
                   preferred_element_type=jnp.float32,
                   precision=lax.Precision.HIGHEST)
    o = o.transpose(1, 0, 2).reshape(t, DH)
    x = x + dot(o, p['wp_t']) + p['bp']
    y2 = x * p['bn2_s'] + p['bn2_b']
    h = jnp.maximum(dot(y2, p['w1_t']) + p['b1'], 0.0)
    x = x + dot(h, p['w2_t']) + p['b2']
    return x.reshape(t, c, 1, 1)


if __name__ == "__main__":
    key = jax.random.PRNGKey(0)
    kx, kb, kp = jax.random.split(key, 3)
    params = init_params(kp)
    kernel_params = prepare_kernel_params(params)

    # ---- single instance: exactly the torch module's input shape ----
    # batch N must equal resolution**2 = 49 and H = W = 1 (see layout comment)
    x = 0.5 * jax.random.normal(kx, (TOKENS, DIM, 1, 1), dtype=jnp.float32)
    out = jax.block_until_ready(meta3d_forward(x, kernel_params))
    ref = reference(x, params)
    assert out.shape == x.shape
    np.testing.assert_allclose(np.asarray(out), np.asarray(ref),
                               atol=5e-2, rtol=5e-2)

    # ---- batch of independent instances: parallel grid axis, 4 per step ----
    BATCH = 6
    xb = 0.5 * jax.random.normal(kb, (BATCH, TOKENS, DIM, 1, 1), dtype=jnp.float32)
    outb = jax.block_until_ready(meta3d_forward_batched(xb, kernel_params))
    refb = jax.vmap(lambda xi: reference(xi, params))(xb)
    assert outb.shape == xb.shape
    np.testing.assert_allclose(np.asarray(outb), np.asarray(refb),
                               atol=5e-2, rtol=5e-2)

    print("KERNEL_OK")
</pallas_src>

<mosaic_0001>
module attributes {stable_mosaic.version = 11 : i64} {
  func.func @meta3d_kernel(%arg0: i32, %arg1: memref<1x56x64xf32, #tpu.memory_space<vmem>>, %arg2: memref<1x64xf32, #tpu.memory_space<vmem>>, %arg3: memref<1x64xf32, #tpu.memory_space<vmem>>, %arg4: memref<64x512xbf16, #tpu.memory_space<vmem>>, %arg5: memref<1x512xf32, #tpu.memory_space<vmem>>, %arg6: memref<8x64x128xbf16, #tpu.memory_space<vmem>>, %arg7: memref<8x1x128xf32, #tpu.memory_space<vmem>>, %arg8: memref<8x56x56xbf16, #tpu.memory_space<vmem>>, %arg9: memref<1024x64xbf16, #tpu.memory_space<vmem>>, %arg10: memref<1x64xf32, #tpu.memory_space<vmem>>, %arg11: memref<1x64xf32, #tpu.memory_space<vmem>>, %arg12: memref<1x64xf32, #tpu.memory_space<vmem>>, %arg13: memref<64x256xbf16, #tpu.memory_space<vmem>>, %arg14: memref<1x256xf32, #tpu.memory_space<vmem>>, %arg15: memref<256x64xbf16, #tpu.memory_space<vmem>>, %arg16: memref<1x64xf32, #tpu.memory_space<vmem>>, %arg17: memref<1x56x64xf32, #tpu.memory_space<vmem>>, %arg18: memref<56x1024xbf16, #tpu.memory_space<vmem>>) attributes {dimension_semantics = [#tpu.dimension_semantics<parallel>], iteration_bounds = array<i64: 1>, scalar_prefetch = 0 : i64, scratch_operands = 1 : i64, tpu.core_type = #tpu.core_type<tc>, window_params = [{transform_indices = @transform_0, window_bounds = array<i64: 1, 56, 64>}, {pipeline_mode = #tpu.pipeline_mode<synchronous>, transform_indices = @transform_1, window_bounds = array<i64: 1, 64>}, {pipeline_mode = #tpu.pipeline_mode<synchronous>, transform_indices = @transform_2, window_bounds = array<i64: 1, 64>}, {pipeline_mode = #tpu.pipeline_mode<synchronous>, transform_indices = @transform_3, window_bounds = array<i64: 64, 512>}, {pipeline_mode = #tpu.pipeline_mode<synchronous>, transform_indices = @transform_4, window_bounds = array<i64: 1, 512>}, {pipeline_mode = #tpu.pipeline_mode<synchronous>, transform_indices = @transform_5, window_bounds = array<i64: 8, 64, 128>}, {pipeline_mode = #tpu.pipeline_mode<synchronous>, transform_indices = @transform_6, window_bounds = array<i64: 8, 1, 128>}, {pipeline_mode = #tpu.pipeline_mode<synchronous>, transform_indices = @transform_7, window_bounds = array<i64: 8, 56, 56>}, {pipeline_mode = #tpu.pipeline_mode<synchronous>, transform_indices = @transform_8, window_bounds = array<i64: 1024, 64>}, {pipeline_mode = #tpu.pipeline_mode<synchronous>, transform_indices = @transform_9, window_bounds = array<i64: 1, 64>}, {pipeline_mode = #tpu.pipeline_mode<synchronous>, transform_indices = @transform_10, window_bounds = array<i64: 1, 64>}, {pipeline_mode = #tpu.pipeline_mode<synchronous>, transform_indices = @transform_11, window_bounds = array<i64: 1, 64>}, {pipeline_mode = #tpu.pipeline_mode<synchronous>, transform_indices = @transform_12, window_bounds = array<i64: 64, 256>}, {pipeline_mode = #tpu.pipeline_mode<synchronous>, transform_indices = @transform_13, window_bounds = array<i64: 1, 256>}, {pipeline_mode = #tpu.pipeline_mode<synchronous>, transform_indices = @transform_14, window_bounds = array<i64: 256, 64>}, {pipeline_mode = #tpu.pipeline_mode<synchronous>, transform_indices = @transform_15, window_bounds = array<i64: 1, 64>}, {transform_indices = @transform_16, window_bounds = array<i64: 1, 56, 64>}]} {
    %c0 = arith.constant 0 : index
    %c0_0 = arith.constant 0 : index
    %c0_1 = arith.constant 0 : index
    %0 = vector.load %arg1[%c0, %c0_0, %c0_1] : memref<1x56x64xf32, #tpu.memory_space<vmem>>, vector<1x56x64xf32>
    %1 = vector.shape_cast %0 : vector<1x56x64xf32> to vector<56x64xf32>
    %c0_2 = arith.constant 0 : index
    %c0_3 = arith.constant 0 : index
    %2 = vector.load %arg2[%c0_2, %c0_3] : memref<1x64xf32, #tpu.memory_space<vmem>>, vector<1x64xf32>
    %3 = vector.broadcast %2 : vector<1x64xf32> to vector<56x64xf32>
    %4 = arith.mulf %1, %3 : vector<56x64xf32>
    %c0_4 = arith.constant 0 : index
    %c0_5 = arith.constant 0 : index
    %5 = vector.load %arg3[%c0_4, %c0_5] : memref<1x64xf32, #tpu.memory_space<vmem>>, vector<1x64xf32>
    %6 = vector.broadcast %5 : vector<1x64xf32> to vector<56x64xf32>
    %7 = arith.addf %4, %6 : vector<56x64xf32>
    %8 = arith.truncf %7 : vector<56x64xf32> to vector<56x64xbf16>
    %c0_6 = arith.constant 0 : index
    %c0_7 = arith.constant 0 : index
    %9 = vector.load %arg4[%c0_6, %c0_7] : memref<64x512xbf16, #tpu.memory_space<vmem>>, vector<64x512xbf16>
    %cst = arith.constant dense<0.000000e+00> : vector<56x512xf32>
    %10 = tpu.matmul %8, %9, %cst {dimension_numbers = #tpu.dot_dimension_numbers<[1], [0], [0], [1], [0, 0, 1, 1], [], []>} : vector<56x64xbf16>, vector<64x512xbf16>, vector<56x512xf32> -> vector<56x512xf32>
    %c0_8 = arith.constant 0 : index
    %c0_9 = arith.constant 0 : index
    %11 = vector.load %arg5[%c0_8, %c0_9] : memref<1x512xf32, #tpu.memory_space<vmem>>, vector<1x512xf32>
    %12 = vector.broadcast %11 : vector<1x512xf32> to vector<56x512xf32>
    %13 = arith.addf %10, %12 : vector<56x512xf32>
    %14 = arith.truncf %13 : vector<56x512xf32> to vector<56x512xbf16>
    %15 = vector.extract_strided_slice %14 {offsets = [0, 0], sizes = [56, 32], strides = [1, 1]} : vector<56x512xbf16> to vector<56x32xbf16>
    %16 = vector.shape_cast %15 : vector<56x32xbf16> to vector<1x56x32xbf16>
    %17 = vector.extract_strided_slice %14 {offsets = [0, 256], sizes = [56, 32], strides = [1, 1]} : vector<56x512xbf16> to vector<56x32xbf16>
    %18 = vector.shape_cast %17 : vector<56x32xbf16> to vector<1x56x32xbf16>
    %c0_10 = arith.constant 0 : index
    %c0_11 = arith.constant 0 : index
    %c0_12 = arith.constant 0 : index
    %19 = vector.load %arg6[%c0_10, %c0_11, %c0_12] : memref<8x64x128xbf16, #tpu.memory_space<vmem>>, vector<1x64x128xbf16>
    %20 = vector.shape_cast %19 : vector<1x64x128xbf16> to vector<64x128xbf16>
    %cst_13 = arith.constant dense<0.000000e+00> : vector<56x128xf32>
    %21 = tpu.matmul %8, %20, %cst_13 {dimension_numbers = #tpu.dot_dimension_numbers<[1], [0], [0], [1], [0, 0, 1, 1], [], []>} : vector<56x64xbf16>, vector<64x128xbf16>, vector<56x128xf32> -> vector<56x128xf32>
    %c0_14 = arith.constant 0 : index
    %c0_15 = arith.constant 0 : index
    %c0_16 = arith.constant 0 : index
    %22 = vector.load %arg7[%c0_14, %c0_15, %c0_16] : memref<8x1x128xf32, #tpu.memory_space<vmem>>, vector<1x1x128xf32>
    %23 = vector.shape_cast %22 : vector<1x1x128xf32> to vector<1x128xf32>
    %24 = vector.broadcast %23 : vector<1x128xf32> to vector<56x128xf32>
    %25 = arith.addf %21, %24 : vector<56x128xf32>
    %26 = arith.truncf %25 : vector<56x128xf32> to vector<56x128xbf16>
    %27 = vector.shape_cast %26 : vector<56x128xbf16> to vector<1x56x128xbf16>
    "tpu.trace_start"() <{level = 10 : i32, message = "bik,bjk->bij"}> : () -> ()
    %cst_17 = arith.constant dense<0.000000e+00> : vector<1x56x56xf32>
    %28 = tpu.matmul %16, %18, %cst_17 {dimension_numbers = #tpu.dot_dimension_numbers<[2], [2], [1], [1], [0, 0, 0, 1, 1, 1], [0], [0]>} : vector<1x56x32xbf16>, vector<1x56x32xbf16>, vector<1x56x56xf32> -> vector<1x56x56xf32>
    "tpu.trace_stop"() : () -> ()
    %c0_18 = arith.constant 0 : index
    %c0_19 = arith.constant 0 : index
    %c0_20 = arith.constant 0 : index
    %29 = vector.load %arg8[%c0_18, %c0_19, %c0_20] : memref<8x56x56xbf16, #tpu.memory_space<vmem>>, vector<1x56x56xbf16>
    %30 = vector.shape_cast %29 : vector<1x56x56xbf16> to vector<56x56xbf16>
    %31 = arith.extf %30 : vector<56x56xbf16> to vector<56x56xf32>
    %32 = vector.shape_cast %31 : vector<56x56xf32> to vector<1x56x56xf32>
    %33 = arith.addf %28, %32 : vector<1x56x56xf32>
    %cst_21 = arith.constant dense<0xFF800000> : vector<1x56xf32>
    %34 = vector.multi_reduction <maximumf>, %33, %cst_21 [2] : vector<1x56x56xf32> to vector<1x56xf32>
    %35 = vector.shape_cast %34 : vector<1x56xf32> to vector<1x56x1xf32>
    %36 = vector.broadcast %35 : vector<1x56x1xf32> to vector<1x56x56xf32>
    %37 = arith.subf %33, %36 : vector<1x56x56xf32>
    %38 = math.exp %37 : vector<1x56x56xf32>
    %cst_22 = arith.constant dense<0.000000e+00> : vector<1x56xf32>
    %39 = vector.multi_reduction <add>, %38, %cst_22 [2] : vector<1x56x56xf32> to vector<1x56xf32>
    %40 = vector.shape_cast %39 : vector<1x56xf32> to vector<1x56x1xf32>
    %41 = tpu.reciprocal %40 {approx = true} : vector<1x56x1xf32> -> vector<1x56x1xf32>
    %42 = vector.broadcast %41 : vector<1x56x1xf32> to vector<1x56x56xf32>
    %43 = arith.mulf %38, %42 : vector<1x56x56xf32>
    %44 = arith.truncf %43 : vector<1x56x56xf32> to vector<1x56x56xbf16>
    "tpu.trace_start"() <{level = 10 : i32, message = "bij,bjd->bid"}> : () -> ()
    %cst_23 = arith.constant dense<0.000000e+00> : vector<1x56x128xf32>
    %45 = tpu.matmul %44, %27, %cst_23 {dimension_numbers = #tpu.dot_dimension_numbers<[2], [1], [1], [2], [0, 0, 0, 1, 1, 2], [0], [0]>} : vector<1x56x56xbf16>, vector<1x56x128xbf16>, vector<1x56x128xf32> -> vector<1x56x128xf32>
    "tpu.trace_stop"() : () -> ()
    %46 = arith.truncf %45 : vector<1x56x128xf32> to vector<1x56x128xbf16>
    %47 = vector.shape_cast %46 : vector<1x56x128xbf16> to vector<56x128xbf16>
    %c0_24 = arith.constant 0 : index
    %c0_25 = arith.constant 0 : index
    %48 = vector.load %arg18[%c0_24, %c0_25] : memref<56x1024xbf16, #tpu.memory_space<vmem>>, vector<56x128xbf16>
    tpu.vector_store %arg18[%c0_24, %c0_25], %47 {strides = array<i32>} : memref<56x1024xbf16, #tpu.memory_space<vmem>>, vector<56x128xbf16>,
    %49 = vector.extract_strided_slice %14 {offsets = [0, 32], sizes = [56, 32], strides = [1, 1]} : vector<56x512xbf16> to vector<56x32xbf16>
    %50 = vector.shape_cast %49 : vector<56x32xbf16> to vector<1x56x32xbf16>
    %51 = vector.extract_strided_slice %14 {offsets = [0, 288], sizes = [56, 32], strides = [1, 1]} : vector<56x512xbf16> to vector<56x32xbf16>
    %52 = vector.shape_cast %51 : vector<56x32xbf16> to vector<1x56x32xbf16>
    %c1 = arith.constant 1 : index
    %c0_26 = arith.constant 0 : index
    %c0_27 = arith.constant 0 : index
    %53 = vector.load %arg6[%c1, %c0_26, %c0_27] : memref<8x64x128xbf16, #tpu.memory_space<vmem>>, vector<1x64x128xbf16>
    %54 = vector.shape_cast %53 : vector<1x64x128xbf16> to vector<64x128xbf16>
    %cst_28 = arith.constant dense<0.000000e+00> : vector<56x128xf32>
    %55 = tpu.matmul %8, %54, %cst_28 {dimension_numbers = #tpu.dot_dimension_numbers<[1], [0], [0], [1], [0, 0, 1, 1], [], []>} : vector<56x64xbf16>, vector<64x128xbf16>, vector<56x128xf32> -> vector<56x128xf32>
    %c1_29 = arith.constant 1 : index
    %c0_30 = arith.constant 0 : index
    %c0_31 = arith.constant 0 : index
    %56 = vector.load %arg7[%c1_29, %c0_30, %c0_31] : memref<8x1x128xf32, #tpu.memory_space<vmem>>, vector<1x1x128xf32>
    %57 = vector.shape_cast %56 : vector<1x1x128xf32> to vector<1x128xf32>
    %58 = vector.broadcast %57 : vector<1x128xf32> to vector<56x128xf32>
    %59 = arith.addf %55, %58 : vector<56x128xf32>
    %60 = arith.truncf %59 : vector<56x128xf32> to vector<56x128xbf16>
    %61 = vector.shape_cast %60 : vector<56x128xbf16> to vector<1x56x128xbf16>
    "tpu.trace_start"() <{level = 10 : i32, message = "bik,bjk->bij"}> : () -> ()
    %cst_32 = arith.constant dense<0.000000e+00> : vector<1x56x56xf32>
    %62 = tpu.matmul %50, %52, %cst_32 {dimension_numbers = #tpu.dot_dimension_numbers<[2], [2], [1], [1], [0, 0, 0, 1, 1, 1], [0], [0]>} : vector<1x56x32xbf16>, vector<1x56x32xbf16>, vector<1x56x56xf32> -> vector<1x56x56xf32>
    "tpu.trace_stop"() : () -> ()
    %c1_33 = arith.constant 1 : index
    %c0_34 = arith.constant 0 : index
    %c0_35 = arith.constant 0 : index
    %63 = vector.load %arg8[%c1_33, %c0_34, %c0_35] : memref<8x56x56xbf16, #tpu.memory_space<vmem>>, vector<1x56x56xbf16>
    %64 = vector.shape_cast %63 : vector<1x56x56xbf16> to vector<56x56xbf16>
    %65 = arith.extf %64 : vector<56x56xbf16> to vector<56x56xf32>
    %66 = vector.shape_cast %65 : vector<56x56xf32> to vector<1x56x56xf32>
    %67 = arith.addf %62, %66 : vector<1x56x56xf32>
    %cst_36 = arith.constant dense<0xFF800000> : vector<1x56xf32>
    %68 = vector.multi_reduction <maximumf>, %67, %cst_36 [2] : vector<1x56x56xf32> to vector<1x56xf32>
    %69 = vector.shape_cast %68 : vector<1x56xf32> to vector<1x56x1xf32>
    %70 = vector.broadcast %69 : vector<1x56x1xf32> to vector<1x56x56xf32>
    %71 = arith.subf %67, %70 : vector<1x56x56xf32>
    %72 = math.exp %71 : vector<1x56x56xf32>
    %cst_37 = arith.constant dense<0.000000e+00> : vector<1x56xf32>
    %73 = vector.multi_reduction <add>, %72, %cst_37 [2] : vector<1x56x56xf32> to vector<1x56xf32>
    %74 = vector.shape_cast %73 : vector<1x56xf32> to vector<1x56x1xf32>
    %75 = tpu.reciprocal %74 {approx = true} : vector<1x56x1xf32> -> vector<1x56x1xf32>
    %76 = vector.broadcast %75 : vector<1x56x1xf32> to vector<1x56x56xf32>
    %77 = arith.mulf %72, %76 : vector<1x56x56xf32>
    %78 = arith.truncf %77 : vector<1x56x56xf32> to vector<1x56x56xbf16>
    "tpu.trace_start"() <{level = 10 : i32, message = "bij,bjd->bid"}> : () -> ()
    %cst_38 = arith.constant dense<0.000000e+00> : vector<1x56x128xf32>
    %79 = tpu.matmul %78, %61, %cst_38 {dimension_numbers = #tpu.dot_dimension_numbers<[2], [1], [1], [2], [0, 0, 0, 1, 1, 2], [0], [0]>} : vector<1x56x56xbf16>, vector<1x56x128xbf16>, vector<1x56x128xf32> -> vector<1x56x128xf32>
    "tpu.trace_stop"() : () -> ()
    %80 = arith.truncf %79 : vector<1x56x128xf32> to vector<1x56x128xbf16>
    %81 = vector.shape_cast %80 : vector<1x56x128xbf16> to vector<56x128xbf16>
    %c0_39 = arith.constant 0 : index
    %c128 = arith.constant 128 : index
    %82 = vector.load %arg18[%c0_39, %c128] : memref<56x1024xbf16, #tpu.memory_space<vmem>>, vector<56x128xbf16>
    tpu.vector_store %arg18[%c0_39, %c128], %81 {strides = array<i32>} : memref<56x1024xbf16, #tpu.memory_space<vmem>>, vector<56x128xbf16>,
    %83 = vector.extract_strided_slice %14 {offsets = [0, 64], sizes = [56, 32], strides = [1, 1]} : vector<56x512xbf16> to vector<56x32xbf16>
    %84 = vector.shape_cast %83 : vector<56x32xbf16> to vector<1x56x32xbf16>
    %85 = vector.extract_strided_slice %14 {offsets = [0, 320], sizes = [56, 32], strides = [1, 1]} : vector<56x512xbf16> to vector<56x32xbf16>
    %86 = vector.shape_cast %85 : vector<56x32xbf16> to vector<1x56x32xbf16>
    %c2 = arith.constant 2 : index
    %c0_40 = arith.constant 0 : index
    %c0_41 = arith.constant 0 : index
    %87 = vector.load %arg6[%c2, %c0_40, %c0_41] : memref<8x64x128xbf16, #tpu.memory_space<vmem>>, vector<1x64x128xbf16>
    %88 = vector.shape_cast %87 : vector<1x64x128xbf16> to vector<64x128xbf16>
    %cst_42 = arith.constant dense<0.000000e+00> : vector<56x128xf32>
    %89 = tpu.matmul %8, %88, %cst_42 {dimension_numbers = #tpu.dot_dimension_numbers<[1], [0], [0], [1], [0, 0, 1, 1], [], []>} : vector<56x64xbf16>, vector<64x128xbf16>, vector<56x128xf32> -> vector<56x128xf32>
    %c2_43 = arith.constant 2 : index
    %c0_44 = arith.constant 0 : index
    %c0_45 = arith.constant 0 : index
    %90 = vector.load %arg7[%c2_43, %c0_44, %c0_45] : memref<8x1x128xf32, #tpu.memory_space<vmem>>, vector<1x1x128xf32>
    %91 = vector.shape_cast %90 : vector<1x1x128xf32> to vector<1x128xf32>
    %92 = vector.broadcast %91 : vector<1x128xf32> to vector<56x128xf32>
    %93 = arith.addf %89, %92 : vector<56x128xf32>
    %94 = arith.truncf %93 : vector<56x128xf32> to vector<56x128xbf16>
    %95 = vector.shape_cast %94 : vector<56x128xbf16> to vector<1x56x128xbf16>
    "tpu.trace_start"() <{level = 10 : i32, message = "bik,bjk->bij"}> : () -> ()
    %cst_46 = arith.constant dense<0.000000e+00> : vector<1x56x56xf32>
    %96 = tpu.matmul %84, %86, %cst_46 {dimension_numbers = #tpu.dot_dimension_numbers<[2], [2], [1], [1], [0, 0, 0, 1, 1, 1], [0], [0]>} : vector<1x56x32xbf16>, vector<1x56x32xbf16>, vector<1x56x56xf32> -> vector<1x56x56xf32>
    "tpu.trace_stop"() : () -> ()
    %c2_47 = arith.constant 2 : index
    %c0_48 = arith.constant 0 : index
    %c0_49 = arith.constant 0 : index
    %97 = vector.load %arg8[%c2_47, %c0_48, %c0_49] : memref<8x56x56xbf16, #tpu.memory_space<vmem>>, vector<1x56x56xbf16>
    %98 = vector.shape_cast %97 : vector<1x56x56xbf16> to vector<56x56xbf16>
    %99 = arith.extf %98 : vector<56x56xbf16> to vector<56x56xf32>
    %100 = vector.shape_cast %99 : vector<56x56xf32> to vector<1x56x56xf32>
    %101 = arith.addf %96, %100 : vector<1x56x56xf32>
    %cst_50 = arith.constant dense<0xFF800000> : vector<1x56xf32>
    %102 = vector.multi_reduction <maximumf>, %101, %cst_50 [2] : vector<1x56x56xf32> to vector<1x56xf32>
    %103 = vector.shape_cast %102 : vector<1x56xf32> to vector<1x56x1xf32>
    %104 = vector.broadcast %103 : vector<1x56x1xf32> to vector<1x56x56xf32>
    %105 = arith.subf %101, %104 : vector<1x56x56xf32>
    %106 = math.exp %105 : vector<1x56x56xf32>
    %cst_51 = arith.constant dense<0.000000e+00> : vector<1x56xf32>
    %107 = vector.multi_reduction <add>, %106, %cst_51 [2] : vector<1x56x56xf32> to vector<1x56xf32>
    %108 = vector.shape_cast %107 : vector<1x56xf32> to vector<1x56x1xf32>
    %109 = tpu.reciprocal %108 {approx = true} : vector<1x56x1xf32> -> vector<1x56x1xf32>
    %110 = vector.broadcast %109 : vector<1x56x1xf32> to vector<1x56x56xf32>
    %111 = arith.mulf %106, %110 : vector<1x56x56xf32>
    %112 = arith.truncf %111 : vector<1x56x56xf32> to vector<1x56x56xbf16>
    "tpu.trace_start"() <{level = 10 : i32, message = "bij,bjd->bid"}> : () -> ()
    %cst_52 = arith.constant dense<0.000000e+00> : vector<1x56x128xf32>
    %113 = tpu.matmul %112, %95, %cst_52 {dimension_numbers = #tpu.dot_dimension_numbers<[2], [1], [1], [2], [0, 0, 0, 1, 1, 2], [0], [0]>} : vector<1x56x56xbf16>, vector<1x56x128xbf16>, vector<1x56x128xf32> -> vector<1x56x128xf32>
    "tpu.trace_stop"() : () -> ()
    %114 = arith.truncf %113 : vector<1x56x128xf32> to vector<1x56x128xbf16>
    %115 = vector.shape_cast %114 : vector<1x56x128xbf16> to vector<56x128xbf16>
    %c0_53 = arith.constant 0 : index
    %c256 = arith.constant 256 : index
    %116 = vector.load %arg18[%c0_53, %c256] : memref<56x1024xbf16, #tpu.memory_space<vmem>>, vector<56x128xbf16>
    tpu.vector_store %arg18[%c0_53, %c256], %115 {strides = array<i32>} : memref<56x1024xbf16, #tpu.memory_space<vmem>>, vector<56x128xbf16>,
    %117 = vector.extract_strided_slice %14 {offsets = [0, 96], sizes = [56, 32], strides = [1, 1]} : vector<56x512xbf16> to vector<56x32xbf16>
    %118 = vector.shape_cast %117 : vector<56x32xbf16> to vector<1x56x32xbf16>
    %119 = vector.extract_strided_slice %14 {offsets = [0, 352], sizes = [56, 32], strides = [1, 1]} : vector<56x512xbf16> to vector<56x32xbf16>
    %120 = vector.shape_cast %119 : vector<56x32xbf16> to vector<1x56x32xbf16>
    %c3 = arith.constant 3 : index
    %c0_54 = arith.constant 0 : index
    %c0_55 = arith.constant 0 : index
    %121 = vector.load %arg6[%c3, %c0_54, %c0_55] : memref<8x64x128xbf16, #tpu.memory_space<vmem>>, vector<1x64x128xbf16>
    %122 = vector.shape_cast %121 : vector<1x64x128xbf16> to vector<64x128xbf16>
    %cst_56 = arith.constant dense<0.000000e+00> : vector<56x128xf32>
    %123 = tpu.matmul %8, %122, %cst_56 {dimension_numbers = #tpu.dot_dimension_numbers<[1], [0], [0], [1], [0, 0, 1, 1], [], []>} : vector<56x64xbf16>, vector<64x128xbf16>, vector<56x128xf32> -> vector<56x128xf32>
    %c3_57 = arith.constant 3 : index
    %c0_58 = arith.constant 0 : index
    %c0_59 = arith.constant 0 : index
    %124 = vector.load %arg7[%c3_57, %c0_58, %c0_59] : memref<8x1x128xf32, #tpu.memory_space<vmem>>, vector<1x1x128xf32>
    %125 = vector.shape_cast %124 : vector<1x1x128xf32> to vector<1x128xf32>
    %126 = vector.broadcast %125 : vector<1x128xf32> to vector<56x128xf32>
    %127 = arith.addf %123, %126 : vector<56x128xf32>
    %128 = arith.truncf %127 : vector<56x128xf32> to vector<56x128xbf16>
    %129 = vector.shape_cast %128 : vector<56x128xbf16> to vector<1x56x128xbf16>
    "tpu.trace_start"() <{level = 10 : i32, message = "bik,bjk->bij"}> : () -> ()
    %cst_60 = arith.constant dense<0.000000e+00> : vector<1x56x56xf32>
    %130 = tpu.matmul %118, %120, %cst_60 {dimension_numbers = #tpu.dot_dimension_numbers<[2], [2], [1], [1], [0, 0, 0, 1, 1, 1], [0], [0]>} : vector<1x56x32xbf16>, vector<1x56x32xbf16>, vector<1x56x56xf32> -> vector<1x56x56xf32>
    "tpu.trace_stop"() : () -> ()
    %c3_61 = arith.constant 3 : index
    %c0_62 = arith.constant 0 : index
    %c0_63 = arith.constant 0 : index
    %131 = vector.load %arg8[%c3_61, %c0_62, %c0_63] : memref<8x56x56xbf16, #tpu.memory_space<vmem>>, vector<1x56x56xbf16>
    %132 = vector.shape_cast %131 : vector<1x56x56xbf16> to vector<56x56xbf16>
    %133 = arith.extf %132 : vector<56x56xbf16> to vector<56x56xf32>
    %134 = vector.shape_cast %133 : vector<56x56xf32> to vector<1x56x56xf32>
    %135 = arith.addf %130, %134 : vector<1x56x56xf32>
    %cst_64 = arith.constant dense<0xFF800000> : vector<1x56xf32>
    %136 = vector.multi_reduction <maximumf>, %135, %cst_64 [2] : vector<1x56x56xf32> to vector<1x56xf32>
    %137 = vector.shape_cast %136 : vector<1x56xf32> to vector<1x56x1xf32>
    %138 = vector.broadcast %137 : vector<1x56x1xf32> to vector<1x56x56xf32>
    %139 = arith.subf %135, %138 : vector<1x56x56xf32>
    %140 = math.exp %139 : vector<1x56x56xf32>
    %cst_65 = arith.constant dense<0.000000e+00> : vector<1x56xf32>
    %141 = vector.multi_reduction <add>, %140, %cst_65 [2] : vector<1x56x56xf32> to vector<1x56xf32>
    %142 = vector.shape_cast %141 : vector<1x56xf32> to vector<1x56x1xf32>
    %143 = tpu.reciprocal %142 {approx = true} : vector<1x56x1xf32> -> vector<1x56x1xf32>
    %144 = vector.broadcast %143 : vector<1x56x1xf32> to vector<1x56x56xf32>
    %145 = arith.mulf %140, %144 : vector<1x56x56xf32>
    %146 = arith.truncf %145 : vector<1x56x56xf32> to vector<1x56x56xbf16>
    "tpu.trace_start"() <{level = 10 : i32, message = "bij,bjd->bid"}> : () -> ()
    %cst_66 = arith.constant dense<0.000000e+00> : vector<1x56x128xf32>
    %147 = tpu.matmul %146, %129, %cst_66 {dimension_numbers = #tpu.dot_dimension_numbers<[2], [1], [1], [2], [0, 0, 0, 1, 1, 2], [0], [0]>} : vector<1x56x56xbf16>, vector<1x56x128xbf16>, vector<1x56x128xf32> -> vector<1x56x128xf32>
    "tpu.trace_stop"() : () -> ()
    %148 = arith.truncf %147 : vector<1x56x128xf32> to vector<1x56x128xbf16>
    %149 = vector.shape_cast %148 : vector<1x56x128xbf16> to vector<56x128xbf16>
    %c0_67 = arith.constant 0 : index
    %c384 = arith.constant 384 : index
    %150 = vector.load %arg18[%c0_67, %c384] : memref<56x1024xbf16, #tpu.memory_space<vmem>>, vector<56x128xbf16>
    tpu.vector_store %arg18[%c0_67, %c384], %149 {strides = array<i32>} : memref<56x1024xbf16, #tpu.memory_space<vmem>>, vector<56x128xbf16>,
    %151 = vector.extract_strided_slice %14 {offsets = [0, 128], sizes = [56, 32], strides = [1, 1]} : vector<56x512xbf16> to vector<56x32xbf16>
    %152 = vector.shape_cast %151 : vector<56x32xbf16> to vector<1x56x32xbf16>
    %153 = vector.extract_strided_slice %14 {offsets = [0, 384], sizes = [56, 32], strides = [1, 1]} : vector<56x512xbf16> to vector<56x32xbf16>
    %154 = vector.shape_cast %153 : vector<56x32xbf16> to vector<1x56x32xbf16>
    %c4 = arith.constant 4 : index
    %c0_68 = arith.constant 0 : index
    %c0_69 = arith.constant 0 : index
    %155 = vector.load %arg6[%c4, %c0_68, %c0_69] : memref<8x64x128xbf16, #tpu.memory_space<vmem>>, vector<1x64x128xbf16>
    %156 = vector.shape_cast %155 : vector<1x64x128xbf16> to vector<64x128xbf16>
    %cst_70 = arith.constant dense<0.000000e+00> : vector<56x128xf32>
    %157 = tpu.matmul %8, %156, %cst_70 {dimension_numbers = #tpu.dot_dimension_numbers<[1], [0], [0], [1], [0, 0, 1, 1], [], []>} : vector<56x64xbf16>, vector<64x128xbf16>, vector<56x128xf32> -> vector<56x128xf32>
    %c4_71 = arith.constant 4 : index
    %c0_72 = arith.constant 0 : index
    %c0_73 = arith.constant 0 : index
    %158 = vector.load %arg7[%c4_71, %c0_72, %c0_73] : memref<8x1x128xf32, #tpu.memory_space<vmem>>, vector<1x1x128xf32>
    %159 = vector.shape_cast %158 : vector<1x1x128xf32> to vector<1x128xf32>
    %160 = vector.broadcast %159 : vector<1x128xf32> to vector<56x128xf32>
    %161 = arith.addf %157, %160 : vector<56x128xf32>
    %162 = arith.truncf %161 : vector<56x128xf32> to vector<56x128xbf16>
    %163 = vector.shape_cast %162 : vector<56x128xbf16> to vector<1x56x128xbf16>
    "tpu.trace_start"() <{level = 10 : i32, message = "bik,bjk->bij"}> : () -> ()
    %cst_74 = arith.constant dense<0.000000e+00> : vector<1x56x56xf32>
    %164 = tpu.matmul %152, %154, %cst_74 {dimension_numbers = #tpu.dot_dimension_numbers<[2], [2], [1], [1], [0, 0, 0, 1, 1, 1], [0], [0]>} : vector<1x56x32xbf16>, vector<1x56x32xbf16>, vector<1x56x56xf32> -> vector<1x56x56xf32>
    "tpu.trace_stop"() : () -> ()
    %c4_75 = arith.constant 4 : index
    %c0_76 = arith.constant 0 : index
    %c0_77 = arith.constant 0 : index
    %165 = vector.load %arg8[%c4_75, %c0_76, %c0_77] : memref<8x56x56xbf16, #tpu.memory_space<vmem>>, vector<1x56x56xbf16>
    %166 = vector.shape_cast %165 : vector<1x56x56xbf16> to vector<56x56xbf16>
    %167 = arith.extf %166 : vector<56x56xbf16> to vector<56x56xf32>
    %168 = vector.shape_cast %167 : vector<56x56xf32> to vector<1x56x56xf32>
    %169 = arith.addf %164, %168 : vector<1x56x56xf32>
    %cst_78 = arith.constant dense<0xFF800000> : vector<1x56xf32>
    %170 = vector.multi_reduction <maximumf>, %169, %cst_78 [2] : vector<1x56x56xf32> to vector<1x56xf32>
    %171 = vector.shape_cast %170 : vector<1x56xf32> to vector<1x56x1xf32>
    %172 = vector.broadcast %171 : vector<1x56x1xf32> to vector<1x56x56xf32>
    %173 = arith.subf %169, %172 : vector<1x56x56xf32>
    %174 = math.exp %173 : vector<1x56x56xf32>
    %cst_79 = arith.constant dense<0.000000e+00> : vector<1x56xf32>
    %175 = vector.multi_reduction <add>, %174, %cst_79 [2] : vector<1x56x56xf32> to vector<1x56xf32>
    %176 = vector.shape_cast %175 : vector<1x56xf32> to vector<1x56x1xf32>
    %177 = tpu.reciprocal %176 {approx = true} : vector<1x56x1xf32> -> vector<1x56x1xf32>
    %178 = vector.broadcast %177 : vector<1x56x1xf32> to vector<1x56x56xf32>
    %179 = arith.mulf %174, %178 : vector<1x56x56xf32>
    %180 = arith.truncf %179 : vector<1x56x56xf32> to vector<1x56x56xbf16>
    "tpu.trace_start"() <{level = 10 : i32, message = "bij,bjd->bid"}> : () -> ()
    %cst_80 = arith.constant dense<0.000000e+00> : vector<1x56x128xf32>
    %181 = tpu.matmul %180, %163, %cst_80 {dimension_numbers = #tpu.dot_dimension_numbers<[2], [1], [1], [2], [0, 0, 0, 1, 1, 2], [0], [0]>} : vector<1x56x56xbf16>, vector<1x56x128xbf16>, vector<1x56x128xf32> -> vector<1x56x128xf32>
    "tpu.trace_stop"() : () -> ()
    %182 = arith.truncf %181 : vector<1x56x128xf32> to vector<1x56x128xbf16>
    %183 = vector.shape_cast %182 : vector<1x56x128xbf16> to vector<56x128xbf16>
    %c0_81 = arith.constant 0 : index
    %c512 = arith.constant 512 : index
    %184 = vector.load %arg18[%c0_81, %c512] : memref<56x1024xbf16, #tpu.memory_space<vmem>>, vector<56x128xbf16>
    tpu.vector_store %arg18[%c0_81, %c512], %183 {strides = array<i32>} : memref<56x1024xbf16, #tpu.memory_space<vmem>>, vector<56x128xbf16>,
    %185 = vector.extract_strided_slice %14 {offsets = [0, 160], sizes = [56, 32], strides = [1, 1]} : vector<56x512xbf16> to vector<56x32xbf16>
    %186 = vector.shape_cast %185 : vector<56x32xbf16> to vector<1x56x32xbf16>
    %187 = vector.extract_strided_slice %14 {offsets = [0, 416], sizes = [56, 32], strides = [1, 1]} : vector<56x512xbf16> to vector<56x32xbf16>
    %188 = vector.shape_cast %187 : vector<56x32xbf16> to vector<1x56x32xbf16>
    %c5 = arith.constant 5 : index
    %c0_82 = arith.constant 0 : index
    %c0_83 = arith.constant 0 : index
    %189 = vector.load %arg6[%c5, %c0_82, %c0_83] : memref<8x64x128xbf16, #tpu.memory_space<vmem>>, vector<1x64x128xbf16>
    %190 = vector.shape_cast %189 : vector<1x64x128xbf16> to vector<64x128xbf16>
    %cst_84 = arith.constant dense<0.000000e+00> : vector<56x128xf32>
    %191 = tpu.matmul %8, %190, %cst_84 {dimension_numbers = #tpu.dot_dimension_numbers<[1], [0], [0], [1], [0, 0, 1, 1], [], []>} : vector<56x64xbf16>, vector<64x128xbf16>, vector<56x128xf32> -> vector<56x128xf32>
    %c5_85 = arith.constant 5 : index
    %c0_86 = arith.constant 0 : index
    %c0_87 = arith.constant 0 : index
    %192 = vector.load %arg7[%c5_85, %c0_86, %c0_87] : memref<8x1x128xf32, #tpu.memory_space<vmem>>, vector<1x1x128xf32>
    %193 = vector.shape_cast %192 : vector<1x1x128xf32> to vector<1x128xf32>
    %194 = vector.broadcast %193 : vector<1x128xf32> to vector<56x128xf32>
    %195 = arith.addf %191, %194 : vector<56x128xf32>
    %196 = arith.truncf %195 : vector<56x128xf32> to vector<56x128xbf16>
    %197 = vector.shape_cast %196 : vector<56x128xbf16> to vector<1x56x128xbf16>
    "tpu.trace_start"() <{level = 10 : i32, message = "bik,bjk->bij"}> : () -> ()
    %cst_88 = arith.constant dense<0.000000e+00> : vector<1x56x56xf32>
    %198 = tpu.matmul %186, %188, %cst_88 {dimension_numbers = #tpu.dot_dimension_numbers<[2], [2], [1], [1], [0, 0, 0, 1, 1, 1], [0], [0]>} : vector<1x56x32xbf16>, vector<1x56x32xbf16>, vector<1x56x56xf32> -> vector<1x56x56xf32>
    "tpu.trace_stop"() : () -> ()
    %c5_89 = arith.constant 5 : index
    %c0_90 = arith.constant 0 : index
    %c0_91 = arith.constant 0 : index
    %199 = vector.load %arg8[%c5_89, %c0_90, %c0_91] : memref<8x56x56xbf16, #tpu.memory_space<vmem>>, vector<1x56x56xbf16>
    %200 = vector.shape_cast %199 : vector<1x56x56xbf16> to vector<56x56xbf16>
    %201 = arith.extf %200 : vector<56x56xbf16> to vector<56x56xf32>
    %202 = vector.shape_cast %201 : vector<56x56xf32> to vector<1x56x56xf32>
    %203 = arith.addf %198, %202 : vector<1x56x56xf32>
    %cst_92 = arith.constant dense<0xFF800000> : vector<1x56xf32>
    %204 = vector.multi_reduction <maximumf>, %203, %cst_92 [2] : vector<1x56x56xf32> to vector<1x56xf32>
    %205 = vector.shape_cast %204 : vector<1x56xf32> to vector<1x56x1xf32>
    %206 = vector.broadcast %205 : vector<1x56x1xf32> to vector<1x56x56xf32>
    %207 = arith.subf %203, %206 : vector<1x56x56xf32>
    %208 = math.exp %207 : vector<1x56x56xf32>
    %cst_93 = arith.constant dense<0.000000e+00> : vector<1x56xf32>
    %209 = vector.multi_reduction <add>, %208, %cst_93 [2] : vector<1x56x56xf32> to vector<1x56xf32>
    %210 = vector.shape_cast %209 : vector<1x56xf32> to vector<1x56x1xf32>
    %211 = tpu.reciprocal %210 {approx = true} : vector<1x56x1xf32> -> vector<1x56x1xf32>
    %212 = vector.broadcast %211 : vector<1x56x1xf32> to vector<1x56x56xf32>
    %213 = arith.mulf %208, %212 : vector<1x56x56xf32>
    %214 = arith.truncf %213 : vector<1x56x56xf32> to vector<1x56x56xbf16>
    "tpu.trace_start"() <{level = 10 : i32, message = "bij,bjd->bid"}> : () -> ()
    %cst_94 = arith.constant dense<0.000000e+00> : vector<1x56x128xf32>
    %215 = tpu.matmul %214, %197, %cst_94 {dimension_numbers = #tpu.dot_dimension_numbers<[2], [1], [1], [2], [0, 0, 0, 1, 1, 2], [0], [0]>} : vector<1x56x56xbf16>, vector<1x56x128xbf16>, vector<1x56x128xf32> -> vector<1x56x128xf32>
    "tpu.trace_stop"() : () -> ()
    %216 = arith.truncf %215 : vector<1x56x128xf32> to vector<1x56x128xbf16>
    %217 = vector.shape_cast %216 : vector<1x56x128xbf16> to vector<56x128xbf16>
    %c0_95 = arith.constant 0 : index
    %c640 = arith.constant 640 : index
    %218 = vector.load %arg18[%c0_95, %c640] : memref<56x1024xbf16, #tpu.memory_space<vmem>>, vector<56x128xbf16>
    tpu.vector_store %arg18[%c0_95, %c640], %217 {strides = array<i32>} : memref<56x1024xbf16, #tpu.memory_space<vmem>>, vector<56x128xbf16>,
    %219 = vector.extract_strided_slice %14 {offsets = [0, 192], sizes = [56, 32], strides = [1, 1]} : vector<56x512xbf16> to vector<56x32xbf16>
    %220 = vector.shape_cast %219 : vector<56x32xbf16> to vector<1x56x32xbf16>
    %221 = vector.extract_strided_slice %14 {offsets = [0, 448], sizes = [56, 32], strides = [1, 1]} : vector<56x512xbf16> to vector<56x32xbf16>
    %222 = vector.shape_cast %221 : vector<56x32xbf16> to vector<1x56x32xbf16>
    %c6 = arith.constant 6 : index
    %c0_96 = arith.constant 0 : index
    %c0_97 = arith.constant 0 : index
    %223 = vector.load %arg6[%c6, %c0_96, %c0_97] : memref<8x64x128xbf16, #tpu.memory_space<vmem>>, vector<1x64x128xbf16>
    %224 = vector.shape_cast %223 : vector<1x64x128xbf16> to vector<64x128xbf16>
    %cst_98 = arith.constant dense<0.000000e+00> : vector<56x128xf32>
    %225 = tpu.matmul %8, %224, %cst_98 {dimension_numbers = #tpu.dot_dimension_numbers<[1], [0], [0], [1], [0, 0, 1, 1], [], []>} : vector<56x64xbf16>, vector<64x128xbf16>, vector<56x128xf32> -> vector<56x128xf32>
    %c6_99 = arith.constant 6 : index
    %c0_100 = arith.constant 0 : index
    %c0_101 = arith.constant 0 : index
    %226 = vector.load %arg7[%c6_99, %c0_100, %c0_101] : memref<8x1x128xf32, #tpu.memory_space<vmem>>, vector<1x1x128xf32>
    %227 = vector.shape_cast %226 : vector<1x1x128xf32> to vector<1x128xf32>
    %228 = vector.broadcast %227 : vector<1x128xf32> to vector<56x128xf32>
    %229 = arith.addf %225, %228 : vector<56x128xf32>
    %230 = arith.truncf %229 : vector<56x128xf32> to vector<56x128xbf16>
    %231 = vector.shape_cast %230 : vector<56x128xbf16> to vector<1x56x128xbf16>
    "tpu.trace_start"() <{level = 10 : i32, message = "bik,bjk->bij"}> : () -> ()
    %cst_102 = arith.constant dense<0.000000e+00> : vector<1x56x56xf32>
    %232 = tpu.matmul %220, %222, %cst_102 {dimension_numbers = #tpu.dot_dimension_numbers<[2], [2], [1], [1], [0, 0, 0, 1, 1, 1], [0], [0]>} : vector<1x56x32xbf16>, vector<1x56x32xbf16>, vector<1x56x56xf32> -> vector<1x56x56xf32>
    "tpu.trace_stop"() : () -> ()
    %c6_103 = arith.constant 6 : index
    %c0_104 = arith.constant 0 : index
    %c0_105 = arith.constant 0 : index
    %233 = vector.load %arg8[%c6_103, %c0_104, %c0_105] : memref<8x56x56xbf16, #tpu.memory_space<vmem>>, vector<1x56x56xbf16>
    %234 = vector.shape_cast %233 : vector<1x56x56xbf16> to vector<56x56xbf16>
    %235 = arith.extf %234 : vector<56x56xbf16> to vector<56x56xf32>
    %236 = vector.shape_cast %235 : vector<56x56xf32> to vector<1x56x56xf32>
    %237 = arith.addf %232, %236 : vector<1x56x56xf32>
    %cst_106 = arith.constant dense<0xFF800000> : vector<1x56xf32>
    %238 = vector.multi_reduction <maximumf>, %237, %cst_106 [2] : vector<1x56x56xf32> to vector<1x56xf32>
    %239 = vector.shape_cast %238 : vector<1x56xf32> to vector<1x56x1xf32>
    %240 = vector.broadcast %239 : vector<1x56x1xf32> to vector<1x56x56xf32>
    %241 = arith.subf %237, %240 : vector<1x56x56xf32>
    %242 = math.exp %241 : vector<1x56x56xf32>
    %cst_107 = arith.constant dense<0.000000e+00> : vector<1x56xf32>
    %243 = vector.multi_reduction <add>, %242, %cst_107 [2] : vector<1x56x56xf32> to vector<1x56xf32>
    %244 = vector.shape_cast %243 : vector<1x56xf32> to vector<1x56x1xf32>
    %245 = tpu.reciprocal %244 {approx = true} : vector<1x56x1xf32> -> vector<1x56x1xf32>
    %246 = vector.broadcast %245 : vector<1x56x1xf32> to vector<1x56x56xf32>
    %247 = arith.mulf %242, %246 : vector<1x56x56xf32>
    %248 = arith.truncf %247 : vector<1x56x56xf32> to vector<1x56x56xbf16>
    "tpu.trace_start"() <{level = 10 : i32, message = "bij,bjd->bid"}> : () -> ()
    %cst_108 = arith.constant dense<0.000000e+00> : vector<1x56x128xf32>
    %249 = tpu.matmul %248, %231, %cst_108 {dimension_numbers = #tpu.dot_dimension_numbers<[2], [1], [1], [2], [0, 0, 0, 1, 1, 2], [0], [0]>} : vector<1x56x56xbf16>, vector<1x56x128xbf16>, vector<1x56x128xf32> -> vector<1x56x128xf32>
    "tpu.trace_stop"() : () -> ()
    %250 = arith.truncf %249 : vector<1x56x128xf32> to vector<1x56x128xbf16>
    %251 = vector.shape_cast %250 : vector<1x56x128xbf16> to vector<56x128xbf16>
    %c0_109 = arith.constant 0 : index
    %c768 = arith.constant 768 : index
    %252 = vector.load %arg18[%c0_109, %c768] : memref<56x1024xbf16, #tpu.memory_space<vmem>>, vector<56x128xbf16>
    tpu.vector_store %arg18[%c0_109, %c768], %251 {strides = array<i32>} : memref<56x1024xbf16, #tpu.memory_space<vmem>>, vector<56x128xbf16>,
    %253 = vector.extract_strided_slice %14 {offsets = [0, 224], sizes = [56, 32], strides = [1, 1]} : vector<56x512xbf16> to vector<56x32xbf16>
    %254 = vector.shape_cast %253 : vector<56x32xbf16> to vector<1x56x32xbf16>
    %255 = vector.extract_strided_slice %14 {offsets = [0, 480], sizes = [56, 32], strides = [1, 1]} : vector<56x512xbf16> to vector<56x32xbf16>
    %256 = vector.shape_cast %255 : vector<56x32xbf16> to vector<1x56x32xbf16>
    %c7 = arith.constant 7 : index
    %c0_110 = arith.constant 0 : index
    %c0_111 = arith.constant 0 : index
    %257 = vector.load %arg6[%c7, %c0_110, %c0_111] : memref<8x64x128xbf16, #tpu.memory_space<vmem>>, vector<1x64x128xbf16>
    %258 = vector.shape_cast %257 : vector<1x64x128xbf16> to vector<64x128xbf16>
    %cst_112 = arith.constant dense<0.000000e+00> : vector<56x128xf32>
    %259 = tpu.matmul %8, %258, %cst_112 {dimension_numbers = #tpu.dot_dimension_numbers<[1], [0], [0], [1], [0, 0, 1, 1], [], []>} : vector<56x64xbf16>, vector<64x128xbf16>, vector<56x128xf32> -> vector<56x128xf32>
    %c7_113 = arith.constant 7 : index
    %c0_114 = arith.constant 0 : index
    %c0_115 = arith.constant 0 : index
    %260 = vector.load %arg7[%c7_113, %c0_114, %c0_115] : memref<8x1x128xf32, #tpu.memory_space<vmem>>, vector<1x1x128xf32>
    %261 = vector.shape_cast %260 : vector<1x1x128xf32> to vector<1x128xf32>
    %262 = vector.broadcast %261 : vector<1x128xf32> to vector<56x128xf32>
    %263 = arith.addf %259, %262 : vector<56x128xf32>
    %264 = arith.truncf %263 : vector<56x128xf32> to vector<56x128xbf16>
    %265 = vector.shape_cast %264 : vector<56x128xbf16> to vector<1x56x128xbf16>
    "tpu.trace_start"() <{level = 10 : i32, message = "bik,bjk->bij"}> : () -> ()
    %cst_116 = arith.constant dense<0.000000e+00> : vector<1x56x56xf32>
    %266 = tpu.matmul %254, %256, %cst_116 {dimension_numbers = #tpu.dot_dimension_numbers<[2], [2], [1], [1], [0, 0, 0, 1, 1, 1], [0], [0]>} : vector<1x56x32xbf16>, vector<1x56x32xbf16>, vector<1x56x56xf32> -> vector<1x56x56xf32>
    "tpu.trace_stop"() : () -> ()
    %c7_117 = arith.constant 7 : index
    %c0_118 = arith.constant 0 : index
    %c0_119 = arith.constant 0 : index
    %267 = vector.load %arg8[%c7_117, %c0_118, %c0_119] : memref<8x56x56xbf16, #tpu.memory_space<vmem>>, vector<1x56x56xbf16>
    %268 = vector.shape_cast %267 : vector<1x56x56xbf16> to vector<56x56xbf16>
    %269 = arith.extf %268 : vector<56x56xbf16> to vector<56x56xf32>
    %270 = vector.shape_cast %269 : vector<56x56xf32> to vector<1x56x56xf32>
    %271 = arith.addf %266, %270 : vector<1x56x56xf32>
    %cst_120 = arith.constant dense<0xFF800000> : vector<1x56xf32>
    %272 = vector.multi_reduction <maximumf>, %271, %cst_120 [2] : vector<1x56x56xf32> to vector<1x56xf32>
    %273 = vector.shape_cast %272 : vector<1x56xf32> to vector<1x56x1xf32>
    %274 = vector.broadcast %273 : vector<1x56x1xf32> to vector<1x56x56xf32>
    %275 = arith.subf %271, %274 : vector<1x56x56xf32>
    %276 = math.exp %275 : vector<1x56x56xf32>
    %cst_121 = arith.constant dense<0.000000e+00> : vector<1x56xf32>
    %277 = vector.multi_reduction <add>, %276, %cst_121 [2] : vector<1x56x56xf32> to vector<1x56xf32>
    %278 = vector.shape_cast %277 : vector<1x56xf32> to vector<1x56x1xf32>
    %279 = tpu.reciprocal %278 {approx = true} : vector<1x56x1xf32> -> vector<1x56x1xf32>
    %280 = vector.broadcast %279 : vector<1x56x1xf32> to vector<1x56x56xf32>
    %281 = arith.mulf %276, %280 : vector<1x56x56xf32>
    %282 = arith.truncf %281 : vector<1x56x56xf32> to vector<1x56x56xbf16>
    "tpu.trace_start"() <{level = 10 : i32, message = "bij,bjd->bid"}> : () -> ()
    %cst_122 = arith.constant dense<0.000000e+00> : vector<1x56x128xf32>
    %283 = tpu.matmul %282, %265, %cst_122 {dimension_numbers = #tpu.dot_dimension_numbers<[2], [1], [1], [2], [0, 0, 0, 1, 1, 2], [0], [0]>} : vector<1x56x56xbf16>, vector<1x56x128xbf16>, vector<1x56x128xf32> -> vector<1x56x128xf32>
    "tpu.trace_stop"() : () -> ()
    %284 = arith.truncf %283 : vector<1x56x128xf32> to vector<1x56x128xbf16>
    %285 = vector.shape_cast %284 : vector<1x56x128xbf16> to vector<56x128xbf16>
    %c0_123 = arith.constant 0 : index
    %c896 = arith.constant 896 : index
    %286 = vector.load %arg18[%c0_123, %c896] : memref<56x1024xbf16, #tpu.memory_space<vmem>>, vector<56x128xbf16>
    tpu.vector_store %arg18[%c0_123, %c896], %285 {strides = array<i32>} : memref<56x1024xbf16, #tpu.memory_space<vmem>>, vector<56x128xbf16>,
    %c0_124 = arith.constant 0 : index
    %c0_125 = arith.constant 0 : index
    %287 = vector.load %arg18[%c0_124, %c0_125] : memref<56x1024xbf16, #tpu.memory_space<vmem>>, vector<56x1024xbf16>
    %c0_126 = arith.constant 0 : index
    %c0_127 = arith.constant 0 : index
    %288 = vector.load %arg9[%c0_126, %c0_127] : memref<1024x64xbf16, #tpu.memory_space<vmem>>, vector<1024x64xbf16>
    %cst_128 = arith.constant dense<0.000000e+00> : vector<56x64xf32>
    %289 = tpu.matmul %287, %288, %cst_128 {dimension_numbers = #tpu.dot_dimension_numbers<[1], [0], [0], [1], [0, 0, 1, 1], [], []>} : vector<56x1024xbf16>, vector<1024x64xbf16>, vector<56x64xf32> -> vector<56x64xf32>
    %290 = arith.addf %1, %289 : vector<56x64xf32>
    %c0_129 = arith.constant 0 : index
    %c0_130 = arith.constant 0 : index
    %291 = vector.load %arg10[%c0_129, %c0_130] : memref<1x64xf32, #tpu.memory_space<vmem>>, vector<1x64xf32>
    %292 = vector.broadcast %291 : vector<1x64xf32> to vector<56x64xf32>
    %293 = arith.addf %290, %292 : vector<56x64xf32>
    %c0_131 = arith.constant 0 : index
    %c0_132 = arith.constant 0 : index
    %294 = vector.load %arg11[%c0_131, %c0_132] : memref<1x64xf32, #tpu.memory_space<vmem>>, vector<1x64xf32>
    %295 = vector.broadcast %294 : vector<1x64xf32> to vector<56x64xf32>
    %296 = arith.mulf %293, %295 : vector<56x64xf32>
    %c0_133 = arith.constant 0 : index
    %c0_134 = arith.constant 0 : index
    %297 = vector.load %arg12[%c0_133, %c0_134] : memref<1x64xf32, #tpu.memory_space<vmem>>, vector<1x64xf32>
    %298 = vector.broadcast %297 : vector<1x64xf32> to vector<56x64xf32>
    %299 = arith.addf %296, %298 : vector<56x64xf32>
    %300 = arith.truncf %299 : vector<56x64xf32> to vector<56x64xbf16>
    %c0_135 = arith.constant 0 : index
    %c0_136 = arith.constant 0 : index
    %301 = vector.load %arg13[%c0_135, %c0_136] : memref<64x256xbf16, #tpu.memory_space<vmem>>, vector<64x256xbf16>
    %cst_137 = arith.constant dense<0.000000e+00> : vector<56x256xf32>
    %302 = tpu.matmul %300, %301, %cst_137 {dimension_numbers = #tpu.dot_dimension_numbers<[1], [0], [0], [1], [0, 0, 1, 1], [], []>} : vector<56x64xbf16>, vector<64x256xbf16>, vector<56x256xf32> -> vector<56x256xf32>
    %c0_138 = arith.constant 0 : index
    %c0_139 = arith.constant 0 : index
    %303 = vector.load %arg14[%c0_138, %c0_139] : memref<1x256xf32, #tpu.memory_space<vmem>>, vector<1x256xf32>
    %304 = vector.broadcast %303 : vector<1x256xf32> to vector<56x256xf32>
    %305 = arith.addf %302, %304 : vector<56x256xf32>
    %cst_140 = arith.constant 0.000000e+00 : f32
    %306 = vector.broadcast %cst_140 : f32 to vector<56x256xf32>
    %307 = arith.maximumf %305, %306 : vector<56x256xf32>
    %308 = arith.truncf %307 : vector<56x256xf32> to vector<56x256xbf16>
    %c0_141 = arith.constant 0 : index
    %c0_142 = arith.constant 0 : index
    %309 = vector.load %arg15[%c0_141, %c0_142] : memref<256x64xbf16, #tpu.memory_space<vmem>>, vector<256x64xbf16>
    %cst_143 = arith.constant dense<0.000000e+00> : vector<56x64xf32>
    %310 = tpu.matmul %308, %309, %cst_143 {dimension_numbers = #tpu.dot_dimension_numbers<[1], [0], [0], [1], [0, 0, 1, 1], [], []>} : vector<56x256xbf16>, vector<256x64xbf16>, vector<56x64xf32> -> vector<56x64xf32>
    %c0_144 = arith.constant 0 : index
    %c0_145 = arith.constant 0 : index
    %311 = vector.load %arg16[%c0_144, %c0_145] : memref<1x64xf32, #tpu.memory_space<vmem>>, vector<1x64xf32>
    %312 = vector.broadcast %311 : vector<1x64xf32> to vector<56x64xf32>
    %313 = arith.addf %310, %312 : vector<56x64xf32>
    %314 = arith.addf %293, %313 : vector<56x64xf32>
    %315 = vector.shape_cast %314 : vector<56x64xf32> to vector<1x56x64xf32>
    %c0_146 = arith.constant 0 : index
    %c0_147 = arith.constant 0 : index
    %c0_148 = arith.constant 0 : index
    %316 = vector.load %arg17[%c0_146, %c0_147, %c0_148] : memref<1x56x64xf32, #tpu.memory_space<vmem>>, vector<1x56x64xf32>
    tpu.vector_store %arg17[%c0_146, %c0_147, %c0_148], %315 {strides = array<i32>} : memref<1x56x64xf32, #tpu.memory_space<vmem>>, vector<1x56x64xf32>,
    return
  }
  func.func @transform_0(%arg0: i32) -> (i32, i32, i32) {
    %c0_i32 = arith.constant 0 : i32
    %c0_i32_0 = arith.constant 0 : i32
    %c0_i32_1 = arith.constant 0 : i32
    return %arg0, %c0_i32, %c0_i32_0 : i32, i32, i32
  }
  func.func @transform_1(%arg0: i32) -> (i32, i32) {
    %c0_i32 = arith.constant 0 : i32
    %c0_i32_0 = arith.constant 0 : i32
    %c0_i32_1 = arith.constant 0 : i32
    return %c0_i32, %c0_i32_0 : i32, i32
  }
  func.func @transform_2(%arg0: i32) -> (i32, i32) {
    %c0_i32 = arith.constant 0 : i32
    %c0_i32_0 = arith.constant 0 : i32
    %c0_i32_1 = arith.constant 0 : i32
    return %c0_i32, %c0_i32_0 : i32, i32
  }
  func.func @transform_3(%arg0: i32) -> (i32, i32) {
    %c0_i32 = arith.constant 0 : i32
    %c0_i32_0 = arith.constant 0 : i32
    %c0_i32_1 = arith.constant 0 : i32
    return %c0_i32, %c0_i32_0 : i32, i32
  }
  func.func @transform_4(%arg0: i32) -> (i32, i32) {
    %c0_i32 = arith.constant 0 : i32
    %c0_i32_0 = arith.constant 0 : i32
    %c0_i32_1 = arith.constant 0 : i32
    return %c0_i32, %c0_i32_0 : i32, i32
  }
  func.func @transform_5(%arg0: i32) -> (i32, i32, i32) {
    %c0_i32 = arith.constant 0 : i32
    %c0_i32_0 = arith.constant 0 : i32
    %c0_i32_1 = arith.constant 0 : i32
    %c0_i32_2 = arith.constant 0 : i32
    return %c0_i32, %c0_i32_0, %c0_i32_1 : i32, i32, i32
  }
  func.func @transform_6(%arg0: i32) -> (i32, i32, i32) {
    %c0_i32 = arith.constant 0 : i32
    %c0_i32_0 = arith.constant 0 : i32
    %c0_i32_1 = arith.constant 0 : i32
    %c0_i32_2 = arith.constant 0 : i32
    return %c0_i32, %c0_i32_0, %c0_i32_1 : i32, i32, i32
  }
  func.func @transform_7(%arg0: i32) -> (i32, i32, i32) {
    %c0_i32 = arith.constant 0 : i32
    %c0_i32_0 = arith.constant 0 : i32
    %c0_i32_1 = arith.constant 0 : i32
    %c0_i32_2 = arith.constant 0 : i32
    return %c0_i32, %c0_i32_0, %c0_i32_1 : i32, i32, i32
  }
  func.func @transform_8(%arg0: i32) -> (i32, i32) {
    %c0_i32 = arith.constant 0 : i32
    %c0_i32_0 = arith.constant 0 : i32
    %c0_i32_1 = arith.constant 0 : i32
    return %c0_i32, %c0_i32_0 : i32, i32
  }
  func.func @transform_9(%arg0: i32) -> (i32, i32) {
    %c0_i32 = arith.constant 0 : i32
    %c0_i32_0 = arith.constant 0 : i32
    %c0_i32_1 = arith.constant 0 : i32
    return %c0_i32, %c0_i32_0 : i32, i32
  }
  func.func @transform_10(%arg0: i32) -> (i32, i32) {
    %c0_i32 = arith.constant 0 : i32
    %c0_i32_0 = arith.constant 0 : i32
    %c0_i32_1 = arith.constant 0 : i32
    return %c0_i32, %c0_i32_0 : i32, i32
  }
  func.func @transform_11(%arg0: i32) -> (i32, i32) {
    %c0_i32 = arith.constant 0 : i32
    %c0_i32_0 = arith.constant 0 : i32
    %c0_i32_1 = arith.constant 0 : i32
    return %c0_i32, %c0_i32_0 : i32, i32
  }
  func.func @transform_12(%arg0: i32) -> (i32, i32) {
    %c0_i32 = arith.constant 0 : i32
    %c0_i32_0 = arith.constant 0 : i32
    %c0_i32_1 = arith.constant 0 : i32
    return %c0_i32, %c0_i32_0 : i32, i32
  }
  func.func @transform_13(%arg0: i32) -> (i32, i32) {
    %c0_i32 = arith.constant 0 : i32
    %c0_i32_0 = arith.constant 0 : i32
    %c0_i32_1 = arith.constant 0 : i32
    return %c0_i32, %c0_i32_0 : i32, i32
  }
  func.func @transform_14(%arg0: i32) -> (i32, i32) {
    %c0_i32 = arith.constant 0 : i32
    %c0_i32_0 = arith.constant 0 : i32
    %c0_i32_1 = arith.constant 0 : i32
    return %c0_i32, %c0_i32_0 : i32, i32
  }
  func.func @transform_15(%arg0: i32) -> (i32, i32) {
    %c0_i32 = arith.constant 0 : i32
    %c0_i32_0 = arith.constant 0 : i32
    %c0_i32_1 = arith.constant 0 : i32
    return %c0_i32, %c0_i32_0 : i32, i32
  }
  func.func @transform_16(%arg0: i32) -> (i32, i32, i32) {
    %c0_i32 = arith.constant 0 : i32
    %c0_i32_0 = arith.constant 0 : i32
    %c0_i32_1 = arith.constant 0 : i32
    return %arg0, %c0_i32, %c0_i32_0 : i32, i32, i32
  }
}

</mosaic_0001>

<llo_original>
// kernel: tpu_custom_call.1
$region0: #{tpu_custom_call.1}
  #allocation0 [shape = 'u32[]', space=smem, size = 0x4, offset = 0x4, fixed_abs, tag = 'smem constant byte address 0x4 - core index']
  #allocation1 [shape = 'u32[144,128]{1,0:T(1,128)}', space=vmem, size = 0x12000, scoped, tag = 'internal scratch']
  #allocation2 [shape = 'bf16[56,1024]{1,0:T(8,128)(2,1)}', space=vmem, size = 0x1c000, scoped, tag = 'scratch operand']
  %s0 = inlined_call_operand.vmem [shape: f32[1,56,64], index: 0, kind: input, shape index: {}]
  %s1 = inlined_call_operand.vmem [shape: f32[1,64], index: 1, kind: input, shape index: {}]
  %s2 = inlined_call_operand.vmem [shape: f32[1,64], index: 2, kind: input, shape index: {}]
  %s3 = inlined_call_operand.vmem [shape: bf16[64,512], index: 3, kind: input, shape index: {}]
  %s4 = inlined_call_operand.vmem [shape: f32[1,512], index: 4, kind: input, shape index: {}]
  %s5 = inlined_call_operand.vmem [shape: bf16[8,64,128], index: 5, kind: input, shape index: {}]
  %s6 = inlined_call_operand.vmem [shape: f32[8,1,128], index: 6, kind: input, shape index: {}]
  %s7 = inlined_call_operand.vmem [shape: bf16[8,56,56], index: 7, kind: input, shape index: {}]
  %s8 = inlined_call_operand.vmem [shape: bf16[1024,64], index: 8, kind: input, shape index: {}]
  %s9 = inlined_call_operand.vmem [shape: f32[1,64], index: 9, kind: input, shape index: {}]
  %s10 = inlined_call_operand.vmem [shape: f32[1,64], index: 10, kind: input, shape index: {}]
  %s11 = inlined_call_operand.vmem [shape: f32[1,64], index: 11, kind: input, shape index: {}]
  %s12 = inlined_call_operand.vmem [shape: bf16[64,256], index: 12, kind: input, shape index: {}]
  %s13 = inlined_call_operand.vmem [shape: f32[1,256], index: 13, kind: input, shape index: {}]
  %s14 = inlined_call_operand.vmem [shape: bf16[256,64], index: 14, kind: input, shape index: {}]
  %s15 = inlined_call_operand.vmem [shape: f32[1,64], index: 15, kind: input, shape index: {}]
  %s16 = inlined_call_operand.hbm [shape: f32[1,56,64], index: 16, kind: output, shape index: {}]
  %s17 = sld [smem:[#allocation0]]
  $region74: #{tpu_custom_call.1} parent=0
    _
  %s19 = ssub.s32 1, %s17
  %s20 = scalar_select 0, %s19, %s17
  $region1: #{tpu_custom_call.1} parent=0
    #allocation3 [shape = 'u8[28672]{0}', space=vmem, size = 0x7000, scoped, tag = 'output window, operand 0, single buffered']
    #allocation4 [shape = 's32[1]{0}', space=sflag, size = 0x4, scoped, tag = 'scoped memory for tpu_custom_call.1']
    %21 = vsyncpa [#allocation4], 0
    // Predicated region
    $region2: #{tpu_custom_call.1} parent=1 // pred_check
      _
    $region3: #{tpu_custom_call.1} parent=1 // pred_check_branch
      %23 = sbr.rel (0) target = $region5
    $region4: #{tpu_custom_call.1} parent=1 // pred_region
      _
    $region5: #{tpu_custom_call.1} parent=1 // pred_fallthru
      _
    // Predicated region
    $region6: #{tpu_custom_call.1} parent=1 // pred_check
      _
    $region7: #{tpu_custom_call.1} parent=1 // pred_check_branch
      %25 = sbr.rel (0) target = $region9
    $region8: #{tpu_custom_call.1} parent=1 // pred_region
      _
    $region9: #{tpu_custom_call.1} parent=1 // pred_fallthru
      _
    // Predicated region
    $region10: #{tpu_custom_call.1} parent=1 // pred_check
      _
    $region11: #{tpu_custom_call.1} parent=1 // pred_check_branch
      %27 = sbr.rel (0) target = $region13
    $region12: #{tpu_custom_call.1} parent=1 // pred_region
      _
    $region13: #{tpu_custom_call.1} parent=1 // pred_fallthru
      _
    // Predicated region
    $region14: #{tpu_custom_call.1} parent=1 // pred_check
      _
    $region15: #{tpu_custom_call.1} parent=1 // pred_check_branch
      %29 = sbr.rel (0) target = $region17
    $region16: #{tpu_custom_call.1} parent=1 // pred_region
      _
    $region17: #{tpu_custom_call.1} parent=1 // pred_fallthru
      _
    // Predicated region
    $region18: #{tpu_custom_call.1} parent=1 // pred_check
      _
    $region19: #{tpu_custom_call.1} parent=1 // pred_check_branch
      %31 = sbr.rel (0) target = $region21
    $region20: #{tpu_custom_call.1} parent=1 // pred_region
      _
    $region21: #{tpu_custom_call.1} parent=1 // pred_fallthru
      _
    // Predicated region
    $region22: #{tpu_custom_call.1} parent=1 // pred_check
      _
    $region23: #{tpu_custom_call.1} parent=1 // pred_check_branch
      %33 = sbr.rel (0) target = $region25
    $region24: #{tpu_custom_call.1} parent=1 // pred_region
      _
    $region25: #{tpu_custom_call.1} parent=1 // pred_fallthru
      _
    // Predicated region
    $region26: #{tpu_custom_call.1} parent=1 // pred_check
      _
    $region27: #{tpu_custom_call.1} parent=1 // pred_check_branch
      %35 = sbr.rel (0) target = $region29
    $region28: #{tpu_custom_call.1} parent=1 // pred_region
      _
    $region29: #{tpu_custom_call.1} parent=1 // pred_fallthru
      _
    // Predicated region
    $region30: #{tpu_custom_call.1} parent=1 // pred_check
      _
    $region31: #{tpu_custom_call.1} parent=1 // pred_check_branch
      %37 = sbr.rel (0) target = $region33
    $region32: #{tpu_custom_call.1} parent=1 // pred_region
      _
    $region33: #{tpu_custom_call.1} parent=1 // pred_fallthru
      _
    // Predicated region
    $region34: #{tpu_custom_call.1} parent=1 // pred_check
      _
    $region35: #{tpu_custom_call.1} parent=1 // pred_check_branch
      %39 = sbr.rel (0) target = $region37
    $region36: #{tpu_custom_call.1} parent=1 // pred_region
      _
    $region37: #{tpu_custom_call.1} parent=1 // pred_fallthru
      _
    // Predicated region
    $region38: #{tpu_custom_call.1} parent=1 // pred_check
      _
    $region39: #{tpu_custom_call.1} parent=1 // pred_check_branch
      %41 = sbr.rel (0) target = $region41
    $region40: #{tpu_custom_call.1} parent=1 // pred_region
      _
    $region41: #{tpu_custom_call.1} parent=1 // pred_fallthru
      _
    // Predicated region
    $region42: #{tpu_custom_call.1} parent=1 // pred_check
      _
    $region43: #{tpu_custom_call.1} parent=1 // pred_check_branch
      %43 = sbr.rel (0) target = $region45
    $region44: #{tpu_custom_call.1} parent=1 // pred_region
      _
    $region45: #{tpu_custom_call.1} parent=1 // pred_fallthru
      _
    // Predicated region
    $region46: #{tpu_custom_call.1} parent=1 // pred_check
      _
    $region47: #{tpu_custom_call.1} parent=1 // pred_check_branch
      %45 = sbr.rel (0) target = $region49
    $region48: #{tpu_custom_call.1} parent=1 // pred_region
      _
    $region49: #{tpu_custom_call.1} parent=1 // pred_fallthru
      _
    // Predicated region
    $region50: #{tpu_custom_call.1} parent=1 // pred_check
      _
    $region51: #{tpu_custom_call.1} parent=1 // pred_check_branch
      %47 = sbr.rel (0) target = $region53
    $region52: #{tpu_custom_call.1} parent=1 // pred_region
      _
    $region53: #{tpu_custom_call.1} parent=1 // pred_fallthru
      _
    // Predicated region
    $region54: #{tpu_custom_call.1} parent=1 // pred_check
      _
    $region55: #{tpu_custom_call.1} parent=1 // pred_check_branch
      %49 = sbr.rel (0) target = $region57
    $region56: #{tpu_custom_call.1} parent=1 // pred_region
      _
    $region57: #{tpu_custom_call.1} parent=1 // pred_fallthru
      _
    // Predicated region
    $region58: #{tpu_custom_call.1} parent=1 // pred_check
      _
    $region59: #{tpu_custom_call.1} parent=1 // pred_check_branch
      %51 = sbr.rel (0) target = $region61
    $region60: #{tpu_custom_call.1} parent=1 // pred_region
      _
    $region61: #{tpu_custom_call.1} parent=1 // pred_fallthru
      _
    // Predicated region
    $region62: #{tpu_custom_call.1} parent=1 // pred_check
      _
    $region63: #{tpu_custom_call.1} parent=1 // pred_check_branch
      %53 = sbr.rel (0) target = $region65
    $region64: #{tpu_custom_call.1} parent=1 // pred_region
      _
    $region65: #{tpu_custom_call.1} parent=1 // pred_fallthru
      _
    %v55 = vld [vmem:[%s0] sm:$0xff]
    %v56 = vld [vmem:[%s0 + $0x8] sm:$0xff]
    %v57 = vld [vmem:[%s0 + $0x10] sm:$0xff]
    %v58 = vld [vmem:[%s0 + $0x18] sm:$0xff]
    %v59 = vld [vmem:[%s0 + $0x20] sm:$0xff]
    %v60 = vld [vmem:[%s0 + $0x28] sm:$0xff]
    %v61 = vld [vmem:[%s0 + $0x30] sm:$0xff]
    %v62 = vld [vmem:[%s1] sm:$0x1]
    %v64 = vlaneseq
    %v65 = vshrl.u32 %v64, 7
    %v66 = vsub.s32 0, %v65
    %v67 = vrot.slane %v62, %v66
    %v69 = vmul.f32 %v55, %v67
    %v70 = vmul.f32 %v56, %v67
    %v71 = vmul.f32 %v57, %v67
    %v72 = vmul.f32 %v58, %v67
    %v73 = vmul.f32 %v59, %v67
    %v74 = vmul.f32 %v60, %v67
    %v75 = vmul.f32 %v61, %v67
    %v76 = vld [vmem:[%s2] sm:$0x1]
    %v78 = vlaneseq
    %v79 = vshrl.u32 %v78, 7
    %v80 = vsub.s32 0, %v79
    %v81 = vrot.slane %v76, %v80
    %v83 = vadd.f32 %v69, %v81
    %v84 = vadd.f32 %v70, %v81
    %v85 = vadd.f32 %v71, %v81
    %v86 = vadd.f32 %v72, %v81
    %v87 = vadd.f32 %v73, %v81
    %v88 = vadd.f32 %v74, %v81
    %v89 = vadd.f32 %v75, %v81
    %v90 = vpack.c.bf16 %v84, %v83
    %v91 = vpack.c.bf16 %v86, %v85
    %v92 = vpack.c.bf16 %v88, %v87
    %v93 = vpack.c.bf16 %v89, %v89
    %v94 = vld [vmem:[%s3] sm:$0xff]
    %v95 = vld [vmem:[%s3 + $0x8] sm:$0xff]
    %v96 = vld [vmem:[%s3 + $0x10] sm:$0xff]
    %v97 = vld [vmem:[%s3 + $0x18] sm:$0xff]
    %v98 = vld [vmem:[%s3 + $0x20] sm:$0xff]
    %v99 = vld [vmem:[%s3 + $0x28] sm:$0xff]
    %v100 = vld [vmem:[%s3 + $0x30] sm:$0xff]
    %v101 = vld [vmem:[%s3 + $0x38] sm:$0xff]
    %v102 = vld [vmem:[%s3 + $0x40] sm:$0xff]
    %v103 = vld [vmem:[%s3 + $0x48] sm:$0xff]
    %v104 = vld [vmem:[%s3 + $0x50] sm:$0xff]
    %v105 = vld [vmem:[%s3 + $0x58] sm:$0xff]
    %v106 = vld [vmem:[%s3 + $0x60] sm:$0xff]
    %v107 = vld [vmem:[%s3 + $0x68] sm:$0xff]
    %v108 = vld [vmem:[%s3 + $0x70] sm:$0xff]
    %v109 = vld [vmem:[%s3 + $0x78] sm:$0xff]
    %v110 = vld [vmem:[%s4] sm:$0xf]
    %v112 = vlaneseq
    %v113 = vshrl.u32 %v112, 7
    %v114 = vsub.s32 0, %v113
    %v115 = vrot.slane %v110, %v114
    %v116 = vlaneseq
    %v117 = vshrl.u32 %v116, 7
    %v118 = vsub.s32 1, %v117
    %v119 = vrot.slane %v110, %v118
    %v120 = vlaneseq
    %v121 = vshrl.u32 %v120, 7
    %v122 = vsub.s32 2, %v121
    %v123 = vrot.slane %v110, %v122
    %v124 = vlaneseq
    %v125 = vshrl.u32 %v124, 7
    %v126 = vsub.s32 3, %v125
    %v127 = vrot.slane %v110, %v126
    %v148 = vunpack.c.l.b16 %v94
    %v149 = vunpack.c.h.b16 %v94
    %v150 = vunpack.c.l.b16 %v95
    %v151 = vunpack.c.h.b16 %v95
    %v152 = vunpack.c.l.b16 %v96
    %v153 = vunpack.c.h.b16 %v96
    %v154 = vunpack.c.l.b16 %v97
    %v155 = vunpack.c.h.b16 %v97
    %v156 = vunpack.c.l.b16 %v98
    %v157 = vunpack.c.h.b16 %v98
    %v158 = vunpack.c.l.b16 %v99
    %v159 = vunpack.c.h.b16 %v99
    %v160 = vunpack.c.l.b16 %v100
    %v161 = vunpack.c.h.b16 %v100
    %v162 = vunpack.c.l.b16 %v101
    %v163 = vunpack.c.h.b16 %v101
    %v164 = vunpack.c.l.b16 %v102
    %v165 = vunpack.c.h.b16 %v102
    %v166 = vunpack.c.l.b16 %v103
    %v167 = vunpack.c.h.b16 %v103
    %v168 = vunpack.c.l.b16 %v104
    %v169 = vunpack.c.h.b16 %v104
    %v170 = vunpack.c.l.b16 %v105
    %v171 = vunpack.c.h.b16 %v105
    %v172 = vunpack.c.l.b16 %v106
    %v173 = vunpack.c.h.b16 %v106
    %v174 = vunpack.c.l.b16 %v107
    %v175 = vunpack.c.h.b16 %v107
    %v176 = vunpack.c.l.b16 %v108
    %v177 = vunpack.c.h.b16 %v108
    %v178 = vunpack.c.l.b16 %v109
    %v179 = vunpack.c.h.b16 %v109
    %v180 = vpack.c.b16 %v152, %v148
    %v181 = vpack.c.b16 %v153, %v149
    %v182 = vpack.c.b16 %v154, %v150
    %v183 = vpack.c.b16 %v155, %v151
    %v184 = vpack.c.b16 %v160, %v156
    %v185 = vpack.c.b16 %v161, %v157
    %v186 = vpack.c.b16 %v162, %v158
    %v187 = vpack.c.b16 %v163, %v159
    %v188 = vpack.c.b16 %v168, %v164
    %v189 = vpack.c.b16 %v169, %v165
    %v190 = vpack.c.b16 %v170, %v166
    %v191 = vpack.c.b16 %v171, %v167
    %v192 = vpack.c.b16 %v176, %v172
    %v193 = vpack.c.b16 %v177, %v173
    %v194 = vpack.c.b16 %v178, %v174
    %v195 = vpack.c.b16 %v179, %v175
    %vm212 = vcmask 523264
    %v214 = vsel %vm212, %v90, 0
    %v217 = vsel %vm212, %v91, 0
    %v220 = vsel %vm212, %v92, 0
    %v223 = vsel %vm212, %v93, 0
    %225 = vmatprep.subr.bf16.mxu0 0
    %226 = vmatpush1.bf16.msra.mxu0 0
    %227 = vmatprep.subr.bf16.mxu0 0
    %228 = vmatpush1.bf16.msra.mxu0 0
    %229 = vmatprep.subr.bf16.mxu0 0
    %230 = vmatpush1.bf16.msra.mxu0 0
    %231 = vmatprep.subr.bf16.mxu0 0
    %232 = vmatpush1.bf16.msra.mxu0 0
    %233 = vmatprep.subr.bf16.mxu0 %v193
    %234 = vmatpush1.bf16.msra.mxu0 %v192
    %235 = vmatprep.subr.bf16.mxu0 %v189
    %236 = vmatpush1.bf16.msra.mxu0 %v188
    %237 = vmatprep.subr.bf16.mxu0 %v185
    %238 = vmatpush1.bf16.msra.mxu0 %v184
    %239 = vmatprep.subr.bf16.mxu0 %v181
    %240 = vmatpush1.bf16.msra.mxu0 %v180
    %241 = vmatprep.subr.bf16.mxu0 0
    %242 = vmatpush2.bf16.msra.mxu0 0
    %243 = vmatprep.subr.bf16.mxu0 0
    %244 = vmatpush2.bf16.msra.mxu0 0
    %245 = vmatprep.subr.bf16.mxu0 0
    %246 = vmatpush2.bf16.msra.mxu0 0
    %247 = vmatprep.subr.bf16.mxu0 0
    %248 = vmatpush2.bf16.msra.mxu0 0
    %249 = vmatprep.subr.bf16.mxu0 0
    %250 = vmatpush2.bf16.msra.mxu0 0
    %251 = vmatprep.subr.bf16.mxu0 0
    %252 = vmatpush2.bf16.msra.mxu0 0
    %253 = vmatprep.subr.bf16.mxu0 0
    %254 = vmatpush2.bf16.msra.mxu0 0
    %255 = vmatprep.subr.bf16.mxu0 0
    %256 = vmatpush2.bf16.msra.mxu0 0
    %257 = vmatprep.mubr.bf16.mxu0 0
    %258 = vmatmul.mubr.bf16.gmra.mxu0 %v214
    %v259 = vpop.f32.mrf.mxu0
    %v260 = vadd.f32 %v115, %v259
    %v261 = vpop.f32.mrf.mxu0
    %v262 = vadd.f32 %v119, %v261
    %v263 = vpop.f32.mrf.mxu0
    %v264 = vadd.f32 %v115, %v263
    %v265 = vpop.f32.mrf.mxu0
    %v266 = vadd.f32 %v119, %v265
    %267 = vmatprep.mubr.bf16.mxu0 0
    %268 = vmatmul.mubr.bf16.gmra.mxu0 %v217
    %v269 = vpop.f32.mrf.mxu0
    %v270 = vadd.f32 %v115, %v269
    %v271 = vpop.f32.mrf.mxu0
    %v272 = vadd.f32 %v119, %v271
    %v273 = vpop.f32.mrf.mxu0
    %v274 = vadd.f32 %v115, %v273
    %v275 = vpop.f32.mrf.mxu0
    %v276 = vadd.f32 %v119, %v275
    %277 = vmatprep.mubr.bf16.mxu0 0
    %278 = vmatmul.mubr.bf16.gmra.mxu0 %v220
    %v279 = vpop.f32.mrf.mxu0
    %v280 = vadd.f32 %v115, %v279
    %v281 = vpop.f32.mrf.mxu0
    %v282 = vadd.f32 %v119, %v281
    %v283 = vpop.f32.mrf.mxu0
    %v284 = vadd.f32 %v115, %v283
    %v285 = vpop.f32.mrf.mxu0
    %v286 = vadd.f32 %v119, %v285
    %287 = vmatprep.mubr.bf16.mxu0 0
    %288 = vmatmul.mubr.bf16.gmra.mxu0 %v223
    %v289 = vpop.f32.mrf.mxu0
    %v290 = vadd.f32 %v115, %v289
    %v291 = vpop.f32.mrf.mxu0
    %v292 = vadd.f32 %v119, %v291
    %v293 = vpop.f32.mrf.mxu0
    %v294 = vpop.f32.mrf.mxu0
    %295 = vdwg.mxu0
    %296 = vmatprep.subr.bf16.mxu0 0
    %297 = vmatpush1.bf16.msra.mxu0 0
    %298 = vmatprep.subr.bf16.mxu0 0
    %299 = vmatpush1.bf16.msra.mxu0 0
    %300 = vmatprep.subr.bf16.mxu0 0
    %301 = vmatpush1.bf16.msra.mxu0 0
    %302 = vmatprep.subr.bf16.mxu0 0
    %303 = vmatpush1.bf16.msra.mxu0 0
    %304 = vmatprep.subr.bf16.mxu0 %v195
    %305 = vmatpush1.bf16.msra.mxu0 %v194
    %306 = vmatprep.subr.bf16.mxu0 %v191
    %307 = vmatpush1.bf16.msra.mxu0 %v190
    %308 = vmatprep.subr.bf16.mxu0 %v187
    %309 = vmatpush1.bf16.msra.mxu0 %v186
    %310 = vmatprep.subr.bf16.mxu0 %v183
    %311 = vmatpush1.bf16.msra.mxu0 %v182
    %312 = vmatprep.subr.bf16.mxu0 0
    %313 = vmatpush2.bf16.msra.mxu0 0
    %314 = vmatprep.subr.bf16.mxu0 0
    %315 = vmatpush2.bf16.msra.mxu0 0
    %316 = vmatprep.subr.bf16.mxu0 0
    %317 = vmatpush2.bf16.msra.mxu0 0
    %318 = vmatprep.subr.bf16.mxu0 0
    %319 = vmatpush2.bf16.msra.mxu0 0
    %320 = vmatprep.subr.bf16.mxu0 0
    %321 = vmatpush2.bf16.msra.mxu0 0
    %322 = vmatprep.subr.bf16.mxu0 0
    %323 = vmatpush2.bf16.msra.mxu0 0
    %324 = vmatprep.subr.bf16.mxu0 0
    %325 = vmatpush2.bf16.msra.mxu0 0
    %326 = vmatprep.subr.bf16.mxu0 0
    %327 = vmatpush2.bf16.msra.mxu0 0
    %328 = vmatprep.mubr.bf16.mxu0 0
    %329 = vmatmul.mubr.bf16.gmra.mxu0 %v214
    %v330 = vpop.f32.mrf.mxu0
    %v331 = vadd.f32 %v123, %v330
    %v332 = vpop.f32.mrf.mxu0
    %v333 = vadd.f32 %v127, %v332
    %v334 = vpop.f32.mrf.mxu0
    %v335 = vadd.f32 %v123, %v334
    %v336 = vpop.f32.mrf.mxu0
    %v337 = vadd.f32 %v127, %v336
    %338 = vmatprep.mubr.bf16.mxu0 0
    %339 = vmatmul.mubr.bf16.gmra.mxu0 %v217
    %v340 = vpop.f32.mrf.mxu0
    %v341 = vadd.f32 %v123, %v340
    %v342 = vpop.f32.mrf.mxu0
    %v343 = vadd.f32 %v127, %v342
    %v344 = vpop.f32.mrf.mxu0
    %v345 = vadd.f32 %v123, %v344
    %v346 = vpop.f32.mrf.mxu0
    %v347 = vadd.f32 %v127, %v346
    %348 = vmatprep.mubr.bf16.mxu0 0
    %349 = vmatmul.mubr.bf16.gmra.mxu0 %v220
    %v350 = vpop.f32.mrf.mxu0
    %v351 = vadd.f32 %v123, %v350
    %v352 = vpop.f32.mrf.mxu0
    %v353 = vadd.f32 %v127, %v352
    %v354 = vpop.f32.mrf.mxu0
    %v355 = vadd.f32 %v123, %v354
    %v356 = vpop.f32.mrf.mxu0
    %v357 = vadd.f32 %v127, %v356
    %358 = vmatprep.mubr.bf16.mxu0 0
    %359 = vmatmul.mubr.bf16.gmra.mxu0 %v223
    %v360 = vpop.f32.mrf.mxu0
    %v361 = vadd.f32 %v123, %v360
    %v362 = vpop.f32.mrf.mxu0
    %v363 = vadd.f32 %v127, %v362
    %v364 = vpop.f32.mrf.mxu0
    %v365 = vpop.f32.mrf.mxu0
    %366 = vdwg.mxu0
    %v367 = vpack.c.bf16 %v264, %v260
    %v368 = vpack.c.bf16 %v266, %v262
    %v369 = vpack.c.bf16 %v335, %v331
    %v370 = vpack.c.bf16 %v337, %v333
    %v371 = vpack.c.bf16 %v274, %v270
    %v372 = vpack.c.bf16 %v276, %v272
    %v373 = vpack.c.bf16 %v345, %v341
    %v374 = vpack.c.bf16 %v347, %v343
    %v375 = vpack.c.bf16 %v284, %v280
    %v376 = vpack.c.bf16 %v286, %v282
    %v377 = vpack.c.bf16 %v355, %v351
    %v378 = vpack.c.bf16 %v357, %v353
    %v379 = vpack.c.bf16 %v290, %v290
    %v380 = vpack.c.bf16 %v292, %v292
    %v381 = vpack.c.bf16 %v361, %v361
    %v382 = vpack.c.bf16 %v363, %v363
    %v383 = vld [vmem:[%s5] sm:$0xf]
    %v384 = vld [vmem:[%s5 + $0x4] sm:$0xf]
    %v385 = vld [vmem:[%s5 + $0x8] sm:$0xf]
    %v386 = vld [vmem:[%s5 + $0xc] sm:$0xf]
    %v387 = vld [vmem:[%s5 + $0x10] sm:$0xf]
    %v388 = vld [vmem:[%s5 + $0x14] sm:$0xf]
    %v389 = vld [vmem:[%s5 + $0x18] sm:$0xf]
    %v390 = vld [vmem:[%s5 + $0x1c] sm:$0xf]
    %v391 = vld [vmem:[%s6] sm:$0x1]
    %v393 = vlaneseq
    %v394 = vshrl.u32 %v393, 7
    %v395 = vsub.s32 0, %v394
    %v396 = vrot.slane %v391, %v395
    %v406 = vunpack.c.l.b16 %v383
    %v407 = vunpack.c.l.b16 %v384
    %v408 = vunpack.c.l.b16 %v385
    %v409 = vunpack.c.l.b16 %v386
    %v410 = vunpack.c.l.b16 %v387
    %v411 = vunpack.c.l.b16 %v388
    %v412 = vunpack.c.l.b16 %v389
    %v413 = vunpack.c.l.b16 %v390
    %v414 = vpack.c.b16 %v407, %v406
    %v415 = vpack.c.b16 %v409, %v408
    %v416 = vpack.c.b16 %v411, %v410
    %v417 = vpack.c.b16 %v413, %v412
    %422 = vmatprep.subr.bf16.mxu0 0
    %423 = vmatpush1.bf16.msra.mxu0 0
    %424 = vmatprep.subr.bf16.mxu0 0
    %425 = vmatpush1.bf16.msra.mxu0 0
    %426 = vmatprep.subr.bf16.mxu0 0
    %427 = vmatpush1.bf16.msra.mxu0 0
    %428 = vmatprep.subr.bf16.mxu0 0
    %429 = vmatpush1.bf16.msra.mxu0 0
    %430 = vmatprep.subr.bf16.mxu0 0
    %431 = vmatpush1.bf16.msra.mxu0 %v417
    %432 = vmatprep.subr.bf16.mxu0 0
    %433 = vmatpush1.bf16.msra.mxu0 %v416
    %434 = vmatprep.subr.bf16.mxu0 0
    %435 = vmatpush1.bf16.msra.mxu0 %v415
    %436 = vmatprep.subr.bf16.mxu0 0
    %437 = vmatpush1.bf16.msra.mxu0 %v414
    %438 = vmatprep.subr.bf16.mxu0 0
    %439 = vmatpush2.bf16.msra.mxu0 0
    %440 = vmatprep.subr.bf16.mxu0 0
    %441 = vmatpush2.bf16.msra.mxu0 0
    %442 = vmatprep.subr.bf16.mxu0 0
    %443 = vmatpush2.bf16.msra.mxu0 0
    %444 = vmatprep.subr.bf16.mxu0 0
    %445 = vmatpush2.bf16.msra.mxu0 0
    %446 = vmatprep.subr.bf16.mxu0 0
    %447 = vmatpush2.bf16.msra.mxu0 0
    %448 = vmatprep.subr.bf16.mxu0 0
    %449 = vmatpush2.bf16.msra.mxu0 0
    %450 = vmatprep.subr.bf16.mxu0 0
    %451 = vmatpush2.bf16.msra.mxu0 0
    %452 = vmatprep.subr.bf16.mxu0 0
    %453 = vmatpush2.bf16.msra.mxu0 0
    %454 = vmatprep.mubr.bf16.mxu0 0
    %455 = vmatmul.mubr.bf16.gmra.mxu0 %v214
    %v456 = vpop.f32.mrf.mxu0
    %v457 = vadd.f32 %v396, %v456
    %v458 = vpop.f32.mrf.mxu0
    %v459 = vpop.f32.mrf.mxu0
    %v460 = vadd.f32 %v396, %v459
    %v461 = vpop.f32.mrf.mxu0
    %462 = vmatprep.mubr.bf16.mxu0 0
    %463 = vmatmul.mubr.bf16.gmra.mxu0 %v217
    %v464 = vpop.f32.mrf.mxu0
    %v465 = vadd.f32 %v396, %v464
    %v466 = vpop.f32.mrf.mxu0
    %v467 = vpop.f32.mrf.mxu0
    %v468 = vadd.f32 %v396, %v467
    %v469 = vpop.f32.mrf.mxu0
    %470 = vmatprep.mubr.bf16.mxu0 0
    %471 = vmatmul.mubr.bf16.gmra.mxu0 %v220
    %v472 = vpop.f32.mrf.mxu0
    %v473 = vadd.f32 %v396, %v472
    %v474 = vpop.f32.mrf.mxu0
    %v475 = vpop.f32.mrf.mxu0
    %v476 = vadd.f32 %v396, %v475
    %v477 = vpop.f32.mrf.mxu0
    %478 = vmatprep.mubr.bf16.mxu0 0
    %479 = vmatmul.mubr.bf16.gmra.mxu0 %v223
    %v480 = vpop.f32.mrf.mxu0
    %v481 = vadd.f32 %v396, %v480
    %v482 = vpop.f32.mrf.mxu0
    %v483 = vpop.f32.mrf.mxu0
    %v484 = vpop.f32.mrf.mxu0
    %485 = vdwg.mxu0
    %v486 = vpack.c.bf16 %v460, %v457
    %v487 = vpack.c.bf16 %v468, %v465
    %v488 = vpack.c.bf16 %v476, %v473
    %v489 = vpack.c.bf16 %v481, %v481
    %v490 = vld [vmem:[%s7] sm:$0xf]
    %v491 = vld [vmem:[%s7 + $0x4] sm:$0xf]
    %v492 = vld [vmem:[%s7 + $0x8] sm:$0xf]
    %v493 = vld [vmem:[%s7 + $0xc] sm:$0xf]
    %v494 = vld [vmem:[%s7 + $0x10] sm:$0xf]
    %v495 = vld [vmem:[%s7 + $0x14] sm:$0xf]
    %v496 = vld [vmem:[%s7 + $0x18] sm:$0xf]
    %v497 = vunpack.c.l.bf16 %v490
    %v498 = vunpack.c.l.bf16 %v491
    %v499 = vunpack.c.l.bf16 %v492
    %v500 = vunpack.c.l.bf16 %v493
    %v501 = vunpack.c.l.bf16 %v494
    %v502 = vunpack.c.l.bf16 %v495
    %v503 = vunpack.c.l.bf16 %v496
    %vm504 = vcmask 261120
    %v506 = vsel %vm504, %v367, 0
    %v509 = vsel %vm504, %v371, 0
    %v512 = vsel %vm504, %v375, 0
    %v515 = vsel %vm504, %v379, 0
    %v518 = vsel %vm504, %v369, 0
    %v521 = vsel %vm504, %v373, 0
    %v524 = vsel %vm504, %v377, 0
    %v527 = vsel %vm504, %v381, 0
    %529 = vmatprep.subr.bf16.mxu0 0
    %530 = vmatpush1.bf16.xpose.msra.mxu0 0
    %531 = vmatprep.subr.bf16.mxu0 0
    %532 = vmatpush1.bf16.xpose.msra.mxu0 0
    %533 = vmatprep.subr.bf16.mxu0 0
    %534 = vmatpush1.bf16.xpose.msra.mxu0 0
    %535 = vmatprep.subr.bf16.mxu0 0
    %536 = vmatpush1.bf16.xpose.msra.mxu0 0
    %537 = vmatprep.subr.bf16.mxu0 0
    %538 = vmatpush1.bf16.xpose.msra.mxu0 %v527
    %539 = vmatprep.subr.bf16.mxu0 0
    %540 = vmatpush1.bf16.xpose.msra.mxu0 %v524
    %541 = vmatprep.subr.bf16.mxu0 0
    %542 = vmatpush1.bf16.xpose.msra.mxu0 %v521
    %543 = vmatprep.subr.bf16.mxu0 0
    %544 = vmatpush1.bf16.xpose.msra.mxu0 %v518
    %545 = vmatprep.subr.bf16.mxu0 0
    %546 = vmatpush2.bf16.xpose.msra.mxu0 0
    %547 = vmatprep.subr.bf16.mxu0 0
    %548 = vmatpush2.bf16.xpose.msra.mxu0 0
    %549 = vmatprep.subr.bf16.mxu0 0
    %550 = vmatpush2.bf16.xpose.msra.mxu0 0
    %551 = vmatprep.subr.bf16.mxu0 0
    %552 = vmatpush2.bf16.xpose.msra.mxu0 0
    %553 = vmatprep.subr.bf16.mxu0 0
    %554 = vmatpush2.bf16.xpose.msra.mxu0 0
    %555 = vmatprep.subr.bf16.mxu0 0
    %556 = vmatpush2.bf16.xpose.msra.mxu0 0
    %557 = vmatprep.subr.bf16.mxu0 0
    %558 = vmatpush2.bf16.xpose.msra.mxu0 0
    %559 = vmatprep.subr.bf16.mxu0 0
    %560 = vmatpush2.bf16.xpose.msra.mxu0 0
    %561 = vmatprep.mubr.bf16.mxu0 0
    %562 = vmatmul.mubr.bf16.gmra.mxu0 %v506
    %v563 = vpop.f32.mrf.mxu0
    %v564 = vadd.f32 %v497, %v563
    %v565 = vpop.f32.mrf.mxu0
    %v566 = vpop.f32.mrf.mxu0
    %v567 = vadd.f32 %v498, %v566
    %v568 = vpop.f32.mrf.mxu0
    %569 = vmatprep.mubr.bf16.mxu0 0
    %570 = vmatmul.mubr.bf16.gmra.mxu0 %v509
    %v571 = vpop.f32.mrf.mxu0
    %v572 = vadd.f32 %v499, %v571
    %v573 = vpop.f32.mrf.mxu0
    %v574 = vpop.f32.mrf.mxu0
    %v575 = vadd.f32 %v500, %v574
    %v576 = vpop.f32.mrf.mxu0
    %577 = vmatprep.mubr.bf16.mxu0 0
    %578 = vmatmul.mubr.bf16.gmra.mxu0 %v512
    %v579 = vpop.f32.mrf.mxu0
    %v580 = vadd.f32 %v501, %v579
    %v581 = vpop.f32.mrf.mxu0
    %v582 = vpop.f32.mrf.mxu0
    %v583 = vadd.f32 %v502, %v582
    %v584 = vpop.f32.mrf.mxu0
    %585 = vmatprep.mubr.bf16.mxu0 0
    %586 = vmatmul.mubr.bf16.gmra.mxu0 %v515
    %v587 = vpop.f32.mrf.mxu0
    %v588 = vadd.f32 %v503, %v587
    %v589 = vpop.f32.mrf.mxu0
    %v590 = vpop.f32.mrf.mxu0
    %v591 = vpop.f32.mrf.mxu0
    %592 = vdwg.mxu0
    %vm593 = vcmask 457728
    %v594 = vsel %vm593, %v564, -inf
    %595 = vmax.xlane.f32.xlu0 %v594
    %v596 = vpop.xlane.xlu0 %595
    %v597 = vsel %vm593, %v567, -inf
    %598 = vmax.xlane.f32.xlu0 %v597
    %v599 = vpop.xlane.xlu0 %598
    %v600 = vsel %vm593, %v572, -inf
    %601 = vmax.xlane.f32.xlu0 %v600
    %v602 = vpop.xlane.xlu0 %601
    %v603 = vsel %vm593, %v575, -inf
    %604 = vmax.xlane.f32.xlu0 %v603
    %v605 = vpop.xlane.xlu0 %604
    %v606 = vsel %vm593, %v580, -inf
    %607 = vmax.xlane.f32.xlu0 %v606
    %v608 = vpop.xlane.xlu0 %607
    %v609 = vsel %vm593, %v583, -inf
    %610 = vmax.xlane.f32.xlu0 %v609
    %v611 = vpop.xlane.xlu0 %610
    %v612 = vsel %vm593, %v588, -inf
    %613 = vmax.xlane.f32.xlu0 %v612
    %v614 = vpop.xlane.xlu0 %613
    %v615 = vsub.f32 %v564, %v596
    %v616 = vsub.f32 %v567, %v599
    %v617 = vsub.f32 %v572, %v602
    %v618 = vsub.f32 %v575, %v605
    %v619 = vsub.f32 %v580, %v608
    %v620 = vsub.f32 %v583, %v611
    %v621 = vsub.f32 %v588, %v614
    %v622 = vmul.f32 %v615, 1.442695
    %v623 = vpow.pop %v622
    %v624 = vmul.f32 %v616, 1.442695
    %v625 = vpow.pop %v624
    %v626 = vmul.f32 %v617, 1.442695
    %v627 = vpow.pop %v626
    %v628 = vmul.f32 %v618, 1.442695
    %v629 = vpow.pop %v628
    %v630 = vmul.f32 %v619, 1.442695
    %v631 = vpow.pop %v630
    %v632 = vmul.f32 %v620, 1.442695
    %v633 = vpow.pop %v632
    %v634 = vmul.f32 %v621, 1.442695
    %v635 = vpow.pop %v634
    %v636 = vsel %vm593, %v623, 0.0
    %637 = vadd.xlane.f32.xlu0 %v636
    %v638 = vpop.xlane.xlu0 %637
    %v639 = vsel %vm593, %v625, 0.0
    %640 = vadd.xlane.f32.xlu0 %v639
    %v641 = vpop.xlane.xlu0 %640
    %v642 = vsel %vm593, %v627, 0.0
    %643 = vadd.xlane.f32.xlu0 %v642
    %v644 = vpop.xlane.xlu0 %643
    %v645 = vsel %vm593, %v629, 0.0
    %646 = vadd.xlane.f32.xlu0 %v645
    %v647 = vpop.xlane.xlu0 %646
    %v648 = vsel %vm593, %v631, 0.0
    %649 = vadd.xlane.f32.xlu0 %v648
    %v650 = vpop.xlane.xlu0 %649
    %v651 = vsel %vm593, %v633, 0.0
    %652 = vadd.xlane.f32.xlu0 %v651
    %v653 = vpop.xlane.xlu0 %652
    %v654 = vsel %vm593, %v635, 0.0
    %655 = vadd.xlane.f32.xlu0 %v654
    %v656 = vpop.xlane.xlu0 %655
    %v657 = vrcp.pop %v638
    %v658 = vrcp.pop %v641
    %v659 = vrcp.pop %v644
    %v660 = vrcp.pop %v647
    %v661 = vrcp.pop %v650
    %v662 = vrcp.pop %v653
    %v663 = vrcp.pop %v656
    %v664 = vmul.f32 %v623, %v657
    %v665 = vmul.f32 %v625, %v658
    %v666 = vmul.f32 %v627, %v659
    %v667 = vmul.f32 %v629, %v660
    %v668 = vmul.f32 %v631, %v661
    %v669 = vmul.f32 %v633, %v662
    %v670 = vmul.f32 %v635, %v663
    %v671 = vpack.c.bf16 %v665, %v664
    %v672 = vpack.c.bf16 %v667, %v666
    %v673 = vpack.c.bf16 %v669, %v668
    %v674 = vpack.c.bf16 %v670, %v670
    %v676 = vsel %vm593, %v671, 0
    %v679 = vsel %vm593, %v672, 0
    %v682 = vsel %vm593, %v673, 0
    %v685 = vsel %vm593, %v674, 0
    %vm687 = vcmask 1043456
    %v689 = vsel %vm687, %v489, 0
    %691 = vmatprep.subr.bf16.mxu0 0
    %692 = vmatpush1.bf16.msra.mxu0 0
    %693 = vmatprep.subr.bf16.mxu0 0
    %694 = vmatpush1.bf16.msra.mxu0 0
    %695 = vmatprep.subr.bf16.mxu0 0
    %696 = vmatpush1.bf16.msra.mxu0 0
    %697 = vmatprep.subr.bf16.mxu0 0
    %698 = vmatpush1.bf16.msra.mxu0 0
    %699 = vmatprep.subr.bf16.mxu0 0
    %700 = vmatpush1.bf16.msra.mxu0 %v689
    %701 = vmatprep.subr.bf16.mxu0 0
    %702 = vmatpush1.bf16.msra.mxu0 %v488
    %703 = vmatprep.subr.bf16.mxu0 0
    %704 = vmatpush1.bf16.msra.mxu0 %v487
    %705 = vmatprep.subr.bf16.mxu0 0
    %706 = vmatpush1.bf16.msra.mxu0 %v486
    %707 = vmatprep.subr.bf16.mxu0 0
    %708 = vmatpush2.bf16.msra.mxu0 0
    %709 = vmatprep.subr.bf16.mxu0 0
    %710 = vmatpush2.bf16.msra.mxu0 0
    %711 = vmatprep.subr.bf16.mxu0 0
    %712 = vmatpush2.bf16.msra.mxu0 0
    %713 = vmatprep.subr.bf16.mxu0 0
    %714 = vmatpush2.bf16.msra.mxu0 0
    %715 = vmatprep.subr.bf16.mxu0 0
    %716 = vmatpush2.bf16.msra.mxu0 0
    %717 = vmatprep.subr.bf16.mxu0 0
    %718 = vmatpush2.bf16.msra.mxu0 0
    %719 = vmatprep.subr.bf16.mxu0 0
    %720 = vmatpush2.bf16.msra.mxu0 0
    %721 = vmatprep.subr.bf16.mxu0 0
    %722 = vmatpush2.bf16.msra.mxu0 0
    %723 = vmatprep.mubr.bf16.mxu0 0
    %724 = vmatmul.mubr.bf16.gmra.mxu0 %v676
    %v725 = vpop.f32.mrf.mxu0
    %v726 = vadd.f32 0.0, %v725
    %v727 = vpop.f32.mrf.mxu0
    %v728 = vpop.f32.mrf.mxu0
    %v729 = vadd.f32 0.0, %v728
    %v730 = vpop.f32.mrf.mxu0
    %731 = vmatprep.mubr.bf16.mxu0 0
    %732 = vmatmul.mubr.bf16.gmra.mxu0 %v679
    %v733 = vpop.f32.mrf.mxu0
    %v734 = vadd.f32 0.0, %v733
    %v735 = vpop.f32.mrf.mxu0
    %v736 = vpop.f32.mrf.mxu0
    %v737 = vadd.f32 0.0, %v736
    %v738 = vpop.f32.mrf.mxu0
    %739 = vmatprep.mubr.bf16.mxu0 0
    %740 = vmatmul.mubr.bf16.gmra.mxu0 %v682
    %v741 = vpop.f32.mrf.mxu0
    %v742 = vadd.f32 0.0, %v741
    %v743 = vpop.f32.mrf.mxu0
    %v744 = vpop.f32.mrf.mxu0
    %v745 = vadd.f32 0.0, %v744
    %v746 = vpop.f32.mrf.mxu0
    %747 = vmatprep.mubr.bf16.mxu0 0
    %748 = vmatmul.mubr.bf16.gmra.mxu0 %v685
    %v749 = vpop.f32.mrf.mxu0
    %v750 = vadd.f32 0.0, %v749
    %v751 = vpop.f32.mrf.mxu0
    %v752 = vpop.f32.mrf.mxu0
    %v753 = vpop.f32.mrf.mxu0
    %754 = vdwg.mxu0
    %v755 = vpack.c.bf16 %v729, %v726
    %v756 = vpack.c.bf16 %v737, %v734
    %v757 = vpack.c.bf16 %v745, %v742
    %v758 = vpack.c.bf16 %v750, %v750
    %v763 = vunpack.c.l.b16 %v755
    %v764 = vunpack.c.h.b16 %v755
    %v765 = vunpack.c.l.b16 %v756
    %v766 = vunpack.c.h.b16 %v756
    %v767 = vunpack.c.l.b16 %v757
    %v768 = vunpack.c.h.b16 %v757
    %v769 = vunpack.c.l.b16 %v758
    %v770 = vpack.c.b16 %v763, %v763
    %v771 = vpack.c.b16 %v764, %v764
    %v772 = vpack.c.b16 %v765, %v765
    %v773 = vpack.c.b16 %v766, %v766
    %v774 = vpack.c.b16 %v767, %v767
    %v775 = vpack.c.b16 %v768, %v768
    %v776 = vpack.c.b16 %v769, %v769
    %784 = vst [vmem:[#allocation2] sm:$0xf] %v770
    %785 = vst [vmem:[#allocation2 + $0x20] sm:$0xf] %v771
    %786 = vst [vmem:[#allocation2 + $0x40] sm:$0xf] %v772
    %787 = vst [vmem:[#allocation2 + $0x60] sm:$0xf] %v773
    %788 = vst [vmem:[#allocation2 + $0x80] sm:$0xf] %v774
    %789 = vst [vmem:[#allocation2 + $0xa0] sm:$0xf] %v775
    %790 = vst [vmem:[#allocation2 + $0xc0] sm:$0xf] %v776
    %s791 = scalar_lea.vmem %s5, 32
    %v792 = vld [vmem:[%s791] sm:$0xf]
    %v793 = vld [vmem:[%s791 + $0x4] sm:$0xf]
    %v794 = vld [vmem:[%s791 + $0x8] sm:$0xf]
    %v795 = vld [vmem:[%s791 + $0xc] sm:$0xf]
    %v796 = vld [vmem:[%s791 + $0x10] sm:$0xf]
    %v797 = vld [vmem:[%s791 + $0x14] sm:$0xf]
    %v798 = vld [vmem:[%s791 + $0x18] sm:$0xf]
    %v799 = vld [vmem:[%s791 + $0x1c] sm:$0xf]
    %s800 = scalar_lea.vmem %s6, 1
    %v801 = vld [vmem:[%s800] sm:$0x1]
    %v803 = vlaneseq
    %v804 = vshrl.u32 %v803, 7
    %v805 = vsub.s32 0, %v804
    %v806 = vrot.slane %v801, %v805
    %v816 = vunpack.c.l.b16 %v792
    %v817 = vunpack.c.l.b16 %v793
    %v818 = vunpack.c.l.b16 %v794
    %v819 = vunpack.c.l.b16 %v795
    %v820 = vunpack.c.l.b16 %v796
    %v821 = vunpack.c.l.b16 %v797
    %v822 = vunpack.c.l.b16 %v798
    %v823 = vunpack.c.l.b16 %v799
    %v824 = vpack.c.b16 %v817, %v816
    %v825 = vpack.c.b16 %v819, %v818
    %v826 = vpack.c.b16 %v821, %v820
    %v827 = vpack.c.b16 %v823, %v822
    %832 = vmatprep.subr.bf16.mxu0 0
    %833 = vmatpush1.bf16.msra.mxu0 0
    %834 = vmatprep.subr.bf16.mxu0 0
    %835 = vmatpush1.bf16.msra.mxu0 0
    %836 = vmatprep.subr.bf16.mxu0 0
    %837 = vmatpush1.bf16.msra.mxu0 0
    %838 = vmatprep.subr.bf16.mxu0 0
    %839 = vmatpush1.bf16.msra.mxu0 0
    %840 = vmatprep.subr.bf16.mxu0 0
    %841 = vmatpush1.bf16.msra.mxu0 %v827
    %842 = vmatprep.subr.bf16.mxu0 0
    %843 = vmatpush1.bf16.msra.mxu0 %v826
    %844 = vmatprep.subr.bf16.mxu0 0
    %845 = vmatpush1.bf16.msra.mxu0 %v825
    %846 = vmatprep.subr.bf16.mxu0 0
    %847 = vmatpush1.bf16.msra.mxu0 %v824
    %848 = vmatprep.subr.bf16.mxu0 0
    %849 = vmatpush2.bf16.msra.mxu0 0
    %850 = vmatprep.subr.bf16.mxu0 0
    %851 = vmatpush2.bf16.msra.mxu0 0
    %852 = vmatprep.subr.bf16.mxu0 0
    %853 = vmatpush2.bf16.msra.mxu0 0
    %854 = vmatprep.subr.bf16.mxu0 0
    %855 = vmatpush2.bf16.msra.mxu0 0
    %856 = vmatprep.subr.bf16.mxu0 0
    %857 = vmatpush2.bf16.msra.mxu0 0
    %858 = vmatprep.subr.bf16.mxu0 0
    %859 = vmatpush2.bf16.msra.mxu0 0
    %860 = vmatprep.subr.bf16.mxu0 0
    %861 = vmatpush2.bf16.msra.mxu0 0
    %862 = vmatprep.subr.bf16.mxu0 0
    %863 = vmatpush2.bf16.msra.mxu0 0
    %864 = vmatprep.mubr.bf16.mxu0 0
    %865 = vmatmul.mubr.bf16.gmra.mxu0 %v214
    %v866 = vpop.f32.mrf.mxu0
    %v867 = vadd.f32 %v806, %v866
    %v868 = vpop.f32.mrf.mxu0
    %v869 = vpop.f32.mrf.mxu0
    %v870 = vadd.f32 %v806, %v869
    %v871 = vpop.f32.mrf.mxu0
    %872 = vmatprep.mubr.bf16.mxu0 0
    %873 = vmatmul.mubr.bf16.gmra.mxu0 %v217
    %v874 = vpop.f32.mrf.mxu0
    %v875 = vadd.f32 %v806, %v874
    %v876 = vpop.f32.mrf.mxu0
    %v877 = vpop.f32.mrf.mxu0
    %v878 = vadd.f32 %v806, %v877
    %v879 = vpop.f32.mrf.mxu0
    %880 = vmatprep.mubr.bf16.mxu0 0
    %881 = vmatmul.mubr.bf16.gmra.mxu0 %v220
    %v882 = vpop.f32.mrf.mxu0
    %v883 = vadd.f32 %v806, %v882
    %v884 = vpop.f32.mrf.mxu0
    %v885 = vpop.f32.mrf.mxu0
    %v886 = vadd.f32 %v806, %v885
    %v887 = vpop.f32.mrf.mxu0
    %888 = vmatprep.mubr.bf16.mxu0 0
    %889 = vmatmul.mubr.bf16.gmra.mxu0 %v223
    %v890 = vpop.f32.mrf.mxu0
    %v891 = vadd.f32 %v806, %v890
    %v892 = vpop.f32.mrf.mxu0
    %v893 = vpop.f32.mrf.mxu0
    %v894 = vpop.f32.mrf.mxu0
    %895 = vdwg.mxu0
    %v896 = vpack.c.bf16 %v870, %v867
    %v897 = vpack.c.bf16 %v878, %v875
    %v898 = vpack.c.bf16 %v886, %v883
    %v899 = vpack.c.bf16 %v891, %v891
    %s900 = scalar_lea.vmem %s7, 28
    %v901 = vld [vmem:[%s900] sm:$0xf]
    %v902 = vld [vmem:[%s900 + $0x4] sm:$0xf]
    %v903 = vld [vmem:[%s900 + $0x8] sm:$0xf]
    %v904 = vld [vmem:[%s900 + $0xc] sm:$0xf]
    %v905 = vld [vmem:[%s900 + $0x10] sm:$0xf]
    %v906 = vld [vmem:[%s900 + $0x14] sm:$0xf]
    %v907 = vld [vmem:[%s900 + $0x18] sm:$0xf]
    %v908 = vunpack.c.l.bf16 %v901
    %v909 = vunpack.c.l.bf16 %v902
    %v910 = vunpack.c.l.bf16 %v903
    %v911 = vunpack.c.l.bf16 %v904
    %v912 = vunpack.c.l.bf16 %v905
    %v913 = vunpack.c.l.bf16 %v906
    %v914 = vunpack.c.l.bf16 %v907
    %919 = vrot.lane.b32.xlu0 %v367, 96
    %v920 = vpop.permute.xlu0 %919
    %921 = vrot.lane.b32.xlu0 %v371, 96
    %v922 = vpop.permute.xlu0 %921
    %923 = vrot.lane.b32.xlu0 %v375, 96
    %v924 = vpop.permute.xlu0 %923
    %925 = vrot.lane.b32.xlu0 %v379, 96
    %v926 = vpop.permute.xlu0 %925
    %931 = vrot.lane.b32.xlu0 %v369, 96
    %v932 = vpop.permute.xlu0 %931
    %933 = vrot.lane.b32.xlu0 %v373, 96
    %v934 = vpop.permute.xlu0 %933
    %935 = vrot.lane.b32.xlu0 %v377, 96
    %v936 = vpop.permute.xlu0 %935
    %937 = vrot.lane.b32.xlu0 %v381, 96
    %v938 = vpop.permute.xlu0 %937
    %v940 = vsel %vm504, %v920, 0
    %v943 = vsel %vm504, %v922, 0
    %v946 = vsel %vm504, %v924, 0
    %v949 = vsel %vm504, %v926, 0
    %v952 = vsel %vm504, %v932, 0
    %v955 = vsel %vm504, %v934, 0
    %v958 = vsel %vm504, %v936, 0
    %v961 = vsel %vm504, %v938, 0
    %963 = vmatprep.subr.bf16.mxu0 0
    %964 = vmatpush1.bf16.xpose.msra.mxu0 0
    %965 = vmatprep.subr.bf16.mxu0 0
    %966 = vmatpush1.bf16.xpose.msra.mxu0 0
    %967 = vmatprep.subr.bf16.mxu0 0
    %968 = vmatpush1.bf16.xpose.msra.mxu0 0
    %969 = vmatprep.subr.bf16.mxu0 0
    %970 = vmatpush1.bf16.xpose.msra.mxu0 0
    %971 = vmatprep.subr.bf16.mxu0 0
    %972 = vmatpush1.bf16.xpose.msra.mxu0 %v961
    %973 = vmatprep.subr.bf16.mxu0 0
    %974 = vmatpush1.bf16.xpose.msra.mxu0 %v958
    %975 = vmatprep.subr.bf16.mxu0 0
    %976 = vmatpush1.bf16.xpose.msra.mxu0 %v955
    %977 = vmatprep.subr.bf16.mxu0 0
    %978 = vmatpush1.bf16.xpose.msra.mxu0 %v952
    %979 = vmatprep.subr.bf16.mxu0 0
    %980 = vmatpush2.bf16.xpose.msra.mxu0 0
    %981 = vmatprep.subr.bf16.mxu0 0
    %982 = vmatpush2.bf16.xpose.msra.mxu0 0
    %983 = vmatprep.subr.bf16.mxu0 0
    %984 = vmatpush2.bf16.xpose.msra.mxu0 0
    %985 = vmatprep.subr.bf16.mxu0 0
    %986 = vmatpush2.bf16.xpose.msra.mxu0 0
    %987 = vmatprep.subr.bf16.mxu0 0
    %988 = vmatpush2.bf16.xpose.msra.mxu0 0
    %989 = vmatprep.subr.bf16.mxu0 0
    %990 = vmatpush2.bf16.xpose.msra.mxu0 0
    %991 = vmatprep.subr.bf16.mxu0 0
    %992 = vmatpush2.bf16.xpose.msra.mxu0 0
    %993 = vmatprep.subr.bf16.mxu0 0
    %994 = vmatpush2.bf16.xpose.msra.mxu0 0
    %995 = vmatprep.mubr.bf16.mxu0 0
    %996 = vmatmul.mubr.bf16.gmra.mxu0 %v940
    %v997 = vpop.f32.mrf.mxu0
    %v998 = vadd.f32 %v908, %v997
    %v999 = vpop.f32.mrf.mxu0
    %v1000 = vpop.f32.mrf.mxu0
    %v1001 = vadd.f32 %v909, %v1000
    %v1002 = vpop.f32.mrf.mxu0
    %1003 = vmatprep.mubr.bf16.mxu0 0
    %1004 = vmatmul.mubr.bf16.gmra.mxu0 %v943
    %v1005 = vpop.f32.mrf.mxu0
    %v1006 = vadd.f32 %v910, %v1005
    %v1007 = vpop.f32.mrf.mxu0
    %v1008 = vpop.f32.mrf.mxu0
    %v1009 = vadd.f32 %v911, %v1008
    %v1010 = vpop.f32.mrf.mxu0
    %1011 = vmatprep.mubr.bf16.mxu0 0
    %1012 = vmatmul.mubr.bf16.gmra.mxu0 %v946
    %v1013 = vpop.f32.mrf.mxu0
    %v1014 = vadd.f32 %v912, %v1013
    %v1015 = vpop.f32.mrf.mxu0
    %v1016 = vpop.f32.mrf.mxu0
    %v1017 = vadd.f32 %v913, %v1016
    %v1018 = vpop.f32.mrf.mxu0
    %1019 = vmatprep.mubr.bf16.mxu0 0
    %1020 = vmatmul.mubr.bf16.gmra.mxu0 %v949
    %v1021 = vpop.f32.mrf.mxu0
    %v1022 = vadd.f32 %v914, %v1021
    %v1023 = vpop.f32.mrf.mxu0
    %v1024 = vpop.f32.mrf.mxu0
    %v1025 = vpop.f32.mrf.mxu0
    %1026 = vdwg.mxu0
    %v1027 = vsel %vm593, %v998, -inf
    %1028 = vmax.xlane.f32.xlu0 %v1027
    %v1029 = vpop.xlane.xlu0 %1028
    %v1030 = vsel %vm593, %v1001, -inf
    %1031 = vmax.xlane.f32.xlu0 %v1030
    %v1032 = vpop.xlane.xlu0 %1031
    %v1033 = vsel %vm593, %v1006, -inf
    %1034 = vmax.xlane.f32.xlu0 %v1033
    %v1035 = vpop.xlane.xlu0 %1034
    %v1036 = vsel %vm593, %v1009, -inf
    %1037 = vmax.xlane.f32.xlu0 %v1036
    %v1038 = vpop.xlane.xlu0 %1037
    %v1039 = vsel %vm593, %v1014, -inf
    %1040 = vmax.xlane.f32.xlu0 %v1039
    %v1041 = vpop.xlane.xlu0 %1040
    %v1042 = vsel %vm593, %v1017, -inf
    %1043 = vmax.xlane.f32.xlu0 %v1042
    %v1044 = vpop.xlane.xlu0 %1043
    %v1045 = vsel %vm593, %v1022, -inf
    %1046 = vmax.xlane.f32.xlu0 %v1045
    %v1047 = vpop.xlane.xlu0 %1046
    %v1048 = vsub.f32 %v998, %v1029
    %v1049 = vsub.f32 %v1001, %v1032
    %v1050 = vsub.f32 %v1006, %v1035
    %v1051 = vsub.f32 %v1009, %v1038
    %v1052 = vsub.f32 %v1014, %v1041
    %v1053 = vsub.f32 %v1017, %v1044
    %v1054 = vsub.f32 %v1022, %v1047
    %v1055 = vmul.f32 %v1048, 1.442695
    %v1056 = vpow.pop %v1055
    %v1057 = vmul.f32 %v1049, 1.442695
    %v1058 = vpow.pop %v1057
    %v1059 = vmul.f32 %v1050, 1.442695
    %v1060 = vpow.pop %v1059
    %v1061 = vmul.f32 %v1051, 1.442695
    %v1062 = vpow.pop %v1061
    %v1063 = vmul.f32 %v1052, 1.442695
    %v1064 = vpow.pop %v1063
    %v1065 = vmul.f32 %v1053, 1.442695
    %v1066 = vpow.pop %v1065
    %v1067 = vmul.f32 %v1054, 1.442695
    %v1068 = vpow.pop %v1067
    %v1069 = vsel %vm593, %v1056, 0.0
    %1070 = vadd.xlane.f32.xlu0 %v1069
    %v1071 = vpop.xlane.xlu0 %1070
    %v1072 = vsel %vm593, %v1058, 0.0
    %1073 = vadd.xlane.f32.xlu0 %v1072
    %v1074 = vpop.xlane.xlu0 %1073
    %v1075 = vsel %vm593, %v1060, 0.0
    %1076 = vadd.xlane.f32.xlu0 %v1075
    %v1077 = vpop.xlane.xlu0 %1076
    %v1078 = vsel %vm593, %v1062, 0.0
    %1079 = vadd.xlane.f32.xlu0 %v1078
    %v1080 = vpop.xlane.xlu0 %1079
    %v1081 = vsel %vm593, %v1064, 0.0
    %1082 = vadd.xlane.f32.xlu0 %v1081
    %v1083 = vpop.xlane.xlu0 %1082
    %v1084 = vsel %vm593, %v1066, 0.0
    %1085 = vadd.xlane.f32.xlu0 %v1084
    %v1086 = vpop.xlane.xlu0 %1085
    %v1087 = vsel %vm593, %v1068, 0.0
    %1088 = vadd.xlane.f32.xlu0 %v1087
    %v1089 = vpop.xlane.xlu0 %1088
    %v1090 = vrcp.pop %v1071
    %v1091 = vrcp.pop %v1074
    %v1092 = vrcp.pop %v1077
    %v1093 = vrcp.pop %v1080
    %v1094 = vrcp.pop %v1083
    %v1095 = vrcp.pop %v1086
    %v1096 = vrcp.pop %v1089
    %v1097 = vmul.f32 %v1056, %v1090
    %v1098 = vmul.f32 %v1058, %v1091
    %v1099 = vmul.f32 %v1060, %v1092
    %v1100 = vmul.f32 %v1062, %v1093
    %v1101 = vmul.f32 %v1064, %v1094
    %v1102 = vmul.f32 %v1066, %v1095
    %v1103 = vmul.f32 %v1068, %v1096
    %v1104 = vpack.c.bf16 %v1098, %v1097
    %v1105 = vpack.c.bf16 %v1100, %v1099
    %v1106 = vpack.c.bf16 %v1102, %v1101
    %v1107 = vpack.c.bf16 %v1103, %v1103
    %v1109 = vsel %vm593, %v1104, 0
    %v1112 = vsel %vm593, %v1105, 0
    %v1115 = vsel %vm593, %v1106, 0
    %v1118 = vsel %vm593, %v1107, 0
    %v1121 = vsel %vm687, %v899, 0
    %1123 = vmatprep.subr.bf16.mxu0 0
    %1124 = vmatpush1.bf16.msra.mxu0 0
    %1125 = vmatprep.subr.bf16.mxu0 0
    %1126 = vmatpush1.bf16.msra.mxu0 0
    %1127 = vmatprep.subr.bf16.mxu0 0
    %1128 = vmatpush1.bf16.msra.mxu0 0
    %1129 = vmatprep.subr.bf16.mxu0 0
    %1130 = vmatpush1.bf16.msra.mxu0 0
    %1131 = vmatprep.subr.bf16.mxu0 0
    %1132 = vmatpush1.bf16.msra.mxu0 %v1121
    %1133 = vmatprep.subr.bf16.mxu0 0
    %1134 = vmatpush1.bf16.msra.mxu0 %v898
    %1135 = vmatprep.subr.bf16.mxu0 0
    %1136 = vmatpush1.bf16.msra.mxu0 %v897
    %1137 = vmatprep.subr.bf16.mxu0 0
    %1138 = vmatpush1.bf16.msra.mxu0 %v896
    %1139 = vmatprep.subr.bf16.mxu0 0
    %1140 = vmatpush2.bf16.msra.mxu0 0
    %1141 = vmatprep.subr.bf16.mxu0 0
    %1142 = vmatpush2.bf16.msra.mxu0 0
    %1143 = vmatprep.subr.bf16.mxu0 0
    %1144 = vmatpush2.bf16.msra.mxu0 0
    %1145 = vmatprep.subr.bf16.mxu0 0
    %1146 = vmatpush2.bf16.msra.mxu0 0
    %1147 = vmatprep.subr.bf16.mxu0 0
    %1148 = vmatpush2.bf16.msra.mxu0 0
    %1149 = vmatprep.subr.bf16.mxu0 0
    %1150 = vmatpush2.bf16.msra.mxu0 0
    %1151 = vmatprep.subr.bf16.mxu0 0
    %1152 = vmatpush2.bf16.msra.mxu0 0
    %1153 = vmatprep.subr.bf16.mxu0 0
    %1154 = vmatpush2.bf16.msra.mxu0 0
    %1155 = vmatprep.mubr.bf16.mxu0 0
    %1156 = vmatmul.mubr.bf16.gmra.mxu0 %v1109
    %v1157 = vpop.f32.mrf.mxu0
    %v1158 = vadd.f32 0.0, %v1157
    %v1159 = vpop.f32.mrf.mxu0
    %v1160 = vpop.f32.mrf.mxu0
    %v1161 = vadd.f32 0.0, %v1160
    %v1162 = vpop.f32.mrf.mxu0
    %1163 = vmatprep.mubr.bf16.mxu0 0
    %1164 = vmatmul.mubr.bf16.gmra.mxu0 %v1112
    %v1165 = vpop.f32.mrf.mxu0
    %v1166 = vadd.f32 0.0, %v1165
    %v1167 = vpop.f32.mrf.mxu0
    %v1168 = vpop.f32.mrf.mxu0
    %v1169 = vadd.f32 0.0, %v1168
    %v1170 = vpop.f32.mrf.mxu0
    %1171 = vmatprep.mubr.bf16.mxu0 0
    %1172 = vmatmul.mubr.bf16.gmra.mxu0 %v1115
    %v1173 = vpop.f32.mrf.mxu0
    %v1174 = vadd.f32 0.0, %v1173
    %v1175 = vpop.f32.mrf.mxu0
    %v1176 = vpop.f32.mrf.mxu0
    %v1177 = vadd.f32 0.0, %v1176
    %v1178 = vpop.f32.mrf.mxu0
    %1179 = vmatprep.mubr.bf16.mxu0 0
    %1180 = vmatmul.mubr.bf16.gmra.mxu0 %v1118
    %v1181 = vpop.f32.mrf.mxu0
    %v1182 = vadd.f32 0.0, %v1181
    %v1183 = vpop.f32.mrf.mxu0
    %v1184 = vpop.f32.mrf.mxu0
    %v1185 = vpop.f32.mrf.mxu0
    %1186 = vdwg.mxu0
    %v1187 = vpack.c.bf16 %v1161, %v1158
    %v1188 = vpack.c.bf16 %v1169, %v1166
    %v1189 = vpack.c.bf16 %v1177, %v1174
    %v1190 = vpack.c.bf16 %v1182, %v1182
    %v1195 = vunpack.c.l.b16 %v1187
    %v1196 = vunpack.c.h.b16 %v1187
    %v1197 = vunpack.c.l.b16 %v1188
    %v1198 = vunpack.c.h.b16 %v1188
    %v1199 = vunpack.c.l.b16 %v1189
    %v1200 = vunpack.c.h.b16 %v1189
    %v1201 = vunpack.c.l.b16 %v1190
    %v1202 = vpack.c.b16 %v1195, %v1195
    %v1203 = vpack.c.b16 %v1196, %v1196
    %v1204 = vpack.c.b16 %v1197, %v1197
    %v1205 = vpack.c.b16 %v1198, %v1198
    %v1206 = vpack.c.b16 %v1199, %v1199
    %v1207 = vpack.c.b16 %v1200, %v1200
    %v1208 = vpack.c.b16 %v1201, %v1201
    %1216 = vst [vmem:[#allocation2 + $0x4] sm:$0xf] %v1202
    %1217 = vst [vmem:[#allocation2 + $0x24] sm:$0xf] %v1203
    %1218 = vst [vmem:[#allocation2 + $0x44] sm:$0xf] %v1204
    %1219 = vst [vmem:[#allocation2 + $0x64] sm:$0xf] %v1205
    %1220 = vst [vmem:[#allocation2 + $0x84] sm:$0xf] %v1206
    %1221 = vst [vmem:[#allocation2 + $0xa4] sm:$0xf] %v1207
    %1222 = vst [vmem:[#allocation2 + $0xc4] sm:$0xf] %v1208
    %s1223 = scalar_lea.vmem %s5, 64
    %v1224 = vld [vmem:[%s1223] sm:$0xf]
    %v1225 = vld [vmem:[%s1223 + $0x4] sm:$0xf]
    %v1226 = vld [vmem:[%s1223 + $0x8] sm:$0xf]
    %v1227 = vld [vmem:[%s1223 + $0xc] sm:$0xf]
    %v1228 = vld [vmem:[%s1223 + $0x10] sm:$0xf]
    %v1229 = vld [vmem:[%s1223 + $0x14] sm:$0xf]
    %v1230 = vld [vmem:[%s1223 + $0x18] sm:$0xf]
    %v1231 = vld [vmem:[%s1223 + $0x1c] sm:$0xf]
    %s1232 = scalar_lea.vmem %s6, 2
    %v1233 = vld [vmem:[%s1232] sm:$0x1]
    %v1235 = vlaneseq
    %v1236 = vshrl.u32 %v1235, 7
    %v1237 = vsub.s32 0, %v1236
    %v1238 = vrot.slane %v1233, %v1237
    %v1248 = vunpack.c.l.b16 %v1224
    %v1249 = vunpack.c.l.b16 %v1225
    %v1250 = vunpack.c.l.b16 %v1226
    %v1251 = vunpack.c.l.b16 %v1227
    %v1252 = vunpack.c.l.b16 %v1228
    %v1253 = vunpack.c.l.b16 %v1229
    %v1254 = vunpack.c.l.b16 %v1230
    %v1255 = vunpack.c.l.b16 %v1231
    %v1256 = vpack.c.b16 %v1249, %v1248
    %v1257 = vpack.c.b16 %v1251, %v1250
    %v1258 = vpack.c.b16 %v1253, %v1252
    %v1259 = vpack.c.b16 %v1255, %v1254
    %1264 = vmatprep.subr.bf16.mxu0 0
    %1265 = vmatpush1.bf16.msra.mxu0 0
    %1266 = vmatprep.subr.bf16.mxu0 0
    %1267 = vmatpush1.bf16.msra.mxu0 0
    %1268 = vmatprep.subr.bf16.mxu0 0
    %1269 = vmatpush1.bf16.msra.mxu0 0
    %1270 = vmatprep.subr.bf16.mxu0 0
    %1271 = vmatpush1.bf16.msra.mxu0 0
    %1272 = vmatprep.subr.bf16.mxu0 0
    %1273 = vmatpush1.bf16.msra.mxu0 %v1259
    %1274 = vmatprep.subr.bf16.mxu0 0
    %1275 = vmatpush1.bf16.msra.mxu0 %v1258
    %1276 = vmatprep.subr.bf16.mxu0 0
    %1277 = vmatpush1.bf16.msra.mxu0 %v1257
    %1278 = vmatprep.subr.bf16.mxu0 0
    %1279 = vmatpush1.bf16.msra.mxu0 %v1256
    %1280 = vmatprep.subr.bf16.mxu0 0
    %1281 = vmatpush2.bf16.msra.mxu0 0
    %1282 = vmatprep.subr.bf16.mxu0 0
    %1283 = vmatpush2.bf16.msra.mxu0 0
    %1284 = vmatprep.subr.bf16.mxu0 0
    %1285 = vmatpush2.bf16.msra.mxu0 0
    %1286 = vmatprep.subr.bf16.mxu0 0
    %1287 = vmatpush2.bf16.msra.mxu0 0
    %1288 = vmatprep.subr.bf16.mxu0 0
    %1289 = vmatpush2.bf16.msra.mxu0 0
    %1290 = vmatprep.subr.bf16.mxu0 0
    %1291 = vmatpush2.bf16.msra.mxu0 0
    %1292 = vmatprep.subr.bf16.mxu0 0
    %1293 = vmatpush2.bf16.msra.mxu0 0
    %1294 = vmatprep.subr.bf16.mxu0 0
    %1295 = vmatpush2.bf16.msra.mxu0 0
    %1296 = vmatprep.mubr.bf16.mxu0 0
    %1297 = vmatmul.mubr.bf16.gmra.mxu0 %v214
    %v1298 = vpop.f32.mrf.mxu0
    %v1299 = vadd.f32 %v1238, %v1298
    %v1300 = vpop.f32.mrf.mxu0
    %v1301 = vpop.f32.mrf.mxu0
    %v1302 = vadd.f32 %v1238, %v1301
    %v1303 = vpop.f32.mrf.mxu0
    %1304 = vmatprep.mubr.bf16.mxu0 0
    %1305 = vmatmul.mubr.bf16.gmra.mxu0 %v217
    %v1306 = vpop.f32.mrf.mxu0
    %v1307 = vadd.f32 %v1238, %v1306
    %v1308 = vpop.f32.mrf.mxu0
    %v1309 = vpop.f32.mrf.mxu0
    %v1310 = vadd.f32 %v1238, %v1309
    %v1311 = vpop.f32.mrf.mxu0
    %1312 = vmatprep.mubr.bf16.mxu0 0
    %1313 = vmatmul.mubr.bf16.gmra.mxu0 %v220
    %v1314 = vpop.f32.mrf.mxu0
    %v1315 = vadd.f32 %v1238, %v1314
    %v1316 = vpop.f32.mrf.mxu0
    %v1317 = vpop.f32.mrf.mxu0
    %v1318 = vadd.f32 %v1238, %v1317
    %v1319 = vpop.f32.mrf.mxu0
    %1320 = vmatprep.mubr.bf16.mxu0 0
    %1321 = vmatmul.mubr.bf16.gmra.mxu0 %v223
    %v1322 = vpop.f32.mrf.mxu0
    %v1323 = vadd.f32 %v1238, %v1322
    %v1324 = vpop.f32.mrf.mxu0
    %v1325 = vpop.f32.mrf.mxu0
    %v1326 = vpop.f32.mrf.mxu0
    %1327 = vdwg.mxu0
    %v1328 = vpack.c.bf16 %v1302, %v1299
    %v1329 = vpack.c.bf16 %v1310, %v1307
    %v1330 = vpack.c.bf16 %v1318, %v1315
    %v1331 = vpack.c.bf16 %v1323, %v1323
    %s1332 = scalar_lea.vmem %s7, 56
    %v1333 = vld [vmem:[%s1332] sm:$0xf]
    %v1334 = vld [vmem:[%s1332 + $0x4] sm:$0xf]
    %v1335 = vld [vmem:[%s1332 + $0x8] sm:$0xf]
    %v1336 = vld [vmem:[%s1332 + $0xc] sm:$0xf]
    %v1337 = vld [vmem:[%s1332 + $0x10] sm:$0xf]
    %v1338 = vld [vmem:[%s1332 + $0x14] sm:$0xf]
    %v1339 = vld [vmem:[%s1332 + $0x18] sm:$0xf]
    %v1340 = vunpack.c.l.bf16 %v1333
    %v1341 = vunpack.c.l.bf16 %v1334
    %v1342 = vunpack.c.l.bf16 %v1335
    %v1343 = vunpack.c.l.bf16 %v1336
    %v1344 = vunpack.c.l.bf16 %v1337
    %v1345 = vunpack.c.l.bf16 %v1338
    %v1346 = vunpack.c.l.bf16 %v1339
    %1347 = vrot.lane.b32.xlu0 %v367, 64
    %v1348 = vpop.permute.xlu0 %1347
    %1349 = vrot.lane.b32.xlu0 %v371, 64
    %v1350 = vpop.permute.xlu0 %1349
    %1351 = vrot.lane.b32.xlu0 %v375, 64
    %v1352 = vpop.permute.xlu0 %1351
    %1353 = vrot.lane.b32.xlu0 %v379, 64
    %v1354 = vpop.permute.xlu0 %1353
    %1355 = vrot.lane.b32.xlu0 %v369, 64
    %v1356 = vpop.permute.xlu0 %1355
    %1357 = vrot.lane.b32.xlu0 %v373, 64
    %v1358 = vpop.permute.xlu0 %1357
    %1359 = vrot.lane.b32.xlu0 %v377, 64
    %v1360 = vpop.permute.xlu0 %1359
    %1361 = vrot.lane.b32.xlu0 %v381, 64
    %v1362 = vpop.permute.xlu0 %1361
    %v1364 = vsel %vm504, %v1348, 0
    %v1367 = vsel %vm504, %v1350, 0
    %v1370 = vsel %vm504, %v1352, 0
    %v1373 = vsel %vm504, %v1354, 0
    %v1376 = vsel %vm504, %v1356, 0
    %v1379 = vsel %vm504, %v1358, 0
    %v1382 = vsel %vm504, %v1360, 0
    %v1385 = vsel %vm504, %v1362, 0
    %1387 = vmatprep.subr.bf16.mxu0 0
    %1388 = vmatpush1.bf16.xpose.msra.mxu0 0
    %1389 = vmatprep.subr.bf16.mxu0 0
    %1390 = vmatpush1.bf16.xpose.msra.mxu0 0
    %1391 = vmatprep.subr.bf16.mxu0 0
    %1392 = vmatpush1.bf16.xpose.msra.mxu0 0
    %1393 = vmatprep.subr.bf16.mxu0 0
    %1394 = vmatpush1.bf16.xpose.msra.mxu0 0
    %1395 = vmatprep.subr.bf16.mxu0 0
    %1396 = vmatpush1.bf16.xpose.msra.mxu0 %v1385
    %1397 = vmatprep.subr.bf16.mxu0 0
    %1398 = vmatpush1.bf16.xpose.msra.mxu0 %v1382
    %1399 = vmatprep.subr.bf16.mxu0 0
    %1400 = vmatpush1.bf16.xpose.msra.mxu0 %v1379
    %1401 = vmatprep.subr.bf16.mxu0 0
    %1402 = vmatpush1.bf16.xpose.msra.mxu0 %v1376
    %1403 = vmatprep.subr.bf16.mxu0 0
    %1404 = vmatpush2.bf16.xpose.msra.mxu0 0
    %1405 = vmatprep.subr.bf16.mxu0 0
    %1406 = vmatpush2.bf16.xpose.msra.mxu0 0
    %1407 = vmatprep.subr.bf16.mxu0 0
    %1408 = vmatpush2.bf16.xpose.msra.mxu0 0
    %1409 = vmatprep.subr.bf16.mxu0 0
    %1410 = vmatpush2.bf16.xpose.msra.mxu0 0
    %1411 = vmatprep.subr.bf16.mxu0 0
    %1412 = vmatpush2.bf16.xpose.msra.mxu0 0
    %1413 = vmatprep.subr.bf16.mxu0 0
    %1414 = vmatpush2.bf16.xpose.msra.mxu0 0
    %1415 = vmatprep.subr.bf16.mxu0 0
    %1416 = vmatpush2.bf16.xpose.msra.mxu0 0
    %1417 = vmatprep.subr.bf16.mxu0 0
    %1418 = vmatpush2.bf16.xpose.msra.mxu0 0
    %1419 = vmatprep.mubr.bf16.mxu0 0
    %1420 = vmatmul.mubr.bf16.gmra.mxu0 %v1364
    %v1421 = vpop.f32.mrf.mxu0
    %v1422 = vadd.f32 %v1340, %v1421
    %v1423 = vpop.f32.mrf.mxu0
    %v1424 = vpop.f32.mrf.mxu0
    %v1425 = vadd.f32 %v1341, %v1424
    %v1426 = vpop.f32.mrf.mxu0
    %1427 = vmatprep.mubr.bf16.mxu0 0
    %1428 = vmatmul.mubr.bf16.gmra.mxu0 %v1367
    %v1429 = vpop.f32.mrf.mxu0
    %v1430 = vadd.f32 %v1342, %v1429
    %v1431 = vpop.f32.mrf.mxu0
    %v1432 = vpop.f32.mrf.mxu0
    %v1433 = vadd.f32 %v1343, %v1432
    %v1434 = vpop.f32.mrf.mxu0
    %1435 = vmatprep.mubr.bf16.mxu0 0
    %1436 = vmatmul.mubr.bf16.gmra.mxu0 %v1370
    %v1437 = vpop.f32.mrf.mxu0
    %v1438 = vadd.f32 %v1344, %v1437
    %v1439 = vpop.f32.mrf.mxu0
    %v1440 = vpop.f32.mrf.mxu0
    %v1441 = vadd.f32 %v1345, %v1440
    %v1442 = vpop.f32.mrf.mxu0
    %1443 = vmatprep.mubr.bf16.mxu0 0
    %1444 = vmatmul.mubr.bf16.gmra.mxu0 %v1373
    %v1445 = vpop.f32.mrf.mxu0
    %v1446 = vadd.f32 %v1346, %v1445
    %v1447 = vpop.f32.mrf.mxu0
    %v1448 = vpop.f32.mrf.mxu0
    %v1449 = vpop.f32.mrf.mxu0
    %1450 = vdwg.mxu0
    %v1451 = vsel %vm593, %v1422, -inf
    %1452 = vmax.xlane.f32.xlu0 %v1451
    %v1453 = vpop.xlane.xlu0 %1452
    %v1454 = vsel %vm593, %v1425, -inf
    %1455 = vmax.xlane.f32.xlu0 %v1454
    %v1456 = vpop.xlane.xlu0 %1455
    %v1457 = vsel %vm593, %v1430, -inf
    %1458 = vmax.xlane.f32.xlu0 %v1457
    %v1459 = vpop.xlane.xlu0 %1458
    %v1460 = vsel %vm593, %v1433, -inf
    %1461 = vmax.xlane.f32.xlu0 %v1460
    %v1462 = vpop.xlane.xlu0 %1461
    %v1463 = vsel %vm593, %v1438, -inf
    %1464 = vmax.xlane.f32.xlu0 %v1463
    %v1465 = vpop.xlane.xlu0 %1464
    %v1466 = vsel %vm593, %v1441, -inf
    %1467 = vmax.xlane.f32.xlu0 %v1466
    %v1468 = vpop.xlane.xlu0 %1467
    %v1469 = vsel %vm593, %v1446, -inf
    %1470 = vmax.xlane.f32.xlu0 %v1469
    %v1471 = vpop.xlane.xlu0 %1470
    %v1472 = vsub.f32 %v1422, %v1453
    %v1473 = vsub.f32 %v1425, %v1456
    %v1474 = vsub.f32 %v1430, %v1459
    %v1475 = vsub.f32 %v1433, %v1462
    %v1476 = vsub.f32 %v1438, %v1465
    %v1477 = vsub.f32 %v1441, %v1468
    %v1478 = vsub.f32 %v1446, %v1471
    %v1479 = vmul.f32 %v1472, 1.442695
    %v1480 = vpow.pop %v1479
    %v1481 = vmul.f32 %v1473, 1.442695
    %v1482 = vpow.pop %v1481
    %v1483 = vmul.f32 %v1474, 1.442695
    %v1484 = vpow.pop %v1483
    %v1485 = vmul.f32 %v1475, 1.442695
    %v1486 = vpow.pop %v1485
    %v1487 = vmul.f32 %v1476, 1.442695
    %v1488 = vpow.pop %v1487
    %v1489 = vmul.f32 %v1477, 1.442695
    %v1490 = vpow.pop %v1489
    %v1491 = vmul.f32 %v1478, 1.442695
    %v1492 = vpow.pop %v1491
    %v1493 = vsel %vm593, %v1480, 0.0
    %1494 = vadd.xlane.f32.xlu0 %v1493
    %v1495 = vpop.xlane.xlu0 %1494
    %v1496 = vsel %vm593, %v1482, 0.0
    %1497 = vadd.xlane.f32.xlu0 %v1496
    %v1498 = vpop.xlane.xlu0 %1497
    %v1499 = vsel %vm593, %v1484, 0.0
    %1500 = vadd.xlane.f32.xlu0 %v1499
    %v1501 = vpop.xlane.xlu0 %1500
    %v1502 = vsel %vm593, %v1486, 0.0
    %1503 = vadd.xlane.f32.xlu0 %v1502
    %v1504 = vpop.xlane.xlu0 %1503
    %v1505 = vsel %vm593, %v1488, 0.0
    %1506 = vadd.xlane.f32.xlu0 %v1505
    %v1507 = vpop.xlane.xlu0 %1506
    %v1508 = vsel %vm593, %v1490, 0.0
    %1509 = vadd.xlane.f32.xlu0 %v1508
    %v1510 = vpop.xlane.xlu0 %1509
    %v1511 = vsel %vm593, %v1492, 0.0
    %1512 = vadd.xlane.f32.xlu0 %v1511
    %v1513 = vpop.xlane.xlu0 %1512
    %v1514 = vrcp.pop %v1495
    %v1515 = vrcp.pop %v1498
    %v1516 = vrcp.pop %v1501
    %v1517 = vrcp.pop %v1504
    %v1518 = vrcp.pop %v1507
    %v1519 = vrcp.pop %v1510
    %v1520 = vrcp.pop %v1513
    %v1521 = vmul.f32 %v1480, %v1514
    %v1522 = vmul.f32 %v1482, %v1515
    %v1523 = vmul.f32 %v1484, %v1516
    %v1524 = vmul.f32 %v1486, %v1517
    %v1525 = vmul.f32 %v1488, %v1518
    %v1526 = vmul.f32 %v1490, %v1519
    %v1527 = vmul.f32 %v1492, %v1520
    %v1528 = vpack.c.bf16 %v1522, %v1521
    %v1529 = vpack.c.bf16 %v1524, %v1523
    %v1530 = vpack.c.bf16 %v1526, %v1525
    %v1531 = vpack.c.bf16 %v1527, %v1527
    %v1533 = vsel %vm593, %v1528, 0
    %v1536 = vsel %vm593, %v1529, 0
    %v1539 = vsel %vm593, %v1530, 0
    %v1542 = vsel %vm593, %v1531, 0
    %v1545 = vsel %vm687, %v1331, 0
    %1547 = vmatprep.subr.bf16.mxu0 0
    %1548 = vmatpush1.bf16.msra.mxu0 0
    %1549 = vmatprep.subr.bf16.mxu0 0
    %1550 = vmatpush1.bf16.msra.mxu0 0
    %1551 = vmatprep.subr.bf16.mxu0 0
    %1552 = vmatpush1.bf16.msra.mxu0 0
    %1553 = vmatprep.subr.bf16.mxu0 0
    %1554 = vmatpush1.bf16.msra.mxu0 0
    %1555 = vmatprep.subr.bf16.mxu0 0
    %1556 = vmatpush1.bf16.msra.mxu0 %v1545
    %1557 = vmatprep.subr.bf16.mxu0 0
    %1558 = vmatpush1.bf16.msra.mxu0 %v1330
    %1559 = vmatprep.subr.bf16.mxu0 0
    %1560 = vmatpush1.bf16.msra.mxu0 %v1329
    %1561 = vmatprep.subr.bf16.mxu0 0
    %1562 = vmatpush1.bf16.msra.mxu0 %v1328
    %1563 = vmatprep.subr.bf16.mxu0 0
    %1564 = vmatpush2.bf16.msra.mxu0 0
    %1565 = vmatprep.subr.bf16.mxu0 0
    %1566 = vmatpush2.bf16.msra.mxu0 0
    %1567 = vmatprep.subr.bf16.mxu0 0
    %1568 = vmatpush2.bf16.msra.mxu0 0
    %1569 = vmatprep.subr.bf16.mxu0 0
    %1570 = vmatpush2.bf16.msra.mxu0 0
    %1571 = vmatprep.subr.bf16.mxu0 0
    %1572 = vmatpush2.bf16.msra.mxu0 0
    %1573 = vmatprep.subr.bf16.mxu0 0
    %1574 = vmatpush2.bf16.msra.mxu0 0
    %1575 = vmatprep.subr.bf16.mxu0 0
    %1576 = vmatpush2.bf16.msra.mxu0 0
    %1577 = vmatprep.subr.bf16.mxu0 0
    %1578 = vmatpush2.bf16.msra.mxu0 0
    %1579 = vmatprep.mubr.bf16.mxu0 0
    %1580 = vmatmul.mubr.bf16.gmra.mxu0 %v1533
    %v1581 = vpop.f32.mrf.mxu0
    %v1582 = vadd.f32 0.0, %v1581
    %v1583 = vpop.f32.mrf.mxu0
    %v1584 = vpop.f32.mrf.mxu0
    %v1585 = vadd.f32 0.0, %v1584
    %v1586 = vpop.f32.mrf.mxu0
    %1587 = vmatprep.mubr.bf16.mxu0 0
    %1588 = vmatmul.mubr.bf16.gmra.mxu0 %v1536
    %v1589 = vpop.f32.mrf.mxu0
    %v1590 = vadd.f32 0.0, %v1589
    %v1591 = vpop.f32.mrf.mxu0
    %v1592 = vpop.f32.mrf.mxu0
    %v1593 = vadd.f32 0.0, %v1592
    %v1594 = vpop.f32.mrf.mxu0
    %1595 = vmatprep.mubr.bf16.mxu0 0
    %1596 = vmatmul.mubr.bf16.gmra.mxu0 %v1539
    %v1597 = vpop.f32.mrf.mxu0
    %v1598 = vadd.f32 0.0, %v1597
    %v1599 = vpop.f32.mrf.mxu0
    %v1600 = vpop.f32.mrf.mxu0
    %v1601 = vadd.f32 0.0, %v1600
    %v1602 = vpop.f32.mrf.mxu0
    %1603 = vmatprep.mubr.bf16.mxu0 0
    %1604 = vmatmul.mubr.bf16.gmra.mxu0 %v1542
    %v1605 = vpop.f32.mrf.mxu0
    %v1606 = vadd.f32 0.0, %v1605
    %v1607 = vpop.f32.mrf.mxu0
    %v1608 = vpop.f32.mrf.mxu0
    %v1609 = vpop.f32.mrf.mxu0
    %1610 = vdwg.mxu0
    %v1611 = vpack.c.bf16 %v1585, %v1582
    %v1612 = vpack.c.bf16 %v1593, %v1590
    %v1613 = vpack.c.bf16 %v1601, %v1598
    %v1614 = vpack.c.bf16 %v1606, %v1606
    %v1619 = vunpack.c.l.b16 %v1611
    %v1620 = vunpack.c.h.b16 %v1611
    %v1621 = vunpack.c.l.b16 %v1612
    %v1622 = vunpack.c.h.b16 %v1612
    %v1623 = vunpack.c.l.b16 %v1613
    %v1624 = vunpack.c.h.b16 %v1613
    %v1625 = vunpack.c.l.b16 %v1614
    %v1626 = vpack.c.b16 %v1619, %v1619
    %v1627 = vpack.c.b16 %v1620, %v1620
    %v1628 = vpack.c.b16 %v1621, %v1621
    %v1629 = vpack.c.b16 %v1622, %v1622
    %v1630 = vpack.c.b16 %v1623, %v1623
    %v1631 = vpack.c.b16 %v1624, %v1624
    %v1632 = vpack.c.b16 %v1625, %v1625
    %1640 = vst [vmem:[#allocation2 + $0x8] sm:$0xf] %v1626
    %1641 = vst [vmem:[#allocation2 + $0x28] sm:$0xf] %v1627
    %1642 = vst [vmem:[#allocation2 + $0x48] sm:$0xf] %v1628
    %1643 = vst [vmem:[#allocation2 + $0x68] sm:$0xf] %v1629
    %1644 = vst [vmem:[#allocation2 + $0x88] sm:$0xf] %v1630
    %1645 = vst [vmem:[#allocation2 + $0xa8] sm:$0xf] %v1631
    %1646 = vst [vmem:[#allocation2 + $0xc8] sm:$0xf] %v1632
    %s1647 = scalar_lea.vmem %s5, 96
    %v1648 = vld [vmem:[%s1647] sm:$0xf]
    %v1649 = vld [vmem:[%s1647 + $0x4] sm:$0xf]
    %v1650 = vld [vmem:[%s1647 + $0x8] sm:$0xf]
    %v1651 = vld [vmem:[%s1647 + $0xc] sm:$0xf]
    %v1652 = vld [vmem:[%s1647 + $0x10] sm:$0xf]
    %v1653 = vld [vmem:[%s1647 + $0x14] sm:$0xf]
    %v1654 = vld [vmem:[%s1647 + $0x18] sm:$0xf]
    %v1655 = vld [vmem:[%s1647 + $0x1c] sm:$0xf]
    %s1656 = scalar_lea.vmem %s6, 3
    %v1657 = vld [vmem:[%s1656] sm:$0x1]
    %v1659 = vlaneseq
    %v1660 = vshrl.u32 %v1659, 7
    %v1661 = vsub.s32 0, %v1660
    %v1662 = vrot.slane %v1657, %v1661
    %v1672 = vunpack.c.l.b16 %v1648
    %v1673 = vunpack.c.l.b16 %v1649
    %v1674 = vunpack.c.l.b16 %v1650
    %v1675 = vunpack.c.l.b16 %v1651
    %v1676 = vunpack.c.l.b16 %v1652
    %v1677 = vunpack.c.l.b16 %v1653
    %v1678 = vunpack.c.l.b16 %v1654
    %v1679 = vunpack.c.l.b16 %v1655
    %v1680 = vpack.c.b16 %v1673, %v1672
    %v1681 = vpack.c.b16 %v1675, %v1674
    %v1682 = vpack.c.b16 %v1677, %v1676
    %v1683 = vpack.c.b16 %v1679, %v1678
    %1688 = vmatprep.subr.bf16.mxu0 0
    %1689 = vmatpush1.bf16.msra.mxu0 0
    %1690 = vmatprep.subr.bf16.mxu0 0
    %1691 = vmatpush1.bf16.msra.mxu0 0
    %1692 = vmatprep.subr.bf16.mxu0 0
    %1693 = vmatpush1.bf16.msra.mxu0 0
    %1694 = vmatprep.subr.bf16.mxu0 0
    %1695 = vmatpush1.bf16.msra.mxu0 0
    %1696 = vmatprep.subr.bf16.mxu0 0
    %1697 = vmatpush1.bf16.msra.mxu0 %v1683
    %1698 = vmatprep.subr.bf16.mxu0 0
    %1699 = vmatpush1.bf16.msra.mxu0 %v1682
    %1700 = vmatprep.subr.bf16.mxu0 0
    %1701 = vmatpush1.bf16.msra.mxu0 %v1681
    %1702 = vmatprep.subr.bf16.mxu0 0
    %1703 = vmatpush1.bf16.msra.mxu0 %v1680
    %1704 = vmatprep.subr.bf16.mxu0 0
    %1705 = vmatpush2.bf16.msra.mxu0 0
    %1706 = vmatprep.subr.bf16.mxu0 0
    %1707 = vmatpush2.bf16.msra.mxu0 0
    %1708 = vmatprep.subr.bf16.mxu0 0
    %1709 = vmatpush2.bf16.msra.mxu0 0
    %1710 = vmatprep.subr.bf16.mxu0 0
    %1711 = vmatpush2.bf16.msra.mxu0 0
    %1712 = vmatprep.subr.bf16.mxu0 0
    %1713 = vmatpush2.bf16.msra.mxu0 0
    %1714 = vmatprep.subr.bf16.mxu0 0
    %1715 = vmatpush2.bf16.msra.mxu0 0
    %1716 = vmatprep.subr.bf16.mxu0 0
    %1717 = vmatpush2.bf16.msra.mxu0 0
    %1718 = vmatprep.subr.bf16.mxu0 0
    %1719 = vmatpush2.bf16.msra.mxu0 0
    %1720 = vmatprep.mubr.bf16.mxu0 0
    %1721 = vmatmul.mubr.bf16.gmra.mxu0 %v214
    %v1722 = vpop.f32.mrf.mxu0
    %v1723 = vadd.f32 %v1662, %v1722
    %v1724 = vpop.f32.mrf.mxu0
    %v1725 = vpop.f32.mrf.mxu0
    %v1726 = vadd.f32 %v1662, %v1725
    %v1727 = vpop.f32.mrf.mxu0
    %1728 = vmatprep.mubr.bf16.mxu0 0
    %1729 = vmatmul.mubr.bf16.gmra.mxu0 %v217
    %v1730 = vpop.f32.mrf.mxu0
    %v1731 = vadd.f32 %v1662, %v1730
    %v1732 = vpop.f32.mrf.mxu0
    %v1733 = vpop.f32.mrf.mxu0
    %v1734 = vadd.f32 %v1662, %v1733
    %v1735 = vpop.f32.mrf.mxu0
    %1736 = vmatprep.mubr.bf16.mxu0 0
    %1737 = vmatmul.mubr.bf16.gmra.mxu0 %v220
    %v1738 = vpop.f32.mrf.mxu0
    %v1739 = vadd.f32 %v1662, %v1738
    %v1740 = vpop.f32.mrf.mxu0
    %v1741 = vpop.f32.mrf.mxu0
    %v1742 = vadd.f32 %v1662, %v1741
    %v1743 = vpop.f32.mrf.mxu0
    %1744 = vmatprep.mubr.bf16.mxu0 0
    %1745 = vmatmul.mubr.bf16.gmra.mxu0 %v223
    %v1746 = vpop.f32.mrf.mxu0
    %v1747 = vadd.f32 %v1662, %v1746
    %v1748 = vpop.f32.mrf.mxu0
    %v1749 = vpop.f32.mrf.mxu0
    %v1750 = vpop.f32.mrf.mxu0
    %1751 = vdwg.mxu0
    %v1752 = vpack.c.bf16 %v1726, %v1723
    %v1753 = vpack.c.bf16 %v1734, %v1731
    %v1754 = vpack.c.bf16 %v1742, %v1739
    %v1755 = vpack.c.bf16 %v1747, %v1747
    %s1756 = scalar_lea.vmem %s7, 84
    %v1757 = vld [vmem:[%s1756] sm:$0xf]
    %v1758 = vld [vmem:[%s1756 + $0x4] sm:$0xf]
    %v1759 = vld [vmem:[%s1756 + $0x8] sm:$0xf]
    %v1760 = vld [vmem:[%s1756 + $0xc] sm:$0xf]
    %v1761 = vld [vmem:[%s1756 + $0x10] sm:$0xf]
    %v1762 = vld [vmem:[%s1756 + $0x14] sm:$0xf]
    %v1763 = vld [vmem:[%s1756 + $0x18] sm:$0xf]
    %v1764 = vunpack.c.l.bf16 %v1757
    %v1765 = vunpack.c.l.bf16 %v1758
    %v1766 = vunpack.c.l.bf16 %v1759
    %v1767 = vunpack.c.l.bf16 %v1760
    %v1768 = vunpack.c.l.bf16 %v1761
    %v1769 = vunpack.c.l.bf16 %v1762
    %v1770 = vunpack.c.l.bf16 %v1763
    %1771 = vrot.lane.b32.xlu0 %v367, 32
    %v1772 = vpop.permute.xlu0 %1771
    %1773 = vrot.lane.b32.xlu0 %v371, 32
    %v1774 = vpop.permute.xlu0 %1773
    %1775 = vrot.lane.b32.xlu0 %v375, 32
    %v1776 = vpop.permute.xlu0 %1775
    %1777 = vrot.lane.b32.xlu0 %v379, 32
    %v1778 = vpop.permute.xlu0 %1777
    %1779 = vrot.lane.b32.xlu0 %v369, 32
    %v1780 = vpop.permute.xlu0 %1779
    %1781 = vrot.lane.b32.xlu0 %v373, 32
    %v1782 = vpop.permute.xlu0 %1781
    %1783 = vrot.lane.b32.xlu0 %v377, 32
    %v1784 = vpop.permute.xlu0 %1783
    %1785 = vrot.lane.b32.xlu0 %v381, 32
    %v1786 = vpop.permute.xlu0 %1785
    %v1788 = vsel %vm504, %v1772, 0
    %v1791 = vsel %vm504, %v1774, 0
    %v1794 = vsel %vm504, %v1776, 0
    %v1797 = vsel %vm504, %v1778, 0
    %v1800 = vsel %vm504, %v1780, 0
    %v1803 = vsel %vm504, %v1782, 0
    %v1806 = vsel %vm504, %v1784, 0
    %v1809 = vsel %vm504, %v1786, 0
    %1811 = vmatprep.subr.bf16.mxu0 0
    %1812 = vmatpush1.bf16.xpose.msra.mxu0 0
    %1813 = vmatprep.subr.bf16.mxu0 0
    %1814 = vmatpush1.bf16.xpose.msra.mxu0 0
    %1815 = vmatprep.subr.bf16.mxu0 0
    %1816 = vmatpush1.bf16.xpose.msra.mxu0 0
    %1817 = vmatprep.subr.bf16.mxu0 0
    %1818 = vmatpush1.bf16.xpose.msra.mxu0 0
    %1819 = vmatprep.subr.bf16.mxu0 0
    %1820 = vmatpush1.bf16.xpose.msra.mxu0 %v1809
    %1821 = vmatprep.subr.bf16.mxu0 0
    %1822 = vmatpush1.bf16.xpose.msra.mxu0 %v1806
    %1823 = vmatprep.subr.bf16.mxu0 0
    %1824 = vmatpush1.bf16.xpose.msra.mxu0 %v1803
    %1825 = vmatprep.subr.bf16.mxu0 0
    %1826 = vmatpush1.bf16.xpose.msra.mxu0 %v1800
    %1827 = vmatprep.subr.bf16.mxu0 0
    %1828 = vmatpush2.bf16.xpose.msra.mxu0 0
    %1829 = vmatprep.subr.bf16.mxu0 0
    %1830 = vmatpush2.bf16.xpose.msra.mxu0 0
    %1831 = vmatprep.subr.bf16.mxu0 0
    %1832 = vmatpush2.bf16.xpose.msra.mxu0 0
    %1833 = vmatprep.subr.bf16.mxu0 0
    %1834 = vmatpush2.bf16.xpose.msra.mxu0 0
    %1835 = vmatprep.subr.bf16.mxu0 0
    %1836 = vmatpush2.bf16.xpose.msra.mxu0 0
    %1837 = vmatprep.subr.bf16.mxu0 0
    %1838 = vmatpush2.bf16.xpose.msra.mxu0 0
    %1839 = vmatprep.subr.bf16.mxu0 0
    %1840 = vmatpush2.bf16.xpose.msra.mxu0 0
    %1841 = vmatprep.subr.bf16.mxu0 0
    %1842 = vmatpush2.bf16.xpose.msra.mxu0 0
    %1843 = vmatprep.mubr.bf16.mxu0 0
    %1844 = vmatmul.mubr.bf16.gmra.mxu0 %v1788
    %v1845 = vpop.f32.mrf.mxu0
    %v1846 = vadd.f32 %v1764, %v1845
    %v1847 = vpop.f32.mrf.mxu0
    %v1848 = vpop.f32.mrf.mxu0
    %v1849 = vadd.f32 %v1765, %v1848
    %v1850 = vpop.f32.mrf.mxu0
    %1851 = vmatprep.mubr.bf16.mxu0 0
    %1852 = vmatmul.mubr.bf16.gmra.mxu0 %v1791
    %v1853 = vpop.f32.mrf.mxu0
    %v1854 = vadd.f32 %v1766, %v1853
    %v1855 = vpop.f32.mrf.mxu0
    %v1856 = vpop.f32.mrf.mxu0
    %v1857 = vadd.f32 %v1767, %v1856
    %v1858 = vpop.f32.mrf.mxu0
    %1859 = vmatprep.mubr.bf16.mxu0 0
    %1860 = vmatmul.mubr.bf16.gmra.mxu0 %v1794
    %v1861 = vpop.f32.mrf.mxu0
    %v1862 = vadd.f32 %v1768, %v1861
    %v1863 = vpop.f32.mrf.mxu0
    %v1864 = vpop.f32.mrf.mxu0
    %v1865 = vadd.f32 %v1769, %v1864
    %v1866 = vpop.f32.mrf.mxu0
    %1867 = vmatprep.mubr.bf16.mxu0 0
    %1868 = vmatmul.mubr.bf16.gmra.mxu0 %v1797
    %v1869 = vpop.f32.mrf.mxu0
    %v1870 = vadd.f32 %v1770, %v1869
    %v1871 = vpop.f32.mrf.mxu0
    %v1872 = vpop.f32.mrf.mxu0
    %v1873 = vpop.f32.mrf.mxu0
    %1874 = vdwg.mxu0
    %v1875 = vsel %vm593, %v1846, -inf
    %1876 = vmax.xlane.f32.xlu0 %v1875
    %v1877 = vpop.xlane.xlu0 %1876
    %v1878 = vsel %vm593, %v1849, -inf
    %1879 = vmax.xlane.f32.xlu0 %v1878
    %v1880 = vpop.xlane.xlu0 %1879
    %v1881 = vsel %vm593, %v1854, -inf
    %1882 = vmax.xlane.f32.xlu0 %v1881
    %v1883 = vpop.xlane.xlu0 %1882
    %v1884 = vsel %vm593, %v1857, -inf
    %1885 = vmax.xlane.f32.xlu0 %v1884
    %v1886 = vpop.xlane.xlu0 %1885
    %v1887 = vsel %vm593, %v1862, -inf
    %1888 = vmax.xlane.f32.xlu0 %v1887
    %v1889 = vpop.xlane.xlu0 %1888
    %v1890 = vsel %vm593, %v1865, -inf
    %1891 = vmax.xlane.f32.xlu0 %v1890
    %v1892 = vpop.xlane.xlu0 %1891
    %v1893 = vsel %vm593, %v1870, -inf
    %1894 = vmax.xlane.f32.xlu0 %v1893
    %v1895 = vpop.xlane.xlu0 %1894
    %v1896 = vsub.f32 %v1846, %v1877
    %v1897 = vsub.f32 %v1849, %v1880
    %v1898 = vsub.f32 %v1854, %v1883
    %v1899 = vsub.f32 %v1857, %v1886
    %v1900 = vsub.f32 %v1862, %v1889
    %v1901 = vsub.f32 %v1865, %v1892
    %v1902 = vsub.f32 %v1870, %v1895
    %v1903 = vmul.f32 %v1896, 1.442695
    %v1904 = vpow.pop %v1903
    %v1905 = vmul.f32 %v1897, 1.442695
    %v1906 = vpow.pop %v1905
    %v1907 = vmul.f32 %v1898, 1.442695
    %v1908 = vpow.pop %v1907
    %v1909 = vmul.f32 %v1899, 1.442695
    %v1910 = vpow.pop %v1909
    %v1911 = vmul.f32 %v1900, 1.442695
    %v1912 = vpow.pop %v1911
    %v1913 = vmul.f32 %v1901, 1.442695
    %v1914 = vpow.pop %v1913
    %v1915 = vmul.f32 %v1902, 1.442695
    %v1916 = vpow.pop %v1915
    %v1917 = vsel %vm593, %v1904, 0.0
    %1918 = vadd.xlane.f32.xlu0 %v1917
    %v1919 = vpop.xlane.xlu0 %1918
    %v1920 = vsel %vm593, %v1906, 0.0
    %1921 = vadd.xlane.f32.xlu0 %v1920
    %v1922 = vpop.xlane.xlu0 %1921
    %v1923 = vsel %vm593, %v1908, 0.0
    %1924 = vadd.xlane.f32.xlu0 %v1923
    %v1925 = vpop.xlane.xlu0 %1924
    %v1926 = vsel %vm593, %v1910, 0.0
    %1927 = vadd.xlane.f32.xlu0 %v1926
    %v1928 = vpop.xlane.xlu0 %1927
    %v1929 = vsel %vm593, %v1912, 0.0
    %1930 = vadd.xlane.f32.xlu0 %v1929
    %v1931 = vpop.xlane.xlu0 %1930
    %v1932 = vsel %vm593, %v1914, 0.0
    %1933 = vadd.xlane.f32.xlu0 %v1932
    %v1934 = vpop.xlane.xlu0 %1933
    %v1935 = vsel %vm593, %v1916, 0.0
    %1936 = vadd.xlane.f32.xlu0 %v1935
    %v1937 = vpop.xlane.xlu0 %1936
    %v1938 = vrcp.pop %v1919
    %v1939 = vrcp.pop %v1922
    %v1940 = vrcp.pop %v1925
    %v1941 = vrcp.pop %v1928
    %v1942 = vrcp.pop %v1931
    %v1943 = vrcp.pop %v1934
    %v1944 = vrcp.pop %v1937
    %v1945 = vmul.f32 %v1904, %v1938
    %v1946 = vmul.f32 %v1906, %v1939
    %v1947 = vmul.f32 %v1908, %v1940
    %v1948 = vmul.f32 %v1910, %v1941
    %v1949 = vmul.f32 %v1912, %v1942
    %v1950 = vmul.f32 %v1914, %v1943
    %v1951 = vmul.f32 %v1916, %v1944
    %v1952 = vpack.c.bf16 %v1946, %v1945
    %v1953 = vpack.c.bf16 %v1948, %v1947
    %v1954 = vpack.c.bf16 %v1950, %v1949
    %v1955 = vpack.c.bf16 %v1951, %v1951
    %v1957 = vsel %vm593, %v1952, 0
    %v1960 = vsel %vm593, %v1953, 0
    %v1963 = vsel %vm593, %v1954, 0
    %v1966 = vsel %vm593, %v1955, 0
    %v1969 = vsel %vm687, %v1755, 0
    %1971 = vmatprep.subr.bf16.mxu0 0
    %1972 = vmatpush1.bf16.msra.mxu0 0
    %1973 = vmatprep.subr.bf16.mxu0 0
    %1974 = vmatpush1.bf16.msra.mxu0 0
    %1975 = vmatprep.subr.bf16.mxu0 0
    %1976 = vmatpush1.bf16.msra.mxu0 0
    %1977 = vmatprep.subr.bf16.mxu0 0
    %1978 = vmatpush1.bf16.msra.mxu0 0
    %1979 = vmatprep.subr.bf16.mxu0 0
    %1980 = vmatpush1.bf16.msra.mxu0 %v1969
    %1981 = vmatprep.subr.bf16.mxu0 0
    %1982 = vmatpush1.bf16.msra.mxu0 %v1754
    %1983 = vmatprep.subr.bf16.mxu0 0
    %1984 = vmatpush1.bf16.msra.mxu0 %v1753
    %1985 = vmatprep.subr.bf16.mxu0 0
    %1986 = vmatpush1.bf16.msra.mxu0 %v1752
    %1987 = vmatprep.subr.bf16.mxu0 0
    %1988 = vmatpush2.bf16.msra.mxu0 0
    %1989 = vmatprep.subr.bf16.mxu0 0
    %1990 = vmatpush2.bf16.msra.mxu0 0
    %1991 = vmatprep.subr.bf16.mxu0 0
    %1992 = vmatpush2.bf16.msra.mxu0 0
    %1993 = vmatprep.subr.bf16.mxu0 0
    %1994 = vmatpush2.bf16.msra.mxu0 0
    %1995 = vmatprep.subr.bf16.mxu0 0
    %1996 = vmatpush2.bf16.msra.mxu0 0
    %1997 = vmatprep.subr.bf16.mxu0 0
    %1998 = vmatpush2.bf16.msra.mxu0 0
    %1999 = vmatprep.subr.bf16.mxu0 0
    %2000 = vmatpush2.bf16.msra.mxu0 0
    %2001 = vmatprep.subr.bf16.mxu0 0
    %2002 = vmatpush2.bf16.msra.mxu0 0
    %2003 = vmatprep.mubr.bf16.mxu0 0
    %2004 = vmatmul.mubr.bf16.gmra.mxu0 %v1957
    %v2005 = vpop.f32.mrf.mxu0
    %v2006 = vadd.f32 0.0, %v2005
    %v2007 = vpop.f32.mrf.mxu0
    %v2008 = vpop.f32.mrf.mxu0
    %v2009 = vadd.f32 0.0, %v2008
    %v2010 = vpop.f32.mrf.mxu0
    %2011 = vmatprep.mubr.bf16.mxu0 0
    %2012 = vmatmul.mubr.bf16.gmra.mxu0 %v1960
    %v2013 = vpop.f32.mrf.mxu0
    %v2014 = vadd.f32 0.0, %v2013
    %v2015 = vpop.f32.mrf.mxu0
    %v2016 = vpop.f32.mrf.mxu0
    %v2017 = vadd.f32 0.0, %v2016
    %v2018 = vpop.f32.mrf.mxu0
    %2019 = vmatprep.mubr.bf16.mxu0 0
    %2020 = vmatmul.mubr.bf16.gmra.mxu0 %v1963
    %v2021 = vpop.f32.mrf.mxu0
    %v2022 = vadd.f32 0.0, %v2021
    %v2023 = vpop.f32.mrf.mxu0
    %v2024 = vpop.f32.mrf.mxu0
    %v2025 = vadd.f32 0.0, %v2024
    %v2026 = vpop.f32.mrf.mxu0
    %2027 = vmatprep.mubr.bf16.mxu0 0
    %2028 = vmatmul.mubr.bf16.gmra.mxu0 %v1966
    %v2029 = vpop.f32.mrf.mxu0
    %v2030 = vadd.f32 0.0, %v2029
    %v2031 = vpop.f32.mrf.mxu0
    %v2032 = vpop.f32.mrf.mxu0
    %v2033 = vpop.f32.mrf.mxu0
    %2034 = vdwg.mxu0
    %v2035 = vpack.c.bf16 %v2009, %v2006
    %v2036 = vpack.c.bf16 %v2017, %v2014
    %v2037 = vpack.c.bf16 %v2025, %v2022
    %v2038 = vpack.c.bf16 %v2030, %v2030
    %v2043 = vunpack.c.l.b16 %v2035
    %v2044 = vunpack.c.h.b16 %v2035
    %v2045 = vunpack.c.l.b16 %v2036
    %v2046 = vunpack.c.h.b16 %v2036
    %v2047 = vunpack.c.l.b16 %v2037
    %v2048 = vunpack.c.h.b16 %v2037
    %v2049 = vunpack.c.l.b16 %v2038
    %v2050 = vpack.c.b16 %v2043, %v2043
    %v2051 = vpack.c.b16 %v2044, %v2044
    %v2052 = vpack.c.b16 %v2045, %v2045
    %v2053 = vpack.c.b16 %v2046, %v2046
    %v2054 = vpack.c.b16 %v2047, %v2047
    %v2055 = vpack.c.b16 %v2048, %v2048
    %v2056 = vpack.c.b16 %v2049, %v2049
    %2064 = vst [vmem:[#allocation2 + $0xc] sm:$0xf] %v2050
    %2065 = vst [vmem:[#allocation2 + $0x2c] sm:$0xf] %v2051
    %2066 = vst [vmem:[#allocation2 + $0x4c] sm:$0xf] %v2052
    %2067 = vst [vmem:[#allocation2 + $0x6c] sm:$0xf] %v2053
    %2068 = vst [vmem:[#allocation2 + $0x8c] sm:$0xf] %v2054
    %2069 = vst [vmem:[#allocation2 + $0xac] sm:$0xf] %v2055
    %2070 = vst [vmem:[#allocation2 + $0xcc] sm:$0xf] %v2056
    %s2071 = scalar_lea.vmem %s5, 128
    %v2072 = vld [vmem:[%s2071] sm:$0xf]
    %v2073 = vld [vmem:[%s2071 + $0x4] sm:$0xf]
    %v2074 = vld [vmem:[%s2071 + $0x8] sm:$0xf]
    %v2075 = vld [vmem:[%s2071 + $0xc] sm:$0xf]
    %v2076 = vld [vmem:[%s2071 + $0x10] sm:$0xf]
    %v2077 = vld [vmem:[%s2071 + $0x14] sm:$0xf]
    %v2078 = vld [vmem:[%s2071 + $0x18] sm:$0xf]
    %v2079 = vld [vmem:[%s2071 + $0x1c] sm:$0xf]
    %s2080 = scalar_lea.vmem %s6, 4
    %v2081 = vld [vmem:[%s2080] sm:$0x1]
    %v2083 = vlaneseq
    %v2084 = vshrl.u32 %v2083, 7
    %v2085 = vsub.s32 0, %v2084
    %v2086 = vrot.slane %v2081, %v2085
    %v2096 = vunpack.c.l.b16 %v2072
    %v2097 = vunpack.c.l.b16 %v2073
    %v2098 = vunpack.c.l.b16 %v2074
    %v2099 = vunpack.c.l.b16 %v2075
    %v2100 = vunpack.c.l.b16 %v2076
    %v2101 = vunpack.c.l.b16 %v2077
    %v2102 = vunpack.c.l.b16 %v2078
    %v2103 = vunpack.c.l.b16 %v2079
    %v2104 = vpack.c.b16 %v2097, %v2096
    %v2105 = vpack.c.b16 %v2099, %v2098
    %v2106 = vpack.c.b16 %v2101, %v2100
    %v2107 = vpack.c.b16 %v2103, %v2102
    %2112 = vmatprep.subr.bf16.mxu0 0
    %2113 = vmatpush1.bf16.msra.mxu0 0
    %2114 = vmatprep.subr.bf16.mxu0 0
    %2115 = vmatpush1.bf16.msra.mxu0 0
    %2116 = vmatprep.subr.bf16.mxu0 0
    %2117 = vmatpush1.bf16.msra.mxu0 0
    %2118 = vmatprep.subr.bf16.mxu0 0
    %2119 = vmatpush1.bf16.msra.mxu0 0
    %2120 = vmatprep.subr.bf16.mxu0 0
    %2121 = vmatpush1.bf16.msra.mxu0 %v2107
    %2122 = vmatprep.subr.bf16.mxu0 0
    %2123 = vmatpush1.bf16.msra.mxu0 %v2106
    %2124 = vmatprep.subr.bf16.mxu0 0
    %2125 = vmatpush1.bf16.msra.mxu0 %v2105
    %2126 = vmatprep.subr.bf16.mxu0 0
    %2127 = vmatpush1.bf16.msra.mxu0 %v2104
    %2128 = vmatprep.subr.bf16.mxu0 0
    %2129 = vmatpush2.bf16.msra.mxu0 0
    %2130 = vmatprep.subr.bf16.mxu0 0
    %2131 = vmatpush2.bf16.msra.mxu0 0
    %2132 = vmatprep.subr.bf16.mxu0 0
    %2133 = vmatpush2.bf16.msra.mxu0 0
    %2134 = vmatprep.subr.bf16.mxu0 0
    %2135 = vmatpush2.bf16.msra.mxu0 0
    %2136 = vmatprep.subr.bf16.mxu0 0
    %2137 = vmatpush2.bf16.msra.mxu0 0
    %2138 = vmatprep.subr.bf16.mxu0 0
    %2139 = vmatpush2.bf16.msra.mxu0 0
    %2140 = vmatprep.subr.bf16.mxu0 0
    %2141 = vmatpush2.bf16.msra.mxu0 0
    %2142 = vmatprep.subr.bf16.mxu0 0
    %2143 = vmatpush2.bf16.msra.mxu0 0
    %2144 = vmatprep.mubr.bf16.mxu0 0
    %2145 = vmatmul.mubr.bf16.gmra.mxu0 %v214
    %v2146 = vpop.f32.mrf.mxu0
    %v2147 = vadd.f32 %v2086, %v2146
    %v2148 = vpop.f32.mrf.mxu0
    %v2149 = vpop.f32.mrf.mxu0
    %v2150 = vadd.f32 %v2086, %v2149
    %v2151 = vpop.f32.mrf.mxu0
    %2152 = vmatprep.mubr.bf16.mxu0 0
    %2153 = vmatmul.mubr.bf16.gmra.mxu0 %v217
    %v2154 = vpop.f32.mrf.mxu0
    %v2155 = vadd.f32 %v2086, %v2154
    %v2156 = vpop.f32.mrf.mxu0
    %v2157 = vpop.f32.mrf.mxu0
    %v2158 = vadd.f32 %v2086, %v2157
    %v2159 = vpop.f32.mrf.mxu0
    %2160 = vmatprep.mubr.bf16.mxu0 0
    %2161 = vmatmul.mubr.bf16.gmra.mxu0 %v220
    %v2162 = vpop.f32.mrf.mxu0
    %v2163 = vadd.f32 %v2086, %v2162
    %v2164 = vpop.f32.mrf.mxu0
    %v2165 = vpop.f32.mrf.mxu0
    %v2166 = vadd.f32 %v2086, %v2165
    %v2167 = vpop.f32.mrf.mxu0
    %2168 = vmatprep.mubr.bf16.mxu0 0
    %2169 = vmatmul.mubr.bf16.gmra.mxu0 %v223
    %v2170 = vpop.f32.mrf.mxu0
    %v2171 = vadd.f32 %v2086, %v2170
    %v2172 = vpop.f32.mrf.mxu0
    %v2173 = vpop.f32.mrf.mxu0
    %v2174 = vpop.f32.mrf.mxu0
    %2175 = vdwg.mxu0
    %v2176 = vpack.c.bf16 %v2150, %v2147
    %v2177 = vpack.c.bf16 %v2158, %v2155
    %v2178 = vpack.c.bf16 %v2166, %v2163
    %v2179 = vpack.c.bf16 %v2171, %v2171
    %s2180 = scalar_lea.vmem %s7, 112
    %v2181 = vld [vmem:[%s2180] sm:$0xf]
    %v2182 = vld [vmem:[%s2180 + $0x4] sm:$0xf]
    %v2183 = vld [vmem:[%s2180 + $0x8] sm:$0xf]
    %v2184 = vld [vmem:[%s2180 + $0xc] sm:$0xf]
    %v2185 = vld [vmem:[%s2180 + $0x10] sm:$0xf]
    %v2186 = vld [vmem:[%s2180 + $0x14] sm:$0xf]
    %v2187 = vld [vmem:[%s2180 + $0x18] sm:$0xf]
    %v2188 = vunpack.c.l.bf16 %v2181
    %v2189 = vunpack.c.l.bf16 %v2182
    %v2190 = vunpack.c.l.bf16 %v2183
    %v2191 = vunpack.c.l.bf16 %v2184
    %v2192 = vunpack.c.l.bf16 %v2185
    %v2193 = vunpack.c.l.bf16 %v2186
    %v2194 = vunpack.c.l.bf16 %v2187
    %v2196 = vsel %vm504, %v368, 0
    %v2199 = vsel %vm504, %v372, 0
    %v2202 = vsel %vm504, %v376, 0
    %v2205 = vsel %vm504, %v380, 0
    %v2208 = vsel %vm504, %v370, 0
    %v2211 = vsel %vm504, %v374, 0
    %v2214 = vsel %vm504, %v378, 0
    %v2217 = vsel %vm504, %v382, 0
    %2219 = vmatprep.subr.bf16.mxu0 0
    %2220 = vmatpush1.bf16.xpose.msra.mxu0 0
    %2221 = vmatprep.subr.bf16.mxu0 0
    %2222 = vmatpush1.bf16.xpose.msra.mxu0 0
    %2223 = vmatprep.subr.bf16.mxu0 0
    %2224 = vmatpush1.bf16.xpose.msra.mxu0 0
    %2225 = vmatprep.subr.bf16.mxu0 0
    %2226 = vmatpush1.bf16.xpose.msra.mxu0 0
    %2227 = vmatprep.subr.bf16.mxu0 0
    %2228 = vmatpush1.bf16.xpose.msra.mxu0 %v2217
    %2229 = vmatprep.subr.bf16.mxu0 0
    %2230 = vmatpush1.bf16.xpose.msra.mxu0 %v2214
    %2231 = vmatprep.subr.bf16.mxu0 0
    %2232 = vmatpush1.bf16.xpose.msra.mxu0 %v2211
    %2233 = vmatprep.subr.bf16.mxu0 0
    %2234 = vmatpush1.bf16.xpose.msra.mxu0 %v2208
    %2235 = vmatprep.subr.bf16.mxu0 0
    %2236 = vmatpush2.bf16.xpose.msra.mxu0 0
    %2237 = vmatprep.subr.bf16.mxu0 0
    %2238 = vmatpush2.bf16.xpose.msra.mxu0 0
    %2239 = vmatprep.subr.bf16.mxu0 0
    %2240 = vmatpush2.bf16.xpose.msra.mxu0 0
    %2241 = vmatprep.subr.bf16.mxu0 0
    %2242 = vmatpush2.bf16.xpose.msra.mxu0 0
    %2243 = vmatprep.subr.bf16.mxu0 0
    %2244 = vmatpush2.bf16.xpose.msra.mxu0 0
    %2245 = vmatprep.subr.bf16.mxu0 0
    %2246 = vmatpush2.bf16.xpose.msra.mxu0 0
    %2247 = vmatprep.subr.bf16.mxu0 0
    %2248 = vmatpush2.bf16.xpose.msra.mxu0 0
    %2249 = vmatprep.subr.bf16.mxu0 0
    %2250 = vmatpush2.bf16.xpose.msra.mxu0 0
    %2251 = vmatprep.mubr.bf16.mxu0 0
    %2252 = vmatmul.mubr.bf16.gmra.mxu0 %v2196
    %v2253 = vpop.f32.mrf.mxu0
    %v2254 = vadd.f32 %v2188, %v2253
    %v2255 = vpop.f32.mrf.mxu0
    %v2256 = vpop.f32.mrf.mxu0
    %v2257 = vadd.f32 %v2189, %v2256
    %v2258 = vpop.f32.mrf.mxu0
    %2259 = vmatprep.mubr.bf16.mxu0 0
    %2260 = vmatmul.mubr.bf16.gmra.mxu0 %v2199
    %v2261 = vpop.f32.mrf.mxu0
    %v2262 = vadd.f32 %v2190, %v2261
    %v2263 = vpop.f32.mrf.mxu0
    %v2264 = vpop.f32.mrf.mxu0
    %v2265 = vadd.f32 %v2191, %v2264
    %v2266 = vpop.f32.mrf.mxu0
    %2267 = vmatprep.mubr.bf16.mxu0 0
    %2268 = vmatmul.mubr.bf16.gmra.mxu0 %v2202
    %v2269 = vpop.f32.mrf.mxu0
    %v2270 = vadd.f32 %v2192, %v2269
    %v2271 = vpop.f32.mrf.mxu0
    %v2272 = vpop.f32.mrf.mxu0
    %v2273 = vadd.f32 %v2193, %v2272
    %v2274 = vpop.f32.mrf.mxu0
    %2275 = vmatprep.mubr.bf16.mxu0 0
    %2276 = vmatmul.mubr.bf16.gmra.mxu0 %v2205
    %v2277 = vpop.f32.mrf.mxu0
    %v2278 = vadd.f32 %v2194, %v2277
    %v2279 = vpop.f32.mrf.mxu0
    %v2280 = vpop.f32.mrf.mxu0
    %v2281 = vpop.f32.mrf.mxu0
    %2282 = vdwg.mxu0
    %v2283 = vsel %vm593, %v2254, -inf
    %2284 = vmax.xlane.f32.xlu0 %v2283
    %v2285 = vpop.xlane.xlu0 %2284
    %v2286 = vsel %vm593, %v2257, -inf
    %2287 = vmax.xlane.f32.xlu0 %v2286
    %v2288 = vpop.xlane.xlu0 %2287
    %v2289 = vsel %vm593, %v2262, -inf
    %2290 = vmax.xlane.f32.xlu0 %v2289
    %v2291 = vpop.xlane.xlu0 %2290
    %v2292 = vsel %vm593, %v2265, -inf
    %2293 = vmax.xlane.f32.xlu0 %v2292
    %v2294 = vpop.xlane.xlu0 %2293
    %v2295 = vsel %vm593, %v2270, -inf
    %2296 = vmax.xlane.f32.xlu0 %v2295
    %v2297 = vpop.xlane.xlu0 %2296
    %v2298 = vsel %vm593, %v2273, -inf
    %2299 = vmax.xlane.f32.xlu0 %v2298
    %v2300 = vpop.xlane.xlu0 %2299
    %v2301 = vsel %vm593, %v2278, -inf
    %2302 = vmax.xlane.f32.xlu0 %v2301
    %v2303 = vpop.xlane.xlu0 %2302
    %v2304 = vsub.f32 %v2254, %v2285
    %v2305 = vsub.f32 %v2257, %v2288
    %v2306 = vsub.f32 %v2262, %v2291
    %v2307 = vsub.f32 %v2265, %v2294
    %v2308 = vsub.f32 %v2270, %v2297
    %v2309 = vsub.f32 %v2273, %v2300
    %v2310 = vsub.f32 %v2278, %v2303
    %v2311 = vmul.f32 %v2304, 1.442695
    %v2312 = vpow.pop %v2311
    %v2313 = vmul.f32 %v2305, 1.442695
    %v2314 = vpow.pop %v2313
    %v2315 = vmul.f32 %v2306, 1.442695
    %v2316 = vpow.pop %v2315
    %v2317 = vmul.f32 %v2307, 1.442695
    %v2318 = vpow.pop %v2317
    %v2319 = vmul.f32 %v2308, 1.442695
    %v2320 = vpow.pop %v2319
    %v2321 = vmul.f32 %v2309, 1.442695
    %v2322 = vpow.pop %v2321
    %v2323 = vmul.f32 %v2310, 1.442695
    %v2324 = vpow.pop %v2323
    %v2325 = vsel %vm593, %v2312, 0.0
    %2326 = vadd.xlane.f32.xlu0 %v2325
    %v2327 = vpop.xlane.xlu0 %2326
    %v2328 = vsel %vm593, %v2314, 0.0
    %2329 = vadd.xlane.f32.xlu0 %v2328
    %v2330 = vpop.xlane.xlu0 %2329
    %v2331 = vsel %vm593, %v2316, 0.0
    %2332 = vadd.xlane.f32.xlu0 %v2331
    %v2333 = vpop.xlane.xlu0 %2332
    %v2334 = vsel %vm593, %v2318, 0.0
    %2335 = vadd.xlane.f32.xlu0 %v2334
    %v2336 = vpop.xlane.xlu0 %2335
    %v2337 = vsel %vm593, %v2320, 0.0
    %2338 = vadd.xlane.f32.xlu0 %v2337
    %v2339 = vpop.xlane.xlu0 %2338
    %v2340 = vsel %vm593, %v2322, 0.0
    %2341 = vadd.xlane.f32.xlu0 %v2340
    %v2342 = vpop.xlane.xlu0 %2341
    %v2343 = vsel %vm593, %v2324, 0.0
    %2344 = vadd.xlane.f32.xlu0 %v2343
    %v2345 = vpop.xlane.xlu0 %2344
    %v2346 = vrcp.pop %v2327
    %v2347 = vrcp.pop %v2330
    %v2348 = vrcp.pop %v2333
    %v2349 = vrcp.pop %v2336
    %v2350 = vrcp.pop %v2339
    %v2351 = vrcp.pop %v2342
    %v2352 = vrcp.pop %v2345
    %v2353 = vmul.f32 %v2312, %v2346
    %v2354 = vmul.f32 %v2314, %v2347
    %v2355 = vmul.f32 %v2316, %v2348
    %v2356 = vmul.f32 %v2318, %v2349
    %v2357 = vmul.f32 %v2320, %v2350
    %v2358 = vmul.f32 %v2322, %v2351
    %v2359 = vmul.f32 %v2324, %v2352
    %v2360 = vpack.c.bf16 %v2354, %v2353
    %v2361 = vpack.c.bf16 %v2356, %v2355
    %v2362 = vpack.c.bf16 %v2358, %v2357
    %v2363 = vpack.c.bf16 %v2359, %v2359
    %v2365 = vsel %vm593, %v2360, 0
    %v2368 = vsel %vm593, %v2361, 0
    %v2371 = vsel %vm593, %v2362, 0
    %v2374 = vsel %vm593, %v2363, 0
    %v2377 = vsel %vm687, %v2179, 0
    %2379 = vmatprep.subr.bf16.mxu0 0
    %2380 = vmatpush1.bf16.msra.mxu0 0
    %2381 = vmatprep.subr.bf16.mxu0 0
    %2382 = vmatpush1.bf16.msra.mxu0 0
    %2383 = vmatprep.subr.bf16.mxu0 0
    %2384 = vmatpush1.bf16.msra.mxu0 0
    %2385 = vmatprep.subr.bf16.mxu0 0
    %2386 = vmatpush1.bf16.msra.mxu0 0
    %2387 = vmatprep.subr.bf16.mxu0 0
    %2388 = vmatpush1.bf16.msra.mxu0 %v2377
    %2389 = vmatprep.subr.bf16.mxu0 0
    %2390 = vmatpush1.bf16.msra.mxu0 %v2178
    %2391 = vmatprep.subr.bf16.mxu0 0
    %2392 = vmatpush1.bf16.msra.mxu0 %v2177
    %2393 = vmatprep.subr.bf16.mxu0 0
    %2394 = vmatpush1.bf16.msra.mxu0 %v2176
    %2395 = vmatprep.subr.bf16.mxu0 0
    %2396 = vmatpush2.bf16.msra.mxu0 0
    %2397 = vmatprep.subr.bf16.mxu0 0
    %2398 = vmatpush2.bf16.msra.mxu0 0
    %2399 = vmatprep.subr.bf16.mxu0 0
    %2400 = vmatpush2.bf16.msra.mxu0 0
    %2401 = vmatprep.subr.bf16.mxu0 0
    %2402 = vmatpush2.bf16.msra.mxu0 0
    %2403 = vmatprep.subr.bf16.mxu0 0
    %2404 = vmatpush2.bf16.msra.mxu0 0
    %2405 = vmatprep.subr.bf16.mxu0 0
    %2406 = vmatpush2.bf16.msra.mxu0 0
    %2407 = vmatprep.subr.bf16.mxu0 0
    %2408 = vmatpush2.bf16.msra.mxu0 0
    %2409 = vmatprep.subr.bf16.mxu0 0
    %2410 = vmatpush2.bf16.msra.mxu0 0
    %2411 = vmatprep.mubr.bf16.mxu0 0
    %2412 = vmatmul.mubr.bf16.gmra.mxu0 %v2365
    %v2413 = vpop.f32.mrf.mxu0
    %v2414 = vadd.f32 0.0, %v2413
    %v2415 = vpop.f32.mrf.mxu0
    %v2416 = vpop.f32.mrf.mxu0
    %v2417 = vadd.f32 0.0, %v2416
    %v2418 = vpop.f32.mrf.mxu0
    %2419 = vmatprep.mubr.bf16.mxu0 0
    %2420 = vmatmul.mubr.bf16.gmra.mxu0 %v2368
    %v2421 = vpop.f32.mrf.mxu0
    %v2422 = vadd.f32 0.0, %v2421
    %v2423 = vpop.f32.mrf.mxu0
    %v2424 = vpop.f32.mrf.mxu0
    %v2425 = vadd.f32 0.0, %v2424
    %v2426 = vpop.f32.mrf.mxu0
    %2427 = vmatprep.mubr.bf16.mxu0 0
    %2428 = vmatmul.mubr.bf16.gmra.mxu0 %v2371
    %v2429 = vpop.f32.mrf.mxu0
    %v2430 = vadd.f32 0.0, %v2429
    %v2431 = vpop.f32.mrf.mxu0
    %v2432 = vpop.f32.mrf.mxu0
    %v2433 = vadd.f32 0.0, %v2432
    %v2434 = vpop.f32.mrf.mxu0
    %2435 = vmatprep.mubr.bf16.mxu0 0
    %2436 = vmatmul.mubr.bf16.gmra.mxu0 %v2374
    %v2437 = vpop.f32.mrf.mxu0
    %v2438 = vadd.f32 0.0, %v2437
    %v2439 = vpop.f32.mrf.mxu0
    %v2440 = vpop.f32.mrf.mxu0
    %v2441 = vpop.f32.mrf.mxu0
    %2442 = vdwg.mxu0
    %v2443 = vpack.c.bf16 %v2417, %v2414
    %v2444 = vpack.c.bf16 %v2425, %v2422
    %v2445 = vpack.c.bf16 %v2433, %v2430
    %v2446 = vpack.c.bf16 %v2438, %v2438
    %v2451 = vunpack.c.l.b16 %v2443
    %v2452 = vunpack.c.h.b16 %v2443
    %v2453 = vunpack.c.l.b16 %v2444
    %v2454 = vunpack.c.h.b16 %v2444
    %v2455 = vunpack.c.l.b16 %v2445
    %v2456 = vunpack.c.h.b16 %v2445
    %v2457 = vunpack.c.l.b16 %v2446
    %v2458 = vpack.c.b16 %v2451, %v2451
    %v2459 = vpack.c.b16 %v2452, %v2452
    %v2460 = vpack.c.b16 %v2453, %v2453
    %v2461 = vpack.c.b16 %v2454, %v2454
    %v2462 = vpack.c.b16 %v2455, %v2455
    %v2463 = vpack.c.b16 %v2456, %v2456
    %v2464 = vpack.c.b16 %v2457, %v2457
    %2472 = vst [vmem:[#allocation2 + $0x10] sm:$0xf] %v2458
    %2473 = vst [vmem:[#allocation2 + $0x30] sm:$0xf] %v2459
    %2474 = vst [vmem:[#allocation2 + $0x50] sm:$0xf] %v2460
    %2475 = vst [vmem:[#allocation2 + $0x70] sm:$0xf] %v2461
    %2476 = vst [vmem:[#allocation2 + $0x90] sm:$0xf] %v2462
    %2477 = vst [vmem:[#allocation2 + $0xb0] sm:$0xf] %v2463
    %2478 = vst [vmem:[#allocation2 + $0xd0] sm:$0xf] %v2464
    %s2479 = scalar_lea.vmem %s5, 160
    %v2480 = vld [vmem:[%s2479] sm:$0xf]
    %v2481 = vld [vmem:[%s2479 + $0x4] sm:$0xf]
    %v2482 = vld [vmem:[%s2479 + $0x8] sm:$0xf]
    %v2483 = vld [vmem:[%s2479 + $0xc] sm:$0xf]
    %v2484 = vld [vmem:[%s2479 + $0x10] sm:$0xf]
    %v2485 = vld [vmem:[%s2479 + $0x14] sm:$0xf]
    %v2486 = vld [vmem:[%s2479 + $0x18] sm:$0xf]
    %v2487 = vld [vmem:[%s2479 + $0x1c] sm:$0xf]
    %s2488 = scalar_lea.vmem %s6, 5
    %v2489 = vld [vmem:[%s2488] sm:$0x1]
    %v2491 = vlaneseq
    %v2492 = vshrl.u32 %v2491, 7
    %v2493 = vsub.s32 0, %v2492
    %v2494 = vrot.slane %v2489, %v2493
    %v2504 = vunpack.c.l.b16 %v2480
    %v2505 = vunpack.c.l.b16 %v2481
    %v2506 = vunpack.c.l.b16 %v2482
    %v2507 = vunpack.c.l.b16 %v2483
    %v2508 = vunpack.c.l.b16 %v2484
    %v2509 = vunpack.c.l.b16 %v2485
    %v2510 = vunpack.c.l.b16 %v2486
    %v2511 = vunpack.c.l.b16 %v2487
    %v2512 = vpack.c.b16 %v2505, %v2504
    %v2513 = vpack.c.b16 %v2507, %v2506
    %v2514 = vpack.c.b16 %v2509, %v2508
    %v2515 = vpack.c.b16 %v2511, %v2510
    %2520 = vmatprep.subr.bf16.mxu0 0
    %2521 = vmatpush1.bf16.msra.mxu0 0
    %2522 = vmatprep.subr.bf16.mxu0 0
    %2523 = vmatpush1.bf16.msra.mxu0 0
    %2524 = vmatprep.subr.bf16.mxu0 0
    %2525 = vmatpush1.bf16.msra.mxu0 0
    %2526 = vmatprep.subr.bf16.mxu0 0
    %2527 = vmatpush1.bf16.msra.mxu0 0
    %2528 = vmatprep.subr.bf16.mxu0 0
    %2529 = vmatpush1.bf16.msra.mxu0 %v2515
    %2530 = vmatprep.subr.bf16.mxu0 0
    %2531 = vmatpush1.bf16.msra.mxu0 %v2514
    %2532 = vmatprep.subr.bf16.mxu0 0
    %2533 = vmatpush1.bf16.msra.mxu0 %v2513
    %2534 = vmatprep.subr.bf16.mxu0 0
    %2535 = vmatpush1.bf16.msra.mxu0 %v2512
    %2536 = vmatprep.subr.bf16.mxu0 0
    %2537 = vmatpush2.bf16.msra.mxu0 0
    %2538 = vmatprep.subr.bf16.mxu0 0
    %2539 = vmatpush2.bf16.msra.mxu0 0
    %2540 = vmatprep.subr.bf16.mxu0 0
    %2541 = vmatpush2.bf16.msra.mxu0 0
    %2542 = vmatprep.subr.bf16.mxu0 0
    %2543 = vmatpush2.bf16.msra.mxu0 0
    %2544 = vmatprep.subr.bf16.mxu0 0
    %2545 = vmatpush2.bf16.msra.mxu0 0
    %2546 = vmatprep.subr.bf16.mxu0 0
    %2547 = vmatpush2.bf16.msra.mxu0 0
    %2548 = vmatprep.subr.bf16.mxu0 0
    %2549 = vmatpush2.bf16.msra.mxu0 0
    %2550 = vmatprep.subr.bf16.mxu0 0
    %2551 = vmatpush2.bf16.msra.mxu0 0
    %2552 = vmatprep.mubr.bf16.mxu0 0
    %2553 = vmatmul.mubr.bf16.gmra.mxu0 %v214
    %v2554 = vpop.f32.mrf.mxu0
    %v2555 = vadd.f32 %v2494, %v2554
    %v2556 = vpop.f32.mrf.mxu0
    %v2557 = vpop.f32.mrf.mxu0
    %v2558 = vadd.f32 %v2494, %v2557
    %v2559 = vpop.f32.mrf.mxu0
    %2560 = vmatprep.mubr.bf16.mxu0 0
    %2561 = vmatmul.mubr.bf16.gmra.mxu0 %v217
    %v2562 = vpop.f32.mrf.mxu0
    %v2563 = vadd.f32 %v2494, %v2562
    %v2564 = vpop.f32.mrf.mxu0
    %v2565 = vpop.f32.mrf.mxu0
    %v2566 = vadd.f32 %v2494, %v2565
    %v2567 = vpop.f32.mrf.mxu0
    %2568 = vmatprep.mubr.bf16.mxu0 0
    %2569 = vmatmul.mubr.bf16.gmra.mxu0 %v220
    %v2570 = vpop.f32.mrf.mxu0
    %v2571 = vadd.f32 %v2494, %v2570
    %v2572 = vpop.f32.mrf.mxu0
    %v2573 = vpop.f32.mrf.mxu0
    %v2574 = vadd.f32 %v2494, %v2573
    %v2575 = vpop.f32.mrf.mxu0
    %2576 = vmatprep.mubr.bf16.mxu0 0
    %2577 = vmatmul.mubr.bf16.gmra.mxu0 %v223
    %v2578 = vpop.f32.mrf.mxu0
    %v2579 = vadd.f32 %v2494, %v2578
    %v2580 = vpop.f32.mrf.mxu0
    %v2581 = vpop.f32.mrf.mxu0
    %v2582 = vpop.f32.mrf.mxu0
    %2583 = vdwg.mxu0
    %v2584 = vpack.c.bf16 %v2558, %v2555
    %v2585 = vpack.c.bf16 %v2566, %v2563
    %v2586 = vpack.c.bf16 %v2574, %v2571
    %v2587 = vpack.c.bf16 %v2579, %v2579
    %s2588 = scalar_lea.vmem %s7, 140
    %v2589 = vld [vmem:[%s2588] sm:$0xf]
    %v2590 = vld [vmem:[%s2588 + $0x4] sm:$0xf]
    %v2591 = vld [vmem:[%s2588 + $0x8] sm:$0xf]
    %v2592 = vld [vmem:[%s2588 + $0xc] sm:$0xf]
    %v2593 = vld [vmem:[%s2588 + $0x10] sm:$0xf]
    %v2594 = vld [vmem:[%s2588 + $0x14] sm:$0xf]
    %v2595 = vld [vmem:[%s2588 + $0x18] sm:$0xf]
    %v2596 = vunpack.c.l.bf16 %v2589
    %v2597 = vunpack.c.l.bf16 %v2590
    %v2598 = vunpack.c.l.bf16 %v2591
    %v2599 = vunpack.c.l.bf16 %v2592
    %v2600 = vunpack.c.l.bf16 %v2593
    %v2601 = vunpack.c.l.bf16 %v2594
    %v2602 = vunpack.c.l.bf16 %v2595
    %2607 = vrot.lane.b32.xlu0 %v368, 96
    %v2608 = vpop.permute.xlu0 %2607
    %2609 = vrot.lane.b32.xlu0 %v372, 96
    %v2610 = vpop.permute.xlu0 %2609
    %2611 = vrot.lane.b32.xlu0 %v376, 96
    %v2612 = vpop.permute.xlu0 %2611
    %2613 = vrot.lane.b32.xlu0 %v380, 96
    %v2614 = vpop.permute.xlu0 %2613
    %2619 = vrot.lane.b32.xlu0 %v370, 96
    %v2620 = vpop.permute.xlu0 %2619
    %2621 = vrot.lane.b32.xlu0 %v374, 96
    %v2622 = vpop.permute.xlu0 %2621
    %2623 = vrot.lane.b32.xlu0 %v378, 96
    %v2624 = vpop.permute.xlu0 %2623
    %2625 = vrot.lane.b32.xlu0 %v382, 96
    %v2626 = vpop.permute.xlu0 %2625
    %v2628 = vsel %vm504, %v2608, 0
    %v2631 = vsel %vm504, %v2610, 0
    %v2634 = vsel %vm504, %v2612, 0
    %v2637 = vsel %vm504, %v2614, 0
    %v2640 = vsel %vm504, %v2620, 0
    %v2643 = vsel %vm504, %v2622, 0
    %v2646 = vsel %vm504, %v2624, 0
    %v2649 = vsel %vm504, %v2626, 0
    %2651 = vmatprep.subr.bf16.mxu0 0
    %2652 = vmatpush1.bf16.xpose.msra.mxu0 0
    %2653 = vmatprep.subr.bf16.mxu0 0
    %2654 = vmatpush1.bf16.xpose.msra.mxu0 0
    %2655 = vmatprep.subr.bf16.mxu0 0
    %2656 = vmatpush1.bf16.xpose.msra.mxu0 0
    %2657 = vmatprep.subr.bf16.mxu0 0
    %2658 = vmatpush1.bf16.xpose.msra.mxu0 0
    %2659 = vmatprep.subr.bf16.mxu0 0
    %2660 = vmatpush1.bf16.xpose.msra.mxu0 %v2649
    %2661 = vmatprep.subr.bf16.mxu0 0
    %2662 = vmatpush1.bf16.xpose.msra.mxu0 %v2646
    %2663 = vmatprep.subr.bf16.mxu0 0
    %2664 = vmatpush1.bf16.xpose.msra.mxu0 %v2643
    %2665 = vmatprep.subr.bf16.mxu0 0
    %2666 = vmatpush1.bf16.xpose.msra.mxu0 %v2640
    %2667 = vmatprep.subr.bf16.mxu0 0
    %2668 = vmatpush2.bf16.xpose.msra.mxu0 0
    %2669 = vmatprep.subr.bf16.mxu0 0
    %2670 = vmatpush2.bf16.xpose.msra.mxu0 0
    %2671 = vmatprep.subr.bf16.mxu0 0
    %2672 = vmatpush2.bf16.xpose.msra.mxu0 0
    %2673 = vmatprep.subr.bf16.mxu0 0
    %2674 = vmatpush2.bf16.xpose.msra.mxu0 0
    %2675 = vmatprep.subr.bf16.mxu0 0
    %2676 = vmatpush2.bf16.xpose.msra.mxu0 0
    %2677 = vmatprep.subr.bf16.mxu0 0
    %2678 = vmatpush2.bf16.xpose.msra.mxu0 0
    %2679 = vmatprep.subr.bf16.mxu0 0
    %2680 = vmatpush2.bf16.xpose.msra.mxu0 0
    %2681 = vmatprep.subr.bf16.mxu0 0
    %2682 = vmatpush2.bf16.xpose.msra.mxu0 0
    %2683 = vmatprep.mubr.bf16.mxu0 0
    %2684 = vmatmul.mubr.bf16.gmra.mxu0 %v2628
    %v2685 = vpop.f32.mrf.mxu0
    %v2686 = vadd.f32 %v2596, %v2685
    %v2687 = vpop.f32.mrf.mxu0
    %v2688 = vpop.f32.mrf.mxu0
    %v2689 = vadd.f32 %v2597, %v2688
    %v2690 = vpop.f32.mrf.mxu0
    %2691 = vmatprep.mubr.bf16.mxu0 0
    %2692 = vmatmul.mubr.bf16.gmra.mxu0 %v2631
    %v2693 = vpop.f32.mrf.mxu0
    %v2694 = vadd.f32 %v2598, %v2693
    %v2695 = vpop.f32.mrf.mxu0
    %v2696 = vpop.f32.mrf.mxu0
    %v2697 = vadd.f32 %v2599, %v2696
    %v2698 = vpop.f32.mrf.mxu0
    %2699 = vmatprep.mubr.bf16.mxu0 0
    %2700 = vmatmul.mubr.bf16.gmra.mxu0 %v2634
    %v2701 = vpop.f32.mrf.mxu0
    %v2702 = vadd.f32 %v2600, %v2701
    %v2703 = vpop.f32.mrf.mxu0
    %v2704 = vpop.f32.mrf.mxu0
    %v2705 = vadd.f32 %v2601, %v2704
    %v2706 = vpop.f32.mrf.mxu0
    %2707 = vmatprep.mubr.bf16.mxu0 0
    %2708 = vmatmul.mubr.bf16.gmra.mxu0 %v2637
    %v2709 = vpop.f32.mrf.mxu0
    %v2710 = vadd.f32 %v2602, %v2709
    %v2711 = vpop.f32.mrf.mxu0
    %v2712 = vpop.f32.mrf.mxu0
    %v2713 = vpop.f32.mrf.mxu0
    %2714 = vdwg.mxu0
    %v2715 = vsel %vm593, %v2686, -inf
    %2716 = vmax.xlane.f32.xlu0 %v2715
    %v2717 = vpop.xlane.xlu0 %2716
    %v2718 = vsel %vm593, %v2689, -inf
    %2719 = vmax.xlane.f32.xlu0 %v2718
    %v2720 = vpop.xlane.xlu0 %2719
    %v2721 = vsel %vm593, %v2694, -inf
    %2722 = vmax.xlane.f32.xlu0 %v2721
    %v2723 = vpop.xlane.xlu0 %2722
    %v2724 = vsel %vm593, %v2697, -inf
    %2725 = vmax.xlane.f32.xlu0 %v2724
    %v2726 = vpop.xlane.xlu0 %2725
    %v2727 = vsel %vm593, %v2702, -inf
    %2728 = vmax.xlane.f32.xlu0 %v2727
    %v2729 = vpop.xlane.xlu0 %2728
    %v2730 = vsel %vm593, %v2705, -inf
    %2731 = vmax.xlane.f32.xlu0 %v2730
    %v2732 = vpop.xlane.xlu0 %2731
    %v2733 = vsel %vm593, %v2710, -inf
    %2734 = vmax.xlane.f32.xlu0 %v2733
    %v2735 = vpop.xlane.xlu0 %2734
    %v2736 = vsub.f32 %v2686, %v2717
    %v2737 = vsub.f32 %v2689, %v2720
    %v2738 = vsub.f32 %v2694, %v2723
    %v2739 = vsub.f32 %v2697, %v2726
    %v2740 = vsub.f32 %v2702, %v2729
    %v2741 = vsub.f32 %v2705, %v2732
    %v2742 = vsub.f32 %v2710, %v2735
    %v2743 = vmul.f32 %v2736, 1.442695
    %v2744 = vpow.pop %v2743
    %v2745 = vmul.f32 %v2737, 1.442695
    %v2746 = vpow.pop %v2745
    %v2747 = vmul.f32 %v2738, 1.442695
    %v2748 = vpow.pop %v2747
    %v2749 = vmul.f32 %v2739, 1.442695
    %v2750 = vpow.pop %v2749
    %v2751 = vmul.f32 %v2740, 1.442695
    %v2752 = vpow.pop %v2751
    %v2753 = vmul.f32 %v2741, 1.442695
    %v2754 = vpow.pop %v2753
    %v2755 = vmul.f32 %v2742, 1.442695
    %v2756 = vpow.pop %v2755
    %v2757 = vsel %vm593, %v2744, 0.0
    %2758 = vadd.xlane.f32.xlu0 %v2757
    %v2759 = vpop.xlane.xlu0 %2758
    %v2760 = vsel %vm593, %v2746, 0.0
    %2761 = vadd.xlane.f32.xlu0 %v2760
    %v2762 = vpop.xlane.xlu0 %2761
    %v2763 = vsel %vm593, %v2748, 0.0
    %2764 = vadd.xlane.f32.xlu0 %v2763
    %v2765 = vpop.xlane.xlu0 %2764
    %v2766 = vsel %vm593, %v2750, 0.0
    %2767 = vadd.xlane.f32.xlu0 %v2766
    %v2768 = vpop.xlane.xlu0 %2767
    %v2769 = vsel %vm593, %v2752, 0.0
    %2770 = vadd.xlane.f32.xlu0 %v2769
    %v2771 = vpop.xlane.xlu0 %2770
    %v2772 = vsel %vm593, %v2754, 0.0
    %2773 = vadd.xlane.f32.xlu0 %v2772
    %v2774 = vpop.xlane.xlu0 %2773
    %v2775 = vsel %vm593, %v2756, 0.0
    %2776 = vadd.xlane.f32.xlu0 %v2775
    %v2777 = vpop.xlane.xlu0 %2776
    %v2778 = vrcp.pop %v2759
    %v2779 = vrcp.pop %v2762
    %v2780 = vrcp.pop %v2765
    %v2781 = vrcp.pop %v2768
    %v2782 = vrcp.pop %v2771
    %v2783 = vrcp.pop %v2774
    %v2784 = vrcp.pop %v2777
    %v2785 = vmul.f32 %v2744, %v2778
    %v2786 = vmul.f32 %v2746, %v2779
    %v2787 = vmul.f32 %v2748, %v2780
    %v2788 = vmul.f32 %v2750, %v2781
    %v2789 = vmul.f32 %v2752, %v2782
    %v2790 = vmul.f32 %v2754, %v2783
    %v2791 = vmul.f32 %v2756, %v2784
    %v2792 = vpack.c.bf16 %v2786, %v2785
    %v2793 = vpack.c.bf16 %v2788, %v2787
    %v2794 = vpack.c.bf16 %v2790, %v2789
    %v2795 = vpack.c.bf16 %v2791, %v2791
    %v2797 = vsel %vm593, %v2792, 0
    %v2800 = vsel %vm593, %v2793, 0
    %v2803 = vsel %vm593, %v2794, 0
    %v2806 = vsel %vm593, %v2795, 0
    %v2809 = vsel %vm687, %v2587, 0
    %2811 = vmatprep.subr.bf16.mxu0 0
    %2812 = vmatpush1.bf16.msra.mxu0 0
    %2813 = vmatprep.subr.bf16.mxu0 0
    %2814 = vmatpush1.bf16.msra.mxu0 0
    %2815 = vmatprep.subr.bf16.mxu0 0
    %2816 = vmatpush1.bf16.msra.mxu0 0
    %2817 = vmatprep.subr.bf16.mxu0 0
    %2818 = vmatpush1.bf16.msra.mxu0 0
    %2819 = vmatprep.subr.bf16.mxu0 0
    %2820 = vmatpush1.bf16.msra.mxu0 %v2809
    %2821 = vmatprep.subr.bf16.mxu0 0
    %2822 = vmatpush1.bf16.msra.mxu0 %v2586
    %2823 = vmatprep.subr.bf16.mxu0 0
    %2824 = vmatpush1.bf16.msra.mxu0 %v2585
    %2825 = vmatprep.subr.bf16.mxu0 0
    %2826 = vmatpush1.bf16.msra.mxu0 %v2584
    %2827 = vmatprep.subr.bf16.mxu0 0
    %2828 = vmatpush2.bf16.msra.mxu0 0
    %2829 = vmatprep.subr.bf16.mxu0 0
    %2830 = vmatpush2.bf16.msra.mxu0 0
    %2831 = vmatprep.subr.bf16.mxu0 0
    %2832 = vmatpush2.bf16.msra.mxu0 0
    %2833 = vmatprep.subr.bf16.mxu0 0
    %2834 = vmatpush2.bf16.msra.mxu0 0
    %2835 = vmatprep.subr.bf16.mxu0 0
    %2836 = vmatpush2.bf16.msra.mxu0 0
    %2837 = vmatprep.subr.bf16.mxu0 0
    %2838 = vmatpush2.bf16.msra.mxu0 0
    %2839 = vmatprep.subr.bf16.mxu0 0
    %2840 = vmatpush2.bf16.msra.mxu0 0
    %2841 = vmatprep.subr.bf16.mxu0 0
    %2842 = vmatpush2.bf16.msra.mxu0 0
    %2843 = vmatprep.mubr.bf16.mxu0 0
    %2844 = vmatmul.mubr.bf16.gmra.mxu0 %v2797
    %v2845 = vpop.f32.mrf.mxu0
    %v2846 = vadd.f32 0.0, %v2845
    %v2847 = vpop.f32.mrf.mxu0
    %v2848 = vpop.f32.mrf.mxu0
    %v2849 = vadd.f32 0.0, %v2848
    %v2850 = vpop.f32.mrf.mxu0
    %2851 = vmatprep.mubr.bf16.mxu0 0
    %2852 = vmatmul.mubr.bf16.gmra.mxu0 %v2800
    %v2853 = vpop.f32.mrf.mxu0
    %v2854 = vadd.f32 0.0, %v2853
    %v2855 = vpop.f32.mrf.mxu0
    %v2856 = vpop.f32.mrf.mxu0
    %v2857 = vadd.f32 0.0, %v2856
    %v2858 = vpop.f32.mrf.mxu0
    %2859 = vmatprep.mubr.bf16.mxu0 0
    %2860 = vmatmul.mubr.bf16.gmra.mxu0 %v2803
    %v2861 = vpop.f32.mrf.mxu0
    %v2862 = vadd.f32 0.0, %v2861
    %v2863 = vpop.f32.mrf.mxu0
    %v2864 = vpop.f32.mrf.mxu0
    %v2865 = vadd.f32 0.0, %v2864
    %v2866 = vpop.f32.mrf.mxu0
    %2867 = vmatprep.mubr.bf16.mxu0 0
    %2868 = vmatmul.mubr.bf16.gmra.mxu0 %v2806
    %v2869 = vpop.f32.mrf.mxu0
    %v2870 = vadd.f32 0.0, %v2869
    %v2871 = vpop.f32.mrf.mxu0
    %v2872 = vpop.f32.mrf.mxu0
    %v2873 = vpop.f32.mrf.mxu0
    %2874 = vdwg.mxu0
    %v2875 = vpack.c.bf16 %v2849, %v2846
    %v2876 = vpack.c.bf16 %v2857, %v2854
    %v2877 = vpack.c.bf16 %v2865, %v2862
    %v2878 = vpack.c.bf16 %v2870, %v2870
    %v2883 = vunpack.c.l.b16 %v2875
    %v2884 = vunpack.c.h.b16 %v2875
    %v2885 = vunpack.c.l.b16 %v2876
    %v2886 = vunpack.c.h.b16 %v2876
    %v2887 = vunpack.c.l.b16 %v2877
    %v2888 = vunpack.c.h.b16 %v2877
    %v2889 = vunpack.c.l.b16 %v2878
    %v2890 = vpack.c.b16 %v2883, %v2883
    %v2891 = vpack.c.b16 %v2884, %v2884
    %v2892 = vpack.c.b16 %v2885, %v2885
    %v2893 = vpack.c.b16 %v2886, %v2886
    %v2894 = vpack.c.b16 %v2887, %v2887
    %v2895 = vpack.c.b16 %v2888, %v2888
    %v2896 = vpack.c.b16 %v2889, %v2889
    %2904 = vst [vmem:[#allocation2 + $0x14] sm:$0xf] %v2890
    %2905 = vst [vmem:[#allocation2 + $0x34] sm:$0xf] %v2891
    %2906 = vst [vmem:[#allocation2 + $0x54] sm:$0xf] %v2892
    %2907 = vst [vmem:[#allocation2 + $0x74] sm:$0xf] %v2893
    %2908 = vst [vmem:[#allocation2 + $0x94] sm:$0xf] %v2894
    %2909 = vst [vmem:[#allocation2 + $0xb4] sm:$0xf] %v2895
    %2910 = vst [vmem:[#allocation2 + $0xd4] sm:$0xf] %v2896
    %s2911 = scalar_lea.vmem %s5, 192
    %v2912 = vld [vmem:[%s2911] sm:$0xf]
    %v2913 = vld [vmem:[%s2911 + $0x4] sm:$0xf]
    %v2914 = vld [vmem:[%s2911 + $0x8] sm:$0xf]
    %v2915 = vld [vmem:[%s2911 + $0xc] sm:$0xf]
    %v2916 = vld [vmem:[%s2911 + $0x10] sm:$0xf]
    %v2917 = vld [vmem:[%s2911 + $0x14] sm:$0xf]
    %v2918 = vld [vmem:[%s2911 + $0x18] sm:$0xf]
    %v2919 = vld [vmem:[%s2911 + $0x1c] sm:$0xf]
    %s2920 = scalar_lea.vmem %s6, 6
    %v2921 = vld [vmem:[%s2920] sm:$0x1]
    %v2923 = vlaneseq
    %v2924 = vshrl.u32 %v2923, 7
    %v2925 = vsub.s32 0, %v2924
    %v2926 = vrot.slane %v2921, %v2925
    %v2936 = vunpack.c.l.b16 %v2912
    %v2937 = vunpack.c.l.b16 %v2913
    %v2938 = vunpack.c.l.b16 %v2914
    %v2939 = vunpack.c.l.b16 %v2915
    %v2940 = vunpack.c.l.b16 %v2916
    %v2941 = vunpack.c.l.b16 %v2917
    %v2942 = vunpack.c.l.b16 %v2918
    %v2943 = vunpack.c.l.b16 %v2919
    %v2944 = vpack.c.b16 %v2937, %v2936
    %v2945 = vpack.c.b16 %v2939, %v2938
    %v2946 = vpack.c.b16 %v2941, %v2940
    %v2947 = vpack.c.b16 %v2943, %v2942
    %2952 = vmatprep.subr.bf16.mxu0 0
    %2953 = vmatpush1.bf16.msra.mxu0 0
    %2954 = vmatprep.subr.bf16.mxu0 0
    %2955 = vmatpush1.bf16.msra.mxu0 0
    %2956 = vmatprep.subr.bf16.mxu0 0
    %2957 = vmatpush1.bf16.msra.mxu0 0
    %2958 = vmatprep.subr.bf16.mxu0 0
    %2959 = vmatpush1.bf16.msra.mxu0 0
    %2960 = vmatprep.subr.bf16.mxu0 0
    %2961 = vmatpush1.bf16.msra.mxu0 %v2947
    %2962 = vmatprep.subr.bf16.mxu0 0
    %2963 = vmatpush1.bf16.msra.mxu0 %v2946
    %2964 = vmatprep.subr.bf16.mxu0 0
    %2965 = vmatpush1.bf16.msra.mxu0 %v2945
    %2966 = vmatprep.subr.bf16.mxu0 0
    %2967 = vmatpush1.bf16.msra.mxu0 %v2944
    %2968 = vmatprep.subr.bf16.mxu0 0
    %2969 = vmatpush2.bf16.msra.mxu0 0
    %2970 = vmatprep.subr.bf16.mxu0 0
    %2971 = vmatpush2.bf16.msra.mxu0 0
    %2972 = vmatprep.subr.bf16.mxu0 0
    %2973 = vmatpush2.bf16.msra.mxu0 0
    %2974 = vmatprep.subr.bf16.mxu0 0
    %2975 = vmatpush2.bf16.msra.mxu0 0
    %2976 = vmatprep.subr.bf16.mxu0 0
    %2977 = vmatpush2.bf16.msra.mxu0 0
    %2978 = vmatprep.subr.bf16.mxu0 0
    %2979 = vmatpush2.bf16.msra.mxu0 0
    %2980 = vmatprep.subr.bf16.mxu0 0
    %2981 = vmatpush2.bf16.msra.mxu0 0
    %2982 = vmatprep.subr.bf16.mxu0 0
    %2983 = vmatpush2.bf16.msra.mxu0 0
    %2984 = vmatprep.mubr.bf16.mxu0 0
    %2985 = vmatmul.mubr.bf16.gmra.mxu0 %v214
    %v2986 = vpop.f32.mrf.mxu0
    %v2987 = vadd.f32 %v2926, %v2986
    %v2988 = vpop.f32.mrf.mxu0
    %v2989 = vpop.f32.mrf.mxu0
    %v2990 = vadd.f32 %v2926, %v2989
    %v2991 = vpop.f32.mrf.mxu0
    %2992 = vmatprep.mubr.bf16.mxu0 0
    %2993 = vmatmul.mubr.bf16.gmra.mxu0 %v217
    %v2994 = vpop.f32.mrf.mxu0
    %v2995 = vadd.f32 %v2926, %v2994
    %v2996 = vpop.f32.mrf.mxu0
    %v2997 = vpop.f32.mrf.mxu0
    %v2998 = vadd.f32 %v2926, %v2997
    %v2999 = vpop.f32.mrf.mxu0
    %3000 = vmatprep.mubr.bf16.mxu0 0
    %3001 = vmatmul.mubr.bf16.gmra.mxu0 %v220
    %v3002 = vpop.f32.mrf.mxu0
    %v3003 = vadd.f32 %v2926, %v3002
    %v3004 = vpop.f32.mrf.mxu0
    %v3005 = vpop.f32.mrf.mxu0
    %v3006 = vadd.f32 %v2926, %v3005
    %v3007 = vpop.f32.mrf.mxu0
    %3008 = vmatprep.mubr.bf16.mxu0 0
    %3009 = vmatmul.mubr.bf16.gmra.mxu0 %v223
    %v3010 = vpop.f32.mrf.mxu0
    %v3011 = vadd.f32 %v2926, %v3010
    %v3012 = vpop.f32.mrf.mxu0
    %v3013 = vpop.f32.mrf.mxu0
    %v3014 = vpop.f32.mrf.mxu0
    %3015 = vdwg.mxu0
    %v3016 = vpack.c.bf16 %v2990, %v2987
    %v3017 = vpack.c.bf16 %v2998, %v2995
    %v3018 = vpack.c.bf16 %v3006, %v3003
    %v3019 = vpack.c.bf16 %v3011, %v3011
    %s3020 = scalar_lea.vmem %s7, 168
    %v3021 = vld [vmem:[%s3020] sm:$0xf]
    %v3022 = vld [vmem:[%s3020 + $0x4] sm:$0xf]
    %v3023 = vld [vmem:[%s3020 + $0x8] sm:$0xf]
    %v3024 = vld [vmem:[%s3020 + $0xc] sm:$0xf]
    %v3025 = vld [vmem:[%s3020 + $0x10] sm:$0xf]
    %v3026 = vld [vmem:[%s3020 + $0x14] sm:$0xf]
    %v3027 = vld [vmem:[%s3020 + $0x18] sm:$0xf]
    %v3028 = vunpack.c.l.bf16 %v3021
    %v3029 = vunpack.c.l.bf16 %v3022
    %v3030 = vunpack.c.l.bf16 %v3023
    %v3031 = vunpack.c.l.bf16 %v3024
    %v3032 = vunpack.c.l.bf16 %v3025
    %v3033 = vunpack.c.l.bf16 %v3026
    %v3034 = vunpack.c.l.bf16 %v3027
    %3035 = vrot.lane.b32.xlu0 %v368, 64
    %v3036 = vpop.permute.xlu0 %3035
    %3037 = vrot.lane.b32.xlu0 %v372, 64
    %v3038 = vpop.permute.xlu0 %3037
    %3039 = vrot.lane.b32.xlu0 %v376, 64
    %v3040 = vpop.permute.xlu0 %3039
    %3041 = vrot.lane.b32.xlu0 %v380, 64
    %v3042 = vpop.permute.xlu0 %3041
    %3043 = vrot.lane.b32.xlu0 %v370, 64
    %v3044 = vpop.permute.xlu0 %3043
    %3045 = vrot.lane.b32.xlu0 %v374, 64
    %v3046 = vpop.permute.xlu0 %3045
    %3047 = vrot.lane.b32.xlu0 %v378, 64
    %v3048 = vpop.permute.xlu0 %3047
    %3049 = vrot.lane.b32.xlu0 %v382, 64
    %v3050 = vpop.permute.xlu0 %3049
    %v3052 = vsel %vm504, %v3036, 0
    %v3055 = vsel %vm504, %v3038, 0
    %v3058 = vsel %vm504, %v3040, 0
    %v3061 = vsel %vm504, %v3042, 0
    %v3064 = vsel %vm504, %v3044, 0
    %v3067 = vsel %vm504, %v3046, 0
    %v3070 = vsel %vm504, %v3048, 0
    %v3073 = vsel %vm504, %v3050, 0
    %3075 = vmatprep.subr.bf16.mxu0 0
    %3076 = vmatpush1.bf16.xpose.msra.mxu0 0
    %3077 = vmatprep.subr.bf16.mxu0 0
    %3078 = vmatpush1.bf16.xpose.msra.mxu0 0
    %3079 = vmatprep.subr.bf16.mxu0 0
    %3080 = vmatpush1.bf16.xpose.msra.mxu0 0
    %3081 = vmatprep.subr.bf16.mxu0 0
    %3082 = vmatpush1.bf16.xpose.msra.mxu0 0
    %3083 = vmatprep.subr.bf16.mxu0 0
    %3084 = vmatpush1.bf16.xpose.msra.mxu0 %v3073
    %3085 = vmatprep.subr.bf16.mxu0 0
    %3086 = vmatpush1.bf16.xpose.msra.mxu0 %v3070
    %3087 = vmatprep.subr.bf16.mxu0 0
    %3088 = vmatpush1.bf16.xpose.msra.mxu0 %v3067
    %3089 = vmatprep.subr.bf16.mxu0 0
    %3090 = vmatpush1.bf16.xpose.msra.mxu0 %v3064
    %3091 = vmatprep.subr.bf16.mxu0 0
    %3092 = vmatpush2.bf16.xpose.msra.mxu0 0
    %3093 = vmatprep.subr.bf16.mxu0 0
    %3094 = vmatpush2.bf16.xpose.msra.mxu0 0
    %3095 = vmatprep.subr.bf16.mxu0 0
    %3096 = vmatpush2.bf16.xpose.msra.mxu0 0
    %3097 = vmatprep.subr.bf16.mxu0 0
    %3098 = vmatpush2.bf16.xpose.msra.mxu0 0
    %3099 = vmatprep.subr.bf16.mxu0 0
    %3100 = vmatpush2.bf16.xpose.msra.mxu0 0
    %3101 = vmatprep.subr.bf16.mxu0 0
    %3102 = vmatpush2.bf16.xpose.msra.mxu0 0
    %3103 = vmatprep.subr.bf16.mxu0 0
    %3104 = vmatpush2.bf16.xpose.msra.mxu0 0
    %3105 = vmatprep.subr.bf16.mxu0 0
    %3106 = vmatpush2.bf16.xpose.msra.mxu0 0
    %3107 = vmatprep.mubr.bf16.mxu0 0
    %3108 = vmatmul.mubr.bf16.gmra.mxu0 %v3052
    %v3109 = vpop.f32.mrf.mxu0
    %v3110 = vadd.f32 %v3028, %v3109
    %v3111 = vpop.f32.mrf.mxu0
    %v3112 = vpop.f32.mrf.mxu0
    %v3113 = vadd.f32 %v3029, %v3112
    %v3114 = vpop.f32.mrf.mxu0
    %3115 = vmatprep.mubr.bf16.mxu0 0
    %3116 = vmatmul.mubr.bf16.gmra.mxu0 %v3055
    %v3117 = vpop.f32.mrf.mxu0
    %v3118 = vadd.f32 %v3030, %v3117
    %v3119 = vpop.f32.mrf.mxu0
    %v3120 = vpop.f32.mrf.mxu0
    %v3121 = vadd.f32 %v3031, %v3120
    %v3122 = vpop.f32.mrf.mxu0
    %3123 = vmatprep.mubr.bf16.mxu0 0
    %3124 = vmatmul.mubr.bf16.gmra.mxu0 %v3058
    %v3125 = vpop.f32.mrf.mxu0
    %v3126 = vadd.f32 %v3032, %v3125
    %v3127 = vpop.f32.mrf.mxu0
    %v3128 = vpop.f32.mrf.mxu0
    %v3129 = vadd.f32 %v3033, %v3128
    %v3130 = vpop.f32.mrf.mxu0
    %3131 = vmatprep.mubr.bf16.mxu0 0
    %3132 = vmatmul.mubr.bf16.gmra.mxu0 %v3061
    %v3133 = vpop.f32.mrf.mxu0
    %v3134 = vadd.f32 %v3034, %v3133
    %v3135 = vpop.f32.mrf.mxu0
    %v3136 = vpop.f32.mrf.mxu0
    %v3137 = vpop.f32.mrf.mxu0
    %3138 = vdwg.mxu0
    %v3139 = vsel %vm593, %v3110, -inf
    %3140 = vmax.xlane.f32.xlu0 %v3139
    %v3141 = vpop.xlane.xlu0 %3140
    %v3142 = vsel %vm593, %v3113, -inf
    %3143 = vmax.xlane.f32.xlu0 %v3142
    %v3144 = vpop.xlane.xlu0 %3143
    %v3145 = vsel %vm593, %v3118, -inf
    %3146 = vmax.xlane.f32.xlu0 %v3145
    %v3147 = vpop.xlane.xlu0 %3146
    %v3148 = vsel %vm593, %v3121, -inf
    %3149 = vmax.xlane.f32.xlu0 %v3148
    %v3150 = vpop.xlane.xlu0 %3149
    %v3151 = vsel %vm593, %v3126, -inf
    %3152 = vmax.xlane.f32.xlu0 %v3151
    %v3153 = vpop.xlane.xlu0 %3152
    %v3154 = vsel %vm593, %v3129, -inf
    %3155 = vmax.xlane.f32.xlu0 %v3154
    %v3156 = vpop.xlane.xlu0 %3155
    %v3157 = vsel %vm593, %v3134, -inf
    %3158 = vmax.xlane.f32.xlu0 %v3157
    %v3159 = vpop.xlane.xlu0 %3158
    %v3160 = vsub.f32 %v3110, %v3141
    %v3161 = vsub.f32 %v3113, %v3144
    %v3162 = vsub.f32 %v3118, %v3147
    %v3163 = vsub.f32 %v3121, %v3150
    %v3164 = vsub.f32 %v3126, %v3153
    %v3165 = vsub.f32 %v3129, %v3156
    %v3166 = vsub.f32 %v3134, %v3159
    %v3167 = vmul.f32 %v3160, 1.442695
    %v3168 = vpow.pop %v3167
    %v3169 = vmul.f32 %v3161, 1.442695
    %v3170 = vpow.pop %v3169
    %v3171 = vmul.f32 %v3162, 1.442695
    %v3172 = vpow.pop %v3171
    %v3173 = vmul.f32 %v3163, 1.442695
    %v3174 = vpow.pop %v3173
    %v3175 = vmul.f32 %v3164, 1.442695
    %v3176 = vpow.pop %v3175
    %v3177 = vmul.f32 %v3165, 1.442695
    %v3178 = vpow.pop %v3177
    %v3179 = vmul.f32 %v3166, 1.442695
    %v3180 = vpow.pop %v3179
    %v3181 = vsel %vm593, %v3168, 0.0
    %3182 = vadd.xlane.f32.xlu0 %v3181
    %v3183 = vpop.xlane.xlu0 %3182
    %v3184 = vsel %vm593, %v3170, 0.0
    %3185 = vadd.xlane.f32.xlu0 %v3184
    %v3186 = vpop.xlane.xlu0 %3185
    %v3187 = vsel %vm593, %v3172, 0.0
    %3188 = vadd.xlane.f32.xlu0 %v3187
    %v3189 = vpop.xlane.xlu0 %3188
    %v3190 = vsel %vm593, %v3174, 0.0
    %3191 = vadd.xlane.f32.xlu0 %v3190
    %v3192 = vpop.xlane.xlu0 %3191
    %v3193 = vsel %vm593, %v3176, 0.0
    %3194 = vadd.xlane.f32.xlu0 %v3193
    %v3195 = vpop.xlane.xlu0 %3194
    %v3196 = vsel %vm593, %v3178, 0.0
    %3197 = vadd.xlane.f32.xlu0 %v3196
    %v3198 = vpop.xlane.xlu0 %3197
    %v3199 = vsel %vm593, %v3180, 0.0
    %3200 = vadd.xlane.f32.xlu0 %v3199
    %v3201 = vpop.xlane.xlu0 %3200
    %v3202 = vrcp.pop %v3183
    %v3203 = vrcp.pop %v3186
    %v3204 = vrcp.pop %v3189
    %v3205 = vrcp.pop %v3192
    %v3206 = vrcp.pop %v3195
    %v3207 = vrcp.pop %v3198
    %v3208 = vrcp.pop %v3201
    %v3209 = vmul.f32 %v3168, %v3202
    %v3210 = vmul.f32 %v3170, %v3203
    %v3211 = vmul.f32 %v3172, %v3204
    %v3212 = vmul.f32 %v3174, %v3205
    %v3213 = vmul.f32 %v3176, %v3206
    %v3214 = vmul.f32 %v3178, %v3207
    %v3215 = vmul.f32 %v3180, %v3208
    %v3216 = vpack.c.bf16 %v3210, %v3209
    %v3217 = vpack.c.bf16 %v3212, %v3211
    %v3218 = vpack.c.bf16 %v3214, %v3213
    %v3219 = vpack.c.bf16 %v3215, %v3215
    %v3221 = vsel %vm593, %v3216, 0
    %v3224 = vsel %vm593, %v3217, 0
    %v3227 = vsel %vm593, %v3218, 0
    %v3230 = vsel %vm593, %v3219, 0
    %v3233 = vsel %vm687, %v3019, 0
    %3235 = vmatprep.subr.bf16.mxu0 0
    %3236 = vmatpush1.bf16.msra.mxu0 0
    %3237 = vmatprep.subr.bf16.mxu0 0
    %3238 = vmatpush1.bf16.msra.mxu0 0
    %3239 = vmatprep.subr.bf16.mxu0 0
    %3240 = vmatpush1.bf16.msra.mxu0 0
    %3241 = vmatprep.subr.bf16.mxu0 0
    %3242 = vmatpush1.bf16.msra.mxu0 0
    %3243 = vmatprep.subr.bf16.mxu0 0
    %3244 = vmatpush1.bf16.msra.mxu0 %v3233
    %3245 = vmatprep.subr.bf16.mxu0 0
    %3246 = vmatpush1.bf16.msra.mxu0 %v3018
    %3247 = vmatprep.subr.bf16.mxu0 0
    %3248 = vmatpush1.bf16.msra.mxu0 %v3017
    %3249 = vmatprep.subr.bf16.mxu0 0
    %3250 = vmatpush1.bf16.msra.mxu0 %v3016
    %3251 = vmatprep.subr.bf16.mxu0 0
    %3252 = vmatpush2.bf16.msra.mxu0 0
    %3253 = vmatprep.subr.bf16.mxu0 0
    %3254 = vmatpush2.bf16.msra.mxu0 0
    %3255 = vmatprep.subr.bf16.mxu0 0
    %3256 = vmatpush2.bf16.msra.mxu0 0
    %3257 = vmatprep.subr.bf16.mxu0 0
    %3258 = vmatpush2.bf16.msra.mxu0 0
    %3259 = vmatprep.subr.bf16.mxu0 0
    %3260 = vmatpush2.bf16.msra.mxu0 0
    %3261 = vmatprep.subr.bf16.mxu0 0
    %3262 = vmatpush2.bf16.msra.mxu0 0
    %3263 = vmatprep.subr.bf16.mxu0 0
    %3264 = vmatpush2.bf16.msra.mxu0 0
    %3265 = vmatprep.subr.bf16.mxu0 0
    %3266 = vmatpush2.bf16.msra.mxu0 0
    %3267 = vmatprep.mubr.bf16.mxu0 0
    %3268 = vmatmul.mubr.bf16.gmra.mxu0 %v3221
    %v3269 = vpop.f32.mrf.mxu0
    %v3270 = vadd.f32 0.0, %v3269
    %v3271 = vpop.f32.mrf.mxu0
    %v3272 = vpop.f32.mrf.mxu0
    %v3273 = vadd.f32 0.0, %v3272
    %v3274 = vpop.f32.mrf.mxu0
    %3275 = vmatprep.mubr.bf16.mxu0 0
    %3276 = vmatmul.mubr.bf16.gmra.mxu0 %v3224
    %v3277 = vpop.f32.mrf.mxu0
    %v3278 = vadd.f32 0.0, %v3277
    %v3279 = vpop.f32.mrf.mxu0
    %v3280 = vpop.f32.mrf.mxu0
    %v3281 = vadd.f32 0.0, %v3280
    %v3282 = vpop.f32.mrf.mxu0
    %3283 = vmatprep.mubr.bf16.mxu0 0
    %3284 = vmatmul.mubr.bf16.gmra.mxu0 %v3227
    %v3285 = vpop.f32.mrf.mxu0
    %v3286 = vadd.f32 0.0, %v3285
    %v3287 = vpop.f32.mrf.mxu0
    %v3288 = vpop.f32.mrf.mxu0
    %v3289 = vadd.f32 0.0, %v3288
    %v3290 = vpop.f32.mrf.mxu0
    %3291 = vmatprep.mubr.bf16.mxu0 0
    %3292 = vmatmul.mubr.bf16.gmra.mxu0 %v3230
    %v3293 = vpop.f32.mrf.mxu0
    %v3294 = vadd.f32 0.0, %v3293
    %v3295 = vpop.f32.mrf.mxu0
    %v3296 = vpop.f32.mrf.mxu0
    %v3297 = vpop.f32.mrf.mxu0
    %3298 = vdwg.mxu0
    %v3299 = vpack.c.bf16 %v3273, %v3270
    %v3300 = vpack.c.bf16 %v3281, %v3278
    %v3301 = vpack.c.bf16 %v3289, %v3286
    %v3302 = vpack.c.bf16 %v3294, %v3294
    %v3307 = vunpack.c.l.b16 %v3299
    %v3308 = vunpack.c.h.b16 %v3299
    %v3309 = vunpack.c.l.b16 %v3300
    %v3310 = vunpack.c.h.b16 %v3300
    %v3311 = vunpack.c.l.b16 %v3301
    %v3312 = vunpack.c.h.b16 %v3301
    %v3313 = vunpack.c.l.b16 %v3302
    %v3314 = vpack.c.b16 %v3307, %v3307
    %v3315 = vpack.c.b16 %v3308, %v3308
    %v3316 = vpack.c.b16 %v3309, %v3309
    %v3317 = vpack.c.b16 %v3310, %v3310
    %v3318 = vpack.c.b16 %v3311, %v3311
    %v3319 = vpack.c.b16 %v3312, %v3312
    %v3320 = vpack.c.b16 %v3313, %v3313
    %3328 = vst [vmem:[#allocation2 + $0x18] sm:$0xf] %v3314
    %3329 = vst [vmem:[#allocation2 + $0x38] sm:$0xf] %v3315
    %3330 = vst [vmem:[#allocation2 + $0x58] sm:$0xf] %v3316
    %3331 = vst [vmem:[#allocation2 + $0x78] sm:$0xf] %v3317
    %3332 = vst [vmem:[#allocation2 + $0x98] sm:$0xf] %v3318
    %3333 = vst [vmem:[#allocation2 + $0xb8] sm:$0xf] %v3319
    %3334 = vst [vmem:[#allocation2 + $0xd8] sm:$0xf] %v3320
    %s3335 = scalar_lea.vmem %s5, 224
    %v3336 = vld [vmem:[%s3335] sm:$0xf]
    %v3337 = vld [vmem:[%s3335 + $0x4] sm:$0xf]
    %v3338 = vld [vmem:[%s3335 + $0x8] sm:$0xf]
    %v3339 = vld [vmem:[%s3335 + $0xc] sm:$0xf]
    %v3340 = vld [vmem:[%s3335 + $0x10] sm:$0xf]
    %v3341 = vld [vmem:[%s3335 + $0x14] sm:$0xf]
    %v3342 = vld [vmem:[%s3335 + $0x18] sm:$0xf]
    %v3343 = vld [vmem:[%s3335 + $0x1c] sm:$0xf]
    %s3344 = scalar_lea.vmem %s6, 7
    %v3345 = vld [vmem:[%s3344] sm:$0x1]
    %v3347 = vlaneseq
    %v3348 = vshrl.u32 %v3347, 7
    %v3349 = vsub.s32 0, %v3348
    %v3350 = vrot.slane %v3345, %v3349
    %v3360 = vunpack.c.l.b16 %v3336
    %v3361 = vunpack.c.l.b16 %v3337
    %v3362 = vunpack.c.l.b16 %v3338
    %v3363 = vunpack.c.l.b16 %v3339
    %v3364 = vunpack.c.l.b16 %v3340
    %v3365 = vunpack.c.l.b16 %v3341
    %v3366 = vunpack.c.l.b16 %v3342
    %v3367 = vunpack.c.l.b16 %v3343
    %v3368 = vpack.c.b16 %v3361, %v3360
    %v3369 = vpack.c.b16 %v3363, %v3362
    %v3370 = vpack.c.b16 %v3365, %v3364
    %v3371 = vpack.c.b16 %v3367, %v3366
    %3376 = vmatprep.subr.bf16.mxu0 0
    %3377 = vmatpush1.bf16.msra.mxu0 0
    %3378 = vmatprep.subr.bf16.mxu0 0
    %3379 = vmatpush1.bf16.msra.mxu0 0
    %3380 = vmatprep.subr.bf16.mxu0 0
    %3381 = vmatpush1.bf16.msra.mxu0 0
    %3382 = vmatprep.subr.bf16.mxu0 0
    %3383 = vmatpush1.bf16.msra.mxu0 0
    %3384 = vmatprep.subr.bf16.mxu0 0
    %3385 = vmatpush1.bf16.msra.mxu0 %v3371
    %3386 = vmatprep.subr.bf16.mxu0 0
    %3387 = vmatpush1.bf16.msra.mxu0 %v3370
    %3388 = vmatprep.subr.bf16.mxu0 0
    %3389 = vmatpush1.bf16.msra.mxu0 %v3369
    %3390 = vmatprep.subr.bf16.mxu0 0
    %3391 = vmatpush1.bf16.msra.mxu0 %v3368
    %3392 = vmatprep.subr.bf16.mxu0 0
    %3393 = vmatpush2.bf16.msra.mxu0 0
    %3394 = vmatprep.subr.bf16.mxu0 0
    %3395 = vmatpush2.bf16.msra.mxu0 0
    %3396 = vmatprep.subr.bf16.mxu0 0
    %3397 = vmatpush2.bf16.msra.mxu0 0
    %3398 = vmatprep.subr.bf16.mxu0 0
    %3399 = vmatpush2.bf16.msra.mxu0 0
    %3400 = vmatprep.subr.bf16.mxu0 0
    %3401 = vmatpush2.bf16.msra.mxu0 0
    %3402 = vmatprep.subr.bf16.mxu0 0
    %3403 = vmatpush2.bf16.msra.mxu0 0
    %3404 = vmatprep.subr.bf16.mxu0 0
    %3405 = vmatpush2.bf16.msra.mxu0 0
    %3406 = vmatprep.subr.bf16.mxu0 0
    %3407 = vmatpush2.bf16.msra.mxu0 0
    %3408 = vmatprep.mubr.bf16.mxu0 0
    %3409 = vmatmul.mubr.bf16.gmra.mxu0 %v214
    %v3410 = vpop.f32.mrf.mxu0
    %v3411 = vadd.f32 %v3350, %v3410
    %v3412 = vpop.f32.mrf.mxu0
    %v3413 = vpop.f32.mrf.mxu0
    %v3414 = vadd.f32 %v3350, %v3413
    %v3415 = vpop.f32.mrf.mxu0
    %3416 = vmatprep.mubr.bf16.mxu0 0
    %3417 = vmatmul.mubr.bf16.gmra.mxu0 %v217
    %v3418 = vpop.f32.mrf.mxu0
    %v3419 = vadd.f32 %v3350, %v3418
    %v3420 = vpop.f32.mrf.mxu0
    %v3421 = vpop.f32.mrf.mxu0
    %v3422 = vadd.f32 %v3350, %v3421
    %v3423 = vpop.f32.mrf.mxu0
    %3424 = vmatprep.mubr.bf16.mxu0 0
    %3425 = vmatmul.mubr.bf16.gmra.mxu0 %v220
    %v3426 = vpop.f32.mrf.mxu0
    %v3427 = vadd.f32 %v3350, %v3426
    %v3428 = vpop.f32.mrf.mxu0
    %v3429 = vpop.f32.mrf.mxu0
    %v3430 = vadd.f32 %v3350, %v3429
    %v3431 = vpop.f32.mrf.mxu0
    %3432 = vmatprep.mubr.bf16.mxu0 0
    %3433 = vmatmul.mubr.bf16.gmra.mxu0 %v223
    %v3434 = vpop.f32.mrf.mxu0
    %v3435 = vadd.f32 %v3350, %v3434
    %v3436 = vpop.f32.mrf.mxu0
    %v3437 = vpop.f32.mrf.mxu0
    %v3438 = vpop.f32.mrf.mxu0
    %3439 = vdwg.mxu0
    %v3440 = vpack.c.bf16 %v3414, %v3411
    %v3441 = vpack.c.bf16 %v3422, %v3419
    %v3442 = vpack.c.bf16 %v3430, %v3427
    %v3443 = vpack.c.bf16 %v3435, %v3435
    %s3444 = scalar_lea.vmem %s7, 196
    %v3445 = vld [vmem:[%s3444] sm:$0xf]
    %v3446 = vld [vmem:[%s3444 + $0x4] sm:$0xf]
    %v3447 = vld [vmem:[%s3444 + $0x8] sm:$0xf]
    %v3448 = vld [vmem:[%s3444 + $0xc] sm:$0xf]
    %v3449 = vld [vmem:[%s3444 + $0x10] sm:$0xf]
    %v3450 = vld [vmem:[%s3444 + $0x14] sm:$0xf]
    %v3451 = vld [vmem:[%s3444 + $0x18] sm:$0xf]
    %v3452 = vunpack.c.l.bf16 %v3445
    %v3453 = vunpack.c.l.bf16 %v3446
    %v3454 = vunpack.c.l.bf16 %v3447
    %v3455 = vunpack.c.l.bf16 %v3448
    %v3456 = vunpack.c.l.bf16 %v3449
    %v3457 = vunpack.c.l.bf16 %v3450
    %v3458 = vunpack.c.l.bf16 %v3451
    %3459 = vrot.lane.b32.xlu0 %v368, 32
    %v3460 = vpop.permute.xlu0 %3459
    %3461 = vrot.lane.b32.xlu0 %v372, 32
    %v3462 = vpop.permute.xlu0 %3461
    %3463 = vrot.lane.b32.xlu0 %v376, 32
    %v3464 = vpop.permute.xlu0 %3463
    %3465 = vrot.lane.b32.xlu0 %v380, 32
    %v3466 = vpop.permute.xlu0 %3465
    %3467 = vrot.lane.b32.xlu0 %v370, 32
    %v3468 = vpop.permute.xlu0 %3467
    %3469 = vrot.lane.b32.xlu0 %v374, 32
    %v3470 = vpop.permute.xlu0 %3469
    %3471 = vrot.lane.b32.xlu0 %v378, 32
    %v3472 = vpop.permute.xlu0 %3471
    %3473 = vrot.lane.b32.xlu0 %v382, 32
    %v3474 = vpop.permute.xlu0 %3473
    %v3476 = vsel %vm504, %v3460, 0
    %v3479 = vsel %vm504, %v3462, 0
    %v3482 = vsel %vm504, %v3464, 0
    %v3485 = vsel %vm504, %v3466, 0
    %v3488 = vsel %vm504, %v3468, 0
    %v3491 = vsel %vm504, %v3470, 0
    %v3494 = vsel %vm504, %v3472, 0
    %v3497 = vsel %vm504, %v3474, 0
    %3499 = vmatprep.subr.bf16.mxu0 0
    %3500 = vmatpush1.bf16.xpose.msra.mxu0 0
    %3501 = vmatprep.subr.bf16.mxu0 0
    %3502 = vmatpush1.bf16.xpose.msra.mxu0 0
    %3503 = vmatprep.subr.bf16.mxu0 0
    %3504 = vmatpush1.bf16.xpose.msra.mxu0 0
    %3505 = vmatprep.subr.bf16.mxu0 0
    %3506 = vmatpush1.bf16.xpose.msra.mxu0 0
    %3507 = vmatprep.subr.bf16.mxu0 0
    %3508 = vmatpush1.bf16.xpose.msra.mxu0 %v3497
    %3509 = vmatprep.subr.bf16.mxu0 0
    %3510 = vmatpush1.bf16.xpose.msra.mxu0 %v3494
    %3511 = vmatprep.subr.bf16.mxu0 0
    %3512 = vmatpush1.bf16.xpose.msra.mxu0 %v3491
    %3513 = vmatprep.subr.bf16.mxu0 0
    %3514 = vmatpush1.bf16.xpose.msra.mxu0 %v3488
    %3515 = vmatprep.subr.bf16.mxu0 0
    %3516 = vmatpush2.bf16.xpose.msra.mxu0 0
    %3517 = vmatprep.subr.bf16.mxu0 0
    %3518 = vmatpush2.bf16.xpose.msra.mxu0 0
    %3519 = vmatprep.subr.bf16.mxu0 0
    %3520 = vmatpush2.bf16.xpose.msra.mxu0 0
    %3521 = vmatprep.subr.bf16.mxu0 0
    %3522 = vmatpush2.bf16.xpose.msra.mxu0 0
    %3523 = vmatprep.subr.bf16.mxu0 0
    %3524 = vmatpush2.bf16.xpose.msra.mxu0 0
    %3525 = vmatprep.subr.bf16.mxu0 0
    %3526 = vmatpush2.bf16.xpose.msra.mxu0 0
    %3527 = vmatprep.subr.bf16.mxu0 0
    %3528 = vmatpush2.bf16.xpose.msra.mxu0 0
    %3529 = vmatprep.subr.bf16.mxu0 0
    %3530 = vmatpush2.bf16.xpose.msra.mxu0 0
    %3531 = vmatprep.mubr.bf16.mxu0 0
    %3532 = vmatmul.mubr.bf16.gmra.mxu0 %v3476
    %v3533 = vpop.f32.mrf.mxu0
    %v3534 = vadd.f32 %v3452, %v3533
    %v3535 = vpop.f32.mrf.mxu0
    %v3536 = vpop.f32.mrf.mxu0
    %v3537 = vadd.f32 %v3453, %v3536
    %v3538 = vpop.f32.mrf.mxu0
    %3539 = vmatprep.mubr.bf16.mxu0 0
    %3540 = vmatmul.mubr.bf16.gmra.mxu0 %v3479
    %v3541 = vpop.f32.mrf.mxu0
    %v3542 = vadd.f32 %v3454, %v3541
    %v3543 = vpop.f32.mrf.mxu0
    %v3544 = vpop.f32.mrf.mxu0
    %v3545 = vadd.f32 %v3455, %v3544
    %v3546 = vpop.f32.mrf.mxu0
    %3547 = vmatprep.mubr.bf16.mxu0 0
    %3548 = vmatmul.mubr.bf16.gmra.mxu0 %v3482
    %v3549 = vpop.f32.mrf.mxu0
    %v3550 = vadd.f32 %v3456, %v3549
    %v3551 = vpop.f32.mrf.mxu0
    %v3552 = vpop.f32.mrf.mxu0
    %v3553 = vadd.f32 %v3457, %v3552
    %v3554 = vpop.f32.mrf.mxu0
    %3555 = vmatprep.mubr.bf16.mxu0 0
    %3556 = vmatmul.mubr.bf16.gmra.mxu0 %v3485
    %v3557 = vpop.f32.mrf.mxu0
    %v3558 = vadd.f32 %v3458, %v3557
    %v3559 = vpop.f32.mrf.mxu0
    %v3560 = vpop.f32.mrf.mxu0
    %v3561 = vpop.f32.mrf.mxu0
    %3562 = vdwg.mxu0
    %v3563 = vsel %vm593, %v3534, -inf
    %3564 = vmax.xlane.f32.xlu0 %v3563
    %v3565 = vpop.xlane.xlu0 %3564
    %v3566 = vsel %vm593, %v3537, -inf
    %3567 = vmax.xlane.f32.xlu0 %v3566
    %v3568 = vpop.xlane.xlu0 %3567
    %v3569 = vsel %vm593, %v3542, -inf
    %3570 = vmax.xlane.f32.xlu0 %v3569
    %v3571 = vpop.xlane.xlu0 %3570
    %v3572 = vsel %vm593, %v3545, -inf
    %3573 = vmax.xlane.f32.xlu0 %v3572
    %v3574 = vpop.xlane.xlu0 %3573
    %v3575 = vsel %vm593, %v3550, -inf
    %3576 = vmax.xlane.f32.xlu0 %v3575
    %v3577 = vpop.xlane.xlu0 %3576
    %v3578 = vsel %vm593, %v3553, -inf
    %3579 = vmax.xlane.f32.xlu0 %v3578
    %v3580 = vpop.xlane.xlu0 %3579
    %v3581 = vsel %vm593, %v3558, -inf
    %3582 = vmax.xlane.f32.xlu0 %v3581
    %v3583 = vpop.xlane.xlu0 %3582
    %v3584 = vsub.f32 %v3534, %v3565
    %v3585 = vsub.f32 %v3537, %v3568
    %v3586 = vsub.f32 %v3542, %v3571
    %v3587 = vsub.f32 %v3545, %v3574
    %v3588 = vsub.f32 %v3550, %v3577
    %v3589 = vsub.f32 %v3553, %v3580
    %v3590 = vsub.f32 %v3558, %v3583
    %v3591 = vmul.f32 %v3584, 1.442695
    %v3592 = vpow.pop %v3591
    %v3593 = vmul.f32 %v3585, 1.442695
    %v3594 = vpow.pop %v3593
    %v3595 = vmul.f32 %v3586, 1.442695
    %v3596 = vpow.pop %v3595
    %v3597 = vmul.f32 %v3587, 1.442695
    %v3598 = vpow.pop %v3597
    %v3599 = vmul.f32 %v3588, 1.442695
    %v3600 = vpow.pop %v3599
    %v3601 = vmul.f32 %v3589, 1.442695
    %v3602 = vpow.pop %v3601
    %v3603 = vmul.f32 %v3590, 1.442695
    %v3604 = vpow.pop %v3603
    %v3605 = vsel %vm593, %v3592, 0.0
    %3606 = vadd.xlane.f32.xlu0 %v3605
    %v3607 = vpop.xlane.xlu0 %3606
    %v3608 = vsel %vm593, %v3594, 0.0
    %3609 = vadd.xlane.f32.xlu0 %v3608
    %v3610 = vpop.xlane.xlu0 %3609
    %v3611 = vsel %vm593, %v3596, 0.0
    %3612 = vadd.xlane.f32.xlu0 %v3611
    %v3613 = vpop.xlane.xlu0 %3612
    %v3614 = vsel %vm593, %v3598, 0.0
    %3615 = vadd.xlane.f32.xlu0 %v3614
    %v3616 = vpop.xlane.xlu0 %3615
    %v3617 = vsel %vm593, %v3600, 0.0
    %3618 = vadd.xlane.f32.xlu0 %v3617
    %v3619 = vpop.xlane.xlu0 %3618
    %v3620 = vsel %vm593, %v3602, 0.0
    %3621 = vadd.xlane.f32.xlu0 %v3620
    %v3622 = vpop.xlane.xlu0 %3621
    %v3623 = vsel %vm593, %v3604, 0.0
    %3624 = vadd.xlane.f32.xlu0 %v3623
    %v3625 = vpop.xlane.xlu0 %3624
    %v3626 = vrcp.pop %v3607
    %v3627 = vrcp.pop %v3610
    %v3628 = vrcp.pop %v3613
    %v3629 = vrcp.pop %v3616
    %v3630 = vrcp.pop %v3619
    %v3631 = vrcp.pop %v3622
    %v3632 = vrcp.pop %v3625
    %v3633 = vmul.f32 %v3592, %v3626
    %v3634 = vmul.f32 %v3594, %v3627
    %v3635 = vmul.f32 %v3596, %v3628
    %v3636 = vmul.f32 %v3598, %v3629
    %v3637 = vmul.f32 %v3600, %v3630
    %v3638 = vmul.f32 %v3602, %v3631
    %v3639 = vmul.f32 %v3604, %v3632
    %v3640 = vpack.c.bf16 %v3634, %v3633
    %v3641 = vpack.c.bf16 %v3636, %v3635
    %v3642 = vpack.c.bf16 %v3638, %v3637
    %v3643 = vpack.c.bf16 %v3639, %v3639
    %v3645 = vsel %vm593, %v3640, 0
    %v3648 = vsel %vm593, %v3641, 0
    %v3651 = vsel %vm593, %v3642, 0
    %v3654 = vsel %vm593, %v3643, 0
    %v3657 = vsel %vm687, %v3443, 0
    %3659 = vmatprep.subr.bf16.mxu0 0
    %3660 = vmatpush1.bf16.msra.mxu0 0
    %3661 = vmatprep.subr.bf16.mxu0 0
    %3662 = vmatpush1.bf16.msra.mxu0 0
    %3663 = vmatprep.subr.bf16.mxu0 0
    %3664 = vmatpush1.bf16.msra.mxu0 0
    %3665 = vmatprep.subr.bf16.mxu0 0
    %3666 = vmatpush1.bf16.msra.mxu0 0
    %3667 = vmatprep.subr.bf16.mxu0 0
    %3668 = vmatpush1.bf16.msra.mxu0 %v3657
    %3669 = vmatprep.subr.bf16.mxu0 0
    %3670 = vmatpush1.bf16.msra.mxu0 %v3442
    %3671 = vmatprep.subr.bf16.mxu0 0
    %3672 = vmatpush1.bf16.msra.mxu0 %v3441
    %3673 = vmatprep.subr.bf16.mxu0 0
    %3674 = vmatpush1.bf16.msra.mxu0 %v3440
    %3675 = vmatprep.subr.bf16.mxu0 0
    %3676 = vmatpush2.bf16.msra.mxu0 0
    %3677 = vmatprep.subr.bf16.mxu0 0
    %3678 = vmatpush2.bf16.msra.mxu0 0
    %3679 = vmatprep.subr.bf16.mxu0 0
    %3680 = vmatpush2.bf16.msra.mxu0 0
    %3681 = vmatprep.subr.bf16.mxu0 0
    %3682 = vmatpush2.bf16.msra.mxu0 0
    %3683 = vmatprep.subr.bf16.mxu0 0
    %3684 = vmatpush2.bf16.msra.mxu0 0
    %3685 = vmatprep.subr.bf16.mxu0 0
    %3686 = vmatpush2.bf16.msra.mxu0 0
    %3687 = vmatprep.subr.bf16.mxu0 0
    %3688 = vmatpush2.bf16.msra.mxu0 0
    %3689 = vmatprep.subr.bf16.mxu0 0
    %3690 = vmatpush2.bf16.msra.mxu0 0
    %3691 = vmatprep.mubr.bf16.mxu0 0
    %3692 = vmatmul.mubr.bf16.gmra.mxu0 %v3645
    %v3693 = vpop.f32.mrf.mxu0
    %v3694 = vadd.f32 0.0, %v3693
    %v3695 = vpop.f32.mrf.mxu0
    %v3696 = vpop.f32.mrf.mxu0
    %v3697 = vadd.f32 0.0, %v3696
    %v3698 = vpop.f32.mrf.mxu0
    %3699 = vmatprep.mubr.bf16.mxu0 0
    %3700 = vmatmul.mubr.bf16.gmra.mxu0 %v3648
    %v3701 = vpop.f32.mrf.mxu0
    %v3702 = vadd.f32 0.0, %v3701
    %v3703 = vpop.f32.mrf.mxu0
    %v3704 = vpop.f32.mrf.mxu0
    %v3705 = vadd.f32 0.0, %v3704
    %v3706 = vpop.f32.mrf.mxu0
    %3707 = vmatprep.mubr.bf16.mxu0 0
    %3708 = vmatmul.mubr.bf16.gmra.mxu0 %v3651
    %v3709 = vpop.f32.mrf.mxu0
    %v3710 = vadd.f32 0.0, %v3709
    %v3711 = vpop.f32.mrf.mxu0
    %v3712 = vpop.f32.mrf.mxu0
    %v3713 = vadd.f32 0.0, %v3712
    %v3714 = vpop.f32.mrf.mxu0
    %3715 = vmatprep.mubr.bf16.mxu0 0
    %3716 = vmatmul.mubr.bf16.gmra.mxu0 %v3654
    %v3717 = vpop.f32.mrf.mxu0
    %v3718 = vadd.f32 0.0, %v3717
    %v3719 = vpop.f32.mrf.mxu0
    %v3720 = vpop.f32.mrf.mxu0
    %v3721 = vpop.f32.mrf.mxu0
    %3722 = vdwg.mxu0
    %v3723 = vpack.c.bf16 %v3697, %v3694
    %v3724 = vpack.c.bf16 %v3705, %v3702
    %v3725 = vpack.c.bf16 %v3713, %v3710
    %v3726 = vpack.c.bf16 %v3718, %v3718
    %v3731 = vunpack.c.l.b16 %v3723
    %v3732 = vunpack.c.h.b16 %v3723
    %v3733 = vunpack.c.l.b16 %v3724
    %v3734 = vunpack.c.h.b16 %v3724
    %v3735 = vunpack.c.l.b16 %v3725
    %v3736 = vunpack.c.h.b16 %v3725
    %v3737 = vunpack.c.l.b16 %v3726
    %v3738 = vpack.c.b16 %v3731, %v3731
    %v3739 = vpack.c.b16 %v3732, %v3732
    %v3740 = vpack.c.b16 %v3733, %v3733
    %v3741 = vpack.c.b16 %v3734, %v3734
    %v3742 = vpack.c.b16 %v3735, %v3735
    %v3743 = vpack.c.b16 %v3736, %v3736
    %v3744 = vpack.c.b16 %v3737, %v3737
    %3752 = vst [vmem:[#allocation2 + $0x1c] sm:$0xf] %v3738
    %3753 = vst [vmem:[#allocation2 + $0x3c] sm:$0xf] %v3739
    %3754 = vst [vmem:[#allocation2 + $0x5c] sm:$0xf] %v3740
    %3755 = vst [vmem:[#allocation2 + $0x7c] sm:$0xf] %v3741
    %3756 = vst [vmem:[#allocation2 + $0x9c] sm:$0xf] %v3742
    %3757 = vst [vmem:[#allocation2 + $0xbc] sm:$0xf] %v3743
    %3758 = vst [vmem:[#allocation2 + $0xdc] sm:$0xf] %v3744
    %v3759 = vld [vmem:[#allocation2] sm:$0xff]
    %v3760 = vld [vmem:[#allocation2 + $0x8] sm:$0xff]
    %v3761 = vld [vmem:[#allocation2 + $0x10] sm:$0xff]
    %v3762 = vld [vmem:[#allocation2 + $0x18] sm:$0xff]
    %v3763 = vld [vmem:[#allocation2 + $0x20] sm:$0xff]
    %v3764 = vld [vmem:[#allocation2 + $0x28] sm:$0xff]
    %v3765 = vld [vmem:[#allocation2 + $0x30] sm:$0xff]
    %v3766 = vld [vmem:[#allocation2 + $0x38] sm:$0xff]
    %v3767 = vld [vmem:[#allocation2 + $0x40] sm:$0xff]
    %v3768 = vld [vmem:[#allocation2 + $0x48] sm:$0xff]
    %v3769 = vld [vmem:[#allocation2 + $0x50] sm:$0xff]
    %v3770 = vld [vmem:[#allocation2 + $0x58] sm:$0xff]
    %v3771 = vld [vmem:[#allocation2 + $0x60] sm:$0xff]
    %v3772 = vld [vmem:[#allocation2 + $0x68] sm:$0xff]
    %v3773 = vld [vmem:[#allocation2 + $0x70] sm:$0xff]
    %v3774 = vld [vmem:[#allocation2 + $0x78] sm:$0xff]
    %v3775 = vld [vmem:[#allocation2 + $0x80] sm:$0xff]
    %v3776 = vld [vmem:[#allocation2 + $0x88] sm:$0xff]
    %v3777 = vld [vmem:[#allocation2 + $0x90] sm:$0xff]
    %v3778 = vld [vmem:[#allocation2 + $0x98] sm:$0xff]
    %v3779 = vld [vmem:[#allocation2 + $0xa0] sm:$0xff]
    %v3780 = vld [vmem:[#allocation2 + $0xa8] sm:$0xff]
    %v3781 = vld [vmem:[#allocation2 + $0xb0] sm:$0xff]
    %v3782 = vld [vmem:[#allocation2 + $0xb8] sm:$0xff]
    %v3783 = vld [vmem:[#allocation2 + $0xc0] sm:$0xff]
    %v3784 = vld [vmem:[#allocation2 + $0xc8] sm:$0xff]
    %v3785 = vld [vmem:[#allocation2 + $0xd0] sm:$0xff]
    %v3786 = vld [vmem:[#allocation2 + $0xd8] sm:$0xff]
    %v3787 = vld [vmem:[%s8] sm:$0xf]
    %v3788 = vld [vmem:[%s8 + $0x4] sm:$0xf]
    %v3789 = vld [vmem:[%s8 + $0x8] sm:$0xf]
    %v3790 = vld [vmem:[%s8 + $0xc] sm:$0xf]
    %v3791 = vld [vmem:[%s8 + $0x10] sm:$0xf]
    %v3792 = vld [vmem:[%s8 + $0x14] sm:$0xf]
    %v3793 = vld [vmem:[%s8 + $0x18] sm:$0xf]
    %v3794 = vld [vmem:[%s8 + $0x1c] sm:$0xf]
    %v3795 = vld [vmem:[%s8 + $0x20] sm:$0xf]
    %v3796 = vld [vmem:[%s8 + $0x24] sm:$0xf]
    %v3797 = vld [vmem:[%s8 + $0x28] sm:$0xf]
    %v3798 = vld [vmem:[%s8 + $0x2c] sm:$0xf]
    %v3799 = vld [vmem:[%s8 + $0x30] sm:$0xf]
    %v3800 = vld [vmem:[%s8 + $0x34] sm:$0xf]
    %v3801 = vld [vmem:[%s8 + $0x38] sm:$0xf]
    %v3802 = vld [vmem:[%s8 + $0x3c] sm:$0xf]
    %v3803 = vld [vmem:[%s8 + $0x40] sm:$0xf]
    %v3804 = vld [vmem:[%s8 + $0x44] sm:$0xf]
    %v3805 = vld [vmem:[%s8 + $0x48] sm:$0xf]
    %v3806 = vld [vmem:[%s8 + $0x4c] sm:$0xf]
    %v3807 = vld [vmem:[%s8 + $0x50] sm:$0xf]
    %v3808 = vld [vmem:[%s8 + $0x54] sm:$0xf]
    %v3809 = vld [vmem:[%s8 + $0x58] sm:$0xf]
    %v3810 = vld [vmem:[%s8 + $0x5c] sm:$0xf]
    %v3811 = vld [vmem:[%s8 + $0x60] sm:$0xf]
    %v3812 = vld [vmem:[%s8 + $0x64] sm:$0xf]
    %v3813 = vld [vmem:[%s8 + $0x68] sm:$0xf]
    %v3814 = vld [vmem:[%s8 + $0x6c] sm:$0xf]
    %v3815 = vld [vmem:[%s8 + $0x70] sm:$0xf]
    %v3816 = vld [vmem:[%s8 + $0x74] sm:$0xf]
    %v3817 = vld [vmem:[%s8 + $0x78] sm:$0xf]
    %v3818 = vld [vmem:[%s8 + $0x7c] sm:$0xf]
    %v3819 = vld [vmem:[%s8 + $0x80] sm:$0xf]
    %v3820 = vld [vmem:[%s8 + $0x84] sm:$0xf]
    %v3821 = vld [vmem:[%s8 + $0x88] sm:$0xf]
    %v3822 = vld [vmem:[%s8 + $0x8c] sm:$0xf]
    %v3823 = vld [vmem:[%s8 + $0x90] sm:$0xf]
    %v3824 = vld [vmem:[%s8 + $0x94] sm:$0xf]
    %v3825 = vld [vmem:[%s8 + $0x98] sm:$0xf]
    %v3826 = vld [vmem:[%s8 + $0x9c] sm:$0xf]
    %v3827 = vld [vmem:[%s8 + $0xa0] sm:$0xf]
    %v3828 = vld [vmem:[%s8 + $0xa4] sm:$0xf]
    %v3829 = vld [vmem:[%s8 + $0xa8] sm:$0xf]
    %v3830 = vld [vmem:[%s8 + $0xac] sm:$0xf]
    %v3831 = vld [vmem:[%s8 + $0xb0] sm:$0xf]
    %v3832 = vld [vmem:[%s8 + $0xb4] sm:$0xf]
    %v3833 = vld [vmem:[%s8 + $0xb8] sm:$0xf]
    %v3834 = vld [vmem:[%s8 + $0xbc] sm:$0xf]
    %v3835 = vld [vmem:[%s8 + $0xc0] sm:$0xf]
    %v3836 = vld [vmem:[%s8 + $0xc4] sm:$0xf]
    %v3837 = vld [vmem:[%s8 + $0xc8] sm:$0xf]
    %v3838 = vld [vmem:[%s8 + $0xcc] sm:$0xf]
    %v3839 = vld [vmem:[%s8 + $0xd0] sm:$0xf]
    %v3840 = vld [vmem:[%s8 + $0xd4] sm:$0xf]
    %v3841 = vld [vmem:[%s8 + $0xd8] sm:$0xf]
    %v3842 = vld [vmem:[%s8 + $0xdc] sm:$0xf]
    %v3843 = vld [vmem:[%s8 + $0xe0] sm:$0xf]
    %v3844 = vld [vmem:[%s8 + $0xe4] sm:$0xf]
    %v3845 = vld [vmem:[%s8 + $0xe8] sm:$0xf]
    %v3846 = vld [vmem:[%s8 + $0xec] sm:$0xf]
    %v3847 = vld [vmem:[%s8 + $0xf0] sm:$0xf]
    %v3848 = vld [vmem:[%s8 + $0xf4] sm:$0xf]
    %v3849 = vld [vmem:[%s8 + $0xf8] sm:$0xf]
    %v3850 = vld [vmem:[%s8 + $0xfc] sm:$0xf]
    %v3851 = vld [vmem:[%s8 + $0x100] sm:$0xf]
    %v3852 = vld [vmem:[%s8 + $0x104] sm:$0xf]
    %v3853 = vld [vmem:[%s8 + $0x108] sm:$0xf]
    %v3854 = vld [vmem:[%s8 + $0x10c] sm:$0xf]
    %v3855 = vld [vmem:[%s8 + $0x110] sm:$0xf]
    %v3856 = vld [vmem:[%s8 + $0x114] sm:$0xf]
    %v3857 = vld [vmem:[%s8 + $0x118] sm:$0xf]
    %v3858 = vld [vmem:[%s8 + $0x11c] sm:$0xf]
    %v3859 = vld [vmem:[%s8 + $0x120] sm:$0xf]
    %v3860 = vld [vmem:[%s8 + $0x124] sm:$0xf]
    %v3861 = vld [vmem:[%s8 + $0x128] sm:$0xf]
    %v3862 = vld [vmem:[%s8 + $0x12c] sm:$0xf]
    %v3863 = vld [vmem:[%s8 + $0x130] sm:$0xf]
    %v3864 = vld [vmem:[%s8 + $0x134] sm:$0xf]
    %v3865 = vld [vmem:[%s8 + $0x138] sm:$0xf]
    %v3866 = vld [vmem:[%s8 + $0x13c] sm:$0xf]
    %v3867 = vld [vmem:[%s8 + $0x140] sm:$0xf]
    %v3868 = vld [vmem:[%s8 + $0x144] sm:$0xf]
    %v3869 = vld [vmem:[%s8 + $0x148] sm:$0xf]
    %v3870 = vld [vmem:[%s8 + $0x14c] sm:$0xf]
    %v3871 = vld [vmem:[%s8 + $0x150] sm:$0xf]
    %v3872 = vld [vmem:[%s8 + $0x154] sm:$0xf]
    %v3873 = vld [vmem:[%s8 + $0x158] sm:$0xf]
    %v3874 = vld [vmem:[%s8 + $0x15c] sm:$0xf]
    %v3875 = vld [vmem:[%s8 + $0x160] sm:$0xf]
    %v3876 = vld [vmem:[%s8 + $0x164] sm:$0xf]
    %v3877 = vld [vmem:[%s8 + $0x168] sm:$0xf]
    %v3878 = vld [vmem:[%s8 + $0x16c] sm:$0xf]
    %v3879 = vld [vmem:[%s8 + $0x170] sm:$0xf]
    %v3880 = vld [vmem:[%s8 + $0x174] sm:$0xf]
    %v3881 = vld [vmem:[%s8 + $0x178] sm:$0xf]
    %v3882 = vld [vmem:[%s8 + $0x17c] sm:$0xf]
    %v3883 = vld [vmem:[%s8 + $0x180] sm:$0xf]
    %v3884 = vld [vmem:[%s8 + $0x184] sm:$0xf]
    %v3885 = vld [vmem:[%s8 + $0x188] sm:$0xf]
    %v3886 = vld [vmem:[%s8 + $0x18c] sm:$0xf]
    %v3887 = vld [vmem:[%s8 + $0x190] sm:$0xf]
    %v3888 = vld [vmem:[%s8 + $0x194] sm:$0xf]
    %v3889 = vld [vmem:[%s8 + $0x198] sm:$0xf]
    %v3890 = vld [vmem:[%s8 + $0x19c] sm:$0xf]
    %v3891 = vld [vmem:[%s8 + $0x1a0] sm:$0xf]
    %v3892 = vld [vmem:[%s8 + $0x1a4] sm:$0xf]
    %v3893 = vld [vmem:[%s8 + $0x1a8] sm:$0xf]
    %v3894 = vld [vmem:[%s8 + $0x1ac] sm:$0xf]
    %v3895 = vld [vmem:[%s8 + $0x1b0] sm:$0xf]
    %v3896 = vld [vmem:[%s8 + $0x1b4] sm:$0xf]
    %v3897 = vld [vmem:[%s8 + $0x1b8] sm:$0xf]
    %v3898 = vld [vmem:[%s8 + $0x1bc] sm:$0xf]
    %v3899 = vld [vmem:[%s8 + $0x1c0] sm:$0xf]
    %v3900 = vld [vmem:[%s8 + $0x1c4] sm:$0xf]
    %v3901 = vld [vmem:[%s8 + $0x1c8] sm:$0xf]
    %v3902 = vld [vmem:[%s8 + $0x1cc] sm:$0xf]
    %v3903 = vld [vmem:[%s8 + $0x1d0] sm:$0xf]
    %v3904 = vld [vmem:[%s8 + $0x1d4] sm:$0xf]
    %v3905 = vld [vmem:[%s8 + $0x1d8] sm:$0xf]
    %v3906 = vld [vmem:[%s8 + $0x1dc] sm:$0xf]
    %v3907 = vld [vmem:[%s8 + $0x1e0] sm:$0xf]
    %v3908 = vld [vmem:[%s8 + $0x1e4] sm:$0xf]
    %v3909 = vld [vmem:[%s8 + $0x1e8] sm:$0xf]
    %v3910 = vld [vmem:[%s8 + $0x1ec] sm:$0xf]
    %v3911 = vld [vmem:[%s8 + $0x1f0] sm:$0xf]
    %v3912 = vld [vmem:[%s8 + $0x1f4] sm:$0xf]
    %v3913 = vld [vmem:[%s8 + $0x1f8] sm:$0xf]
    %v3914 = vld [vmem:[%s8 + $0x1fc] sm:$0xf]
    %v3943 = vunpack.c.l.b16 %v3759
    %v3944 = vunpack.c.h.b16 %v3759
    %v3945 = vunpack.c.l.b16 %v3760
    %v3946 = vunpack.c.h.b16 %v3760
    %v3947 = vunpack.c.l.b16 %v3761
    %v3948 = vunpack.c.h.b16 %v3761
    %v3949 = vunpack.c.l.b16 %v3762
    %v3950 = vunpack.c.h.b16 %v3762
    %v3951 = vunpack.c.l.b16 %v3763
    %v3952 = vunpack.c.h.b16 %v3763
    %v3953 = vunpack.c.l.b16 %v3764
    %v3954 = vunpack.c.h.b16 %v3764
    %v3955 = vunpack.c.l.b16 %v3765
    %v3956 = vunpack.c.h.b16 %v3765
    %v3957 = vunpack.c.l.b16 %v3766
    %v3958 = vunpack.c.h.b16 %v3766
    %v3959 = vunpack.c.l.b16 %v3767
    %v3960 = vunpack.c.h.b16 %v3767
    %v3961 = vunpack.c.l.b16 %v3768
    %v3962 = vunpack.c.h.b16 %v3768
    %v3963 = vunpack.c.l.b16 %v3769
    %v3964 = vunpack.c.h.b16 %v3769
    %v3965 = vunpack.c.l.b16 %v3770
    %v3966 = vunpack.c.h.b16 %v3770
    %v3967 = vunpack.c.l.b16 %v3771
    %v3968 = vunpack.c.h.b16 %v3771
    %v3969 = vunpack.c.l.b16 %v3772
    %v3970 = vunpack.c.h.b16 %v3772
    %v3971 = vunpack.c.l.b16 %v3773
    %v3972 = vunpack.c.h.b16 %v3773
    %v3973 = vunpack.c.l.b16 %v3774
    %v3974 = vunpack.c.h.b16 %v3774
    %v3975 = vunpack.c.l.b16 %v3775
    %v3976 = vunpack.c.h.b16 %v3775
    %v3977 = vunpack.c.l.b16 %v3776
    %v3978 = vunpack.c.h.b16 %v3776
    %v3979 = vunpack.c.l.b16 %v3777
    %v3980 = vunpack.c.h.b16 %v3777
    %v3981 = vunpack.c.l.b16 %v3778
    %v3982 = vunpack.c.h.b16 %v3778
    %v3983 = vunpack.c.l.b16 %v3779
    %v3984 = vunpack.c.h.b16 %v3779
    %v3985 = vunpack.c.l.b16 %v3780
    %v3986 = vunpack.c.h.b16 %v3780
    %v3987 = vunpack.c.l.b16 %v3781
    %v3988 = vunpack.c.h.b16 %v3781
    %v3989 = vunpack.c.l.b16 %v3782
    %v3990 = vunpack.c.h.b16 %v3782
    %v3991 = vunpack.c.l.b16 %v3783
    %v3992 = vunpack.c.h.b16 %v3783
    %v3993 = vunpack.c.l.b16 %v3784
    %v3994 = vunpack.c.h.b16 %v3784
    %v3995 = vunpack.c.l.b16 %v3785
    %v3996 = vunpack.c.h.b16 %v3785
    %v3997 = vunpack.c.l.b16 %v3786
    %v3998 = vunpack.c.h.b16 %v3786
    %v3999 = vpack.c.b16 %v3951, %v3943
    %v4000 = vpack.c.b16 %v3952, %v3944
    %v4001 = vpack.c.b16 %v3953, %v3945
    %v4002 = vpack.c.b16 %v3954, %v3946
    %v4003 = vpack.c.b16 %v3955, %v3947
    %v4004 = vpack.c.b16 %v3956, %v3948
    %v4005 = vpack.c.b16 %v3957, %v3949
    %v4006 = vpack.c.b16 %v3958, %v3950
    %v4007 = vpack.c.b16 %v3967, %v3959
    %v4008 = vpack.c.b16 %v3968, %v3960
    %v4009 = vpack.c.b16 %v3969, %v3961
    %v4010 = vpack.c.b16 %v3970, %v3962
    %v4011 = vpack.c.b16 %v3971, %v3963
    %v4012 = vpack.c.b16 %v3972, %v3964
    %v4013 = vpack.c.b16 %v3973, %v3965
    %v4014 = vpack.c.b16 %v3974, %v3966
    %v4015 = vpack.c.b16 %v3983, %v3975
    %v4016 = vpack.c.b16 %v3984, %v3976
    %v4017 = vpack.c.b16 %v3985, %v3977
    %v4018 = vpack.c.b16 %v3986, %v3978
    %v4019 = vpack.c.b16 %v3987, %v3979
    %v4020 = vpack.c.b16 %v3988, %v3980
    %v4021 = vpack.c.b16 %v3989, %v3981
    %v4022 = vpack.c.b16 %v3990, %v3982
    %v4023 = vpack.c.b16 %v3991, %v3991
    %v4024 = vpack.c.b16 %v3992, %v3992
    %v4025 = vpack.c.b16 %v3993, %v3993
    %v4026 = vpack.c.b16 %v3994, %v3994
    %v4027 = vpack.c.b16 %v3995, %v3995
    %v4028 = vpack.c.b16 %v3996, %v3996
    %v4029 = vpack.c.b16 %v3997, %v3997
    %v4030 = vpack.c.b16 %v3998, %v3998
    %v4191 = vunpack.c.l.b16 %v3787
    %v4192 = vunpack.c.l.b16 %v3788
    %v4193 = vunpack.c.l.b16 %v3789
    %v4194 = vunpack.c.l.b16 %v3790
    %v4195 = vunpack.c.l.b16 %v3791
    %v4196 = vunpack.c.l.b16 %v3792
    %v4197 = vunpack.c.l.b16 %v3793
    %v4198 = vunpack.c.l.b16 %v3794
    %v4199 = vunpack.c.l.b16 %v3795
    %v4200 = vunpack.c.l.b16 %v3796
    %v4201 = vunpack.c.l.b16 %v3797
    %v4202 = vunpack.c.l.b16 %v3798
    %v4203 = vunpack.c.l.b16 %v3799
    %v4204 = vunpack.c.l.b16 %v3800
    %v4205 = vunpack.c.l.b16 %v3801
    %v4206 = vunpack.c.l.b16 %v3802
    %v4207 = vunpack.c.l.b16 %v3803
    %v4208 = vunpack.c.l.b16 %v3804
    %v4209 = vunpack.c.l.b16 %v3805
    %v4210 = vunpack.c.l.b16 %v3806
    %v4211 = vunpack.c.l.b16 %v3807
    %v4212 = vunpack.c.l.b16 %v3808
    %v4213 = vunpack.c.l.b16 %v3809
    %v4214 = vunpack.c.l.b16 %v3810
    %v4215 = vunpack.c.l.b16 %v3811
    %v4216 = vunpack.c.l.b16 %v3812
    %v4217 = vunpack.c.l.b16 %v3813
    %v4218 = vunpack.c.l.b16 %v3814
    %v4219 = vunpack.c.l.b16 %v3815
    %v4220 = vunpack.c.l.b16 %v3816
    %v4221 = vunpack.c.l.b16 %v3817
    %v4222 = vunpack.c.l.b16 %v3818
    %v4223 = vunpack.c.l.b16 %v3819
    %v4224 = vunpack.c.l.b16 %v3820
    %v4225 = vunpack.c.l.b16 %v3821
    %v4226 = vunpack.c.l.b16 %v3822
    %v4227 = vunpack.c.l.b16 %v3823
    %v4228 = vunpack.c.l.b16 %v3824
    %v4229 = vunpack.c.l.b16 %v3825
    %v4230 = vunpack.c.l.b16 %v3826
    %v4231 = vunpack.c.l.b16 %v3827
    %v4232 = vunpack.c.l.b16 %v3828
    %v4233 = vunpack.c.l.b16 %v3829
    %v4234 = vunpack.c.l.b16 %v3830
    %v4235 = vunpack.c.l.b16 %v3831
    %v4236 = vunpack.c.l.b16 %v3832
    %v4237 = vunpack.c.l.b16 %v3833
    %v4238 = vunpack.c.l.b16 %v3834
    %v4239 = vunpack.c.l.b16 %v3835
    %v4240 = vunpack.c.l.b16 %v3836
    %v4241 = vunpack.c.l.b16 %v3837
    %v4242 = vunpack.c.l.b16 %v3838
    %v4243 = vunpack.c.l.b16 %v3839
    %v4244 = vunpack.c.l.b16 %v3840
    %v4245 = vunpack.c.l.b16 %v3841
    %v4246 = vunpack.c.l.b16 %v3842
    %v4247 = vunpack.c.l.b16 %v3843
    %v4248 = vunpack.c.l.b16 %v3844
    %v4249 = vunpack.c.l.b16 %v3845
    %v4250 = vunpack.c.l.b16 %v3846
    %v4251 = vunpack.c.l.b16 %v3847
    %v4252 = vunpack.c.l.b16 %v3848
    %v4253 = vunpack.c.l.b16 %v3849
    %v4254 = vunpack.c.l.b16 %v3850
    %v4255 = vunpack.c.l.b16 %v3851
    %v4256 = vunpack.c.l.b16 %v3852
    %v4257 = vunpack.c.l.b16 %v3853
    %v4258 = vunpack.c.l.b16 %v3854
    %v4259 = vunpack.c.l.b16 %v3855
    %v4260 = vunpack.c.l.b16 %v3856
    %v4261 = vunpack.c.l.b16 %v3857
    %v4262 = vunpack.c.l.b16 %v3858
    %v4263 = vunpack.c.l.b16 %v3859
    %v4264 = vunpack.c.l.b16 %v3860
    %v4265 = vunpack.c.l.b16 %v3861
    %v4266 = vunpack.c.l.b16 %v3862
    %v4267 = vunpack.c.l.b16 %v3863
    %v4268 = vunpack.c.l.b16 %v3864
    %v4269 = vunpack.c.l.b16 %v3865
    %v4270 = vunpack.c.l.b16 %v3866
    %v4271 = vunpack.c.l.b16 %v3867
    %v4272 = vunpack.c.l.b16 %v3868
    %v4273 = vunpack.c.l.b16 %v3869
    %v4274 = vunpack.c.l.b16 %v3870
    %v4275 = vunpack.c.l.b16 %v3871
    %v4276 = vunpack.c.l.b16 %v3872
    %v4277 = vunpack.c.l.b16 %v3873
    %v4278 = vunpack.c.l.b16 %v3874
    %v4279 = vunpack.c.l.b16 %v3875
    %v4280 = vunpack.c.l.b16 %v3876
    %v4281 = vunpack.c.l.b16 %v3877
    %v4282 = vunpack.c.l.b16 %v3878
    %v4283 = vunpack.c.l.b16 %v3879
    %v4284 = vunpack.c.l.b16 %v3880
    %v4285 = vunpack.c.l.b16 %v3881
    %v4286 = vunpack.c.l.b16 %v3882
    %v4287 = vunpack.c.l.b16 %v3883
    %v4288 = vunpack.c.l.b16 %v3884
    %v4289 = vunpack.c.l.b16 %v3885
    %v4290 = vunpack.c.l.b16 %v3886
    %v4291 = vunpack.c.l.b16 %v3887
    %v4292 = vunpack.c.l.b16 %v3888
    %v4293 = vunpack.c.l.b16 %v3889
    %v4294 = vunpack.c.l.b16 %v3890
    %v4295 = vunpack.c.l.b16 %v3891
    %v4296 = vunpack.c.l.b16 %v3892
    %v4297 = vunpack.c.l.b16 %v3893
    %v4298 = vunpack.c.l.b16 %v3894
    %v4299 = vunpack.c.l.b16 %v3895
    %v4300 = vunpack.c.l.b16 %v3896
    %v4301 = vunpack.c.l.b16 %v3897
    %v4302 = vunpack.c.l.b16 %v3898
    %v4303 = vunpack.c.l.b16 %v3899
    %v4304 = vunpack.c.l.b16 %v3900
    %v4305 = vunpack.c.l.b16 %v3901
    %v4306 = vunpack.c.l.b16 %v3902
    %v4307 = vunpack.c.l.b16 %v3903
    %v4308 = vunpack.c.l.b16 %v3904
    %v4309 = vunpack.c.l.b16 %v3905
    %v4310 = vunpack.c.l.b16 %v3906
    %v4311 = vunpack.c.l.b16 %v3907
    %v4312 = vunpack.c.l.b16 %v3908
    %v4313 = vunpack.c.l.b16 %v3909
    %v4314 = vunpack.c.l.b16 %v3910
    %v4315 = vunpack.c.l.b16 %v3911
    %v4316 = vunpack.c.l.b16 %v3912
    %v4317 = vunpack.c.l.b16 %v3913
    %v4318 = vunpack.c.l.b16 %v3914
    %v4319 = vpack.c.b16 %v4192, %v4191
    %v4320 = vpack.c.b16 %v4194, %v4193
    %v4321 = vpack.c.b16 %v4196, %v4195
    %v4322 = vpack.c.b16 %v4198, %v4197
    %v4323 = vpack.c.b16 %v4200, %v4199
    %v4324 = vpack.c.b16 %v4202, %v4201
    %v4325 = vpack.c.b16 %v4204, %v4203
    %v4326 = vpack.c.b16 %v4206, %v4205
    %v4327 = vpack.c.b16 %v4208, %v4207
    %v4328 = vpack.c.b16 %v4210, %v4209
    %v4329 = vpack.c.b16 %v4212, %v4211
    %v4330 = vpack.c.b16 %v4214, %v4213
    %v4331 = vpack.c.b16 %v4216, %v4215
    %v4332 = vpack.c.b16 %v4218, %v4217
    %v4333 = vpack.c.b16 %v4220, %v4219
    %v4334 = vpack.c.b16 %v4222, %v4221
    %v4335 = vpack.c.b16 %v4224, %v4223
    %v4336 = vpack.c.b16 %v4226, %v4225
    %v4337 = vpack.c.b16 %v4228, %v4227
    %v4338 = vpack.c.b16 %v4230, %v4229
    %v4339 = vpack.c.b16 %v4232, %v4231
    %v4340 = vpack.c.b16 %v4234, %v4233
    %v4341 = vpack.c.b16 %v4236, %v4235
    %v4342 = vpack.c.b16 %v4238, %v4237
    %v4343 = vpack.c.b16 %v4240, %v4239
    %v4344 = vpack.c.b16 %v4242, %v4241
    %v4345 = vpack.c.b16 %v4244, %v4243
    %v4346 = vpack.c.b16 %v4246, %v4245
    %v4347 = vpack.c.b16 %v4248, %v4247
    %v4348 = vpack.c.b16 %v4250, %v4249
    %v4349 = vpack.c.b16 %v4252, %v4251
    %v4350 = vpack.c.b16 %v4254, %v4253
    %v4351 = vpack.c.b16 %v4256, %v4255
    %v4352 = vpack.c.b16 %v4258, %v4257
    %v4353 = vpack.c.b16 %v4260, %v4259
    %v4354 = vpack.c.b16 %v4262, %v4261
    %v4355 = vpack.c.b16 %v4264, %v4263
    %v4356 = vpack.c.b16 %v4266, %v4265
    %v4357 = vpack.c.b16 %v4268, %v4267
    %v4358 = vpack.c.b16 %v4270, %v4269
    %v4359 = vpack.c.b16 %v4272, %v4271
    %v4360 = vpack.c.b16 %v4274, %v4273
    %v4361 = vpack.c.b16 %v4276, %v4275
    %v4362 = vpack.c.b16 %v4278, %v4277
    %v4363 = vpack.c.b16 %v4280, %v4279
    %v4364 = vpack.c.b16 %v4282, %v4281
    %v4365 = vpack.c.b16 %v4284, %v4283
    %v4366 = vpack.c.b16 %v4286, %v4285
    %v4367 = vpack.c.b16 %v4288, %v4287
    %v4368 = vpack.c.b16 %v4290, %v4289
    %v4369 = vpack.c.b16 %v4292, %v4291
    %v4370 = vpack.c.b16 %v4294, %v4293
    %v4371 = vpack.c.b16 %v4296, %v4295
    %v4372 = vpack.c.b16 %v4298, %v4297
    %v4373 = vpack.c.b16 %v4300, %v4299
    %v4374 = vpack.c.b16 %v4302, %v4301
    %v4375 = vpack.c.b16 %v4304, %v4303
    %v4376 = vpack.c.b16 %v4306, %v4305
    %v4377 = vpack.c.b16 %v4308, %v4307
    %v4378 = vpack.c.b16 %v4310, %v4309
    %v4379 = vpack.c.b16 %v4312, %v4311
    %v4380 = vpack.c.b16 %v4314, %v4313
    %v4381 = vpack.c.b16 %v4316, %v4315
    %v4382 = vpack.c.b16 %v4318, %v4317
    %4447 = vmatprep.subr.bf16.mxu0 0
    %4448 = vmatpush1.bf16.msra.mxu0 %v4326
    %4449 = vmatprep.subr.bf16.mxu0 0
    %4450 = vmatpush1.bf16.msra.mxu0 %v4325
    %4451 = vmatprep.subr.bf16.mxu0 0
    %4452 = vmatpush1.bf16.msra.mxu0 %v4324
    %4453 = vmatprep.subr.bf16.mxu0 0
    %4454 = vmatpush1.bf16.msra.mxu0 %v4323
    %4455 = vmatprep.subr.bf16.mxu0 0
    %4456 = vmatpush1.bf16.msra.mxu0 %v4322
    %4457 = vmatprep.subr.bf16.mxu0 0
    %4458 = vmatpush1.bf16.msra.mxu0 %v4321
    %4459 = vmatprep.subr.bf16.mxu0 0
    %4460 = vmatpush1.bf16.msra.mxu0 %v4320
    %4461 = vmatprep.subr.bf16.mxu0 0
    %4462 = vmatpush1.bf16.msra.mxu0 %v4319
    %4463 = vmatprep.subr.bf16.mxu0 0
    %4464 = vmatpush2.bf16.msra.mxu0 %v4334
    %4465 = vmatprep.subr.bf16.mxu0 0
    %4466 = vmatpush2.bf16.msra.mxu0 %v4333
    %4467 = vmatprep.subr.bf16.mxu0 0
    %4468 = vmatpush2.bf16.msra.mxu0 %v4332
    %4469 = vmatprep.subr.bf16.mxu0 0
    %4470 = vmatpush2.bf16.msra.mxu0 %v4331
    %4471 = vmatprep.subr.bf16.mxu0 0
    %4472 = vmatpush2.bf16.msra.mxu0 %v4330
    %4473 = vmatprep.subr.bf16.mxu0 0
    %4474 = vmatpush2.bf16.msra.mxu0 %v4329
    %4475 = vmatprep.subr.bf16.mxu0 0
    %4476 = vmatpush2.bf16.msra.mxu0 %v4328
    %4477 = vmatprep.subr.bf16.mxu0 0
    %4478 = vmatpush2.bf16.msra.mxu0 %v4327
    %4479 = vmatprep.mubr.bf16.mxu0 %v4000
    %4480 = vmatmul.mubr.bf16.gmra.mxu0 %v3999
    %v4481 = vpop.f32.mrf.mxu0
    %v4482 = vadd.f32 0.0, %v4481
    %v4483 = vpop.f32.mrf.mxu0
    %v4484 = vpop.f32.mrf.mxu0
    %v4485 = vadd.f32 0.0, %v4484
    %v4486 = vpop.f32.mrf.mxu0
    %4487 = vmatprep.mubr.bf16.mxu0 %v4008
    %4488 = vmatmul.mubr.bf16.gmra.mxu0 %v4007
    %v4489 = vpop.f32.mrf.mxu0
    %v4490 = vadd.f32 0.0, %v4489
    %v4491 = vpop.f32.mrf.mxu0
    %v4492 = vpop.f32.mrf.mxu0
    %v4493 = vadd.f32 0.0, %v4492
    %v4494 = vpop.f32.mrf.mxu0
    %4495 = vmatprep.mubr.bf16.mxu0 %v4016
    %4496 = vmatmul.mubr.bf16.gmra.mxu0 %v4015
    %v4497 = vpop.f32.mrf.mxu0
    %v4498 = vadd.f32 0.0, %v4497
    %v4499 = vpop.f32.mrf.mxu0
    %v4500 = vpop.f32.mrf.mxu0
    %v4501 = vadd.f32 0.0, %v4500
    %v4502 = vpop.f32.mrf.mxu0
    %4503 = vmatprep.mubr.bf16.mxu0 %v4024
    %4504 = vmatmul.mubr.bf16.gmra.mxu0 %v4023
    %v4505 = vpop.f32.mrf.mxu0
    %v4506 = vadd.f32 0.0, %v4505
    %v4507 = vpop.f32.mrf.mxu0
    %v4508 = vpop.f32.mrf.mxu0
    %v4509 = vpop.f32.mrf.mxu0
    %4510 = vdwg.mxu0
    %4511 = vmatprep.subr.bf16.mxu0 0
    %4512 = vmatpush1.bf16.msra.mxu0 %v4342
    %4513 = vmatprep.subr.bf16.mxu0 0
    %4514 = vmatpush1.bf16.msra.mxu0 %v4341
    %4515 = vmatprep.subr.bf16.mxu0 0
    %4516 = vmatpush1.bf16.msra.mxu0 %v4340
    %4517 = vmatprep.subr.bf16.mxu0 0
    %4518 = vmatpush1.bf16.msra.mxu0 %v4339
    %4519 = vmatprep.subr.bf16.mxu0 0
    %4520 = vmatpush1.bf16.msra.mxu0 %v4338
    %4521 = vmatprep.subr.bf16.mxu0 0
    %4522 = vmatpush1.bf16.msra.mxu0 %v4337
    %4523 = vmatprep.subr.bf16.mxu0 0
    %4524 = vmatpush1.bf16.msra.mxu0 %v4336
    %4525 = vmatprep.subr.bf16.mxu0 0
    %4526 = vmatpush1.bf16.msra.mxu0 %v4335
    %4527 = vmatprep.subr.bf16.mxu0 0
    %4528 = vmatpush2.bf16.msra.mxu0 %v4350
    %4529 = vmatprep.subr.bf16.mxu0 0
    %4530 = vmatpush2.bf16.msra.mxu0 %v4349
    %4531 = vmatprep.subr.bf16.mxu0 0
    %4532 = vmatpush2.bf16.msra.mxu0 %v4348
    %4533 = vmatprep.subr.bf16.mxu0 0
    %4534 = vmatpush2.bf16.msra.mxu0 %v4347
    %4535 = vmatprep.subr.bf16.mxu0 0
    %4536 = vmatpush2.bf16.msra.mxu0 %v4346
    %4537 = vmatprep.subr.bf16.mxu0 0
    %4538 = vmatpush2.bf16.msra.mxu0 %v4345
    %4539 = vmatprep.subr.bf16.mxu0 0
    %4540 = vmatpush2.bf16.msra.mxu0 %v4344
    %4541 = vmatprep.subr.bf16.mxu0 0
    %4542 = vmatpush2.bf16.msra.mxu0 %v4343
    %4543 = vmatprep.mubr.bf16.mxu0 %v4002
    %4544 = vmatmul.mubr.bf16.gmra.mxu0 %v4001
    %v4545 = vpop.f32.mrf.mxu0
    %v4546 = vadd.f32 %v4482, %v4545
    %v4547 = vpop.f32.mrf.mxu0
    %v4548 = vpop.f32.mrf.mxu0
    %v4549 = vadd.f32 %v4485, %v4548
    %v4550 = vpop.f32.mrf.mxu0
    %4551 = vmatprep.mubr.bf16.mxu0 %v4010
    %4552 = vmatmul.mubr.bf16.gmra.mxu0 %v4009
    %v4553 = vpop.f32.mrf.mxu0
    %v4554 = vadd.f32 %v4490, %v4553
    %v4555 = vpop.f32.mrf.mxu0
    %v4556 = vpop.f32.mrf.mxu0
    %v4557 = vadd.f32 %v4493, %v4556
    %v4558 = vpop.f32.mrf.mxu0
    %4559 = vmatprep.mubr.bf16.mxu0 %v4018
    %4560 = vmatmul.mubr.bf16.gmra.mxu0 %v4017
    %v4561 = vpop.f32.mrf.mxu0
    %v4562 = vadd.f32 %v4498, %v4561
    %v4563 = vpop.f32.mrf.mxu0
    %v4564 = vpop.f32.mrf.mxu0
    %v4565 = vadd.f32 %v4501, %v4564
    %v4566 = vpop.f32.mrf.mxu0
    %4567 = vmatprep.mubr.bf16.mxu0 %v4026
    %4568 = vmatmul.mubr.bf16.gmra.mxu0 %v4025
    %v4569 = vpop.f32.mrf.mxu0
    %v4570 = vadd.f32 %v4506, %v4569
    %v4571 = vpop.f32.mrf.mxu0
    %v4572 = vpop.f32.mrf.mxu0
    %v4573 = vpop.f32.mrf.mxu0
    %4574 = vdwg.mxu0
    %4575 = vmatprep.subr.bf16.mxu0 0
    %4576 = vmatpush1.bf16.msra.mxu0 %v4358
    %4577 = vmatprep.subr.bf16.mxu0 0
    %4578 = vmatpush1.bf16.msra.mxu0 %v4357
    %4579 = vmatprep.subr.bf16.mxu0 0
    %4580 = vmatpush1.bf16.msra.mxu0 %v4356
    %4581 = vmatprep.subr.bf16.mxu0 0
    %4582 = vmatpush1.bf16.msra.mxu0 %v4355
    %4583 = vmatprep.subr.bf16.mxu0 0
    %4584 = vmatpush1.bf16.msra.mxu0 %v4354
    %4585 = vmatprep.subr.bf16.mxu0 0
    %4586 = vmatpush1.bf16.msra.mxu0 %v4353
    %4587 = vmatprep.subr.bf16.mxu0 0
    %4588 = vmatpush1.bf16.msra.mxu0 %v4352
    %4589 = vmatprep.subr.bf16.mxu0 0
    %4590 = vmatpush1.bf16.msra.mxu0 %v4351
    %4591 = vmatprep.subr.bf16.mxu0 0
    %4592 = vmatpush2.bf16.msra.mxu0 %v4366
    %4593 = vmatprep.subr.bf16.mxu0 0
    %4594 = vmatpush2.bf16.msra.mxu0 %v4365
    %4595 = vmatprep.subr.bf16.mxu0 0
    %4596 = vmatpush2.bf16.msra.mxu0 %v4364
    %4597 = vmatprep.subr.bf16.mxu0 0
    %4598 = vmatpush2.bf16.msra.mxu0 %v4363
    %4599 = vmatprep.subr.bf16.mxu0 0
    %4600 = vmatpush2.bf16.msra.mxu0 %v4362
    %4601 = vmatprep.subr.bf16.mxu0 0
    %4602 = vmatpush2.bf16.msra.mxu0 %v4361
    %4603 = vmatprep.subr.bf16.mxu0 0
    %4604 = vmatpush2.bf16.msra.mxu0 %v4360
    %4605 = vmatprep.subr.bf16.mxu0 0
    %4606 = vmatpush2.bf16.msra.mxu0 %v4359
    %4607 = vmatprep.mubr.bf16.mxu0 %v4004
    %4608 = vmatmul.mubr.bf16.gmra.mxu0 %v4003
    %v4609 = vpop.f32.mrf.mxu0
    %v4610 = vadd.f32 %v4546, %v4609
    %v4611 = vpop.f32.mrf.mxu0
    %v4612 = vpop.f32.mrf.mxu0
    %v4613 = vadd.f32 %v4549, %v4612
    %v4614 = vpop.f32.mrf.mxu0
    %4615 = vmatprep.mubr.bf16.mxu0 %v4012
    %4616 = vmatmul.mubr.bf16.gmra.mxu0 %v4011
    %v4617 = vpop.f32.mrf.mxu0
    %v4618 = vadd.f32 %v4554, %v4617
    %v4619 = vpop.f32.mrf.mxu0
    %v4620 = vpop.f32.mrf.mxu0
    %v4621 = vadd.f32 %v4557, %v4620
    %v4622 = vpop.f32.mrf.mxu0
    %4623 = vmatprep.mubr.bf16.mxu0 %v4020
    %4624 = vmatmul.mubr.bf16.gmra.mxu0 %v4019
    %v4625 = vpop.f32.mrf.mxu0
    %v4626 = vadd.f32 %v4562, %v4625
    %v4627 = vpop.f32.mrf.mxu0
    %v4628 = vpop.f32.mrf.mxu0
    %v4629 = vadd.f32 %v4565, %v4628
    %v4630 = vpop.f32.mrf.mxu0
    %4631 = vmatprep.mubr.bf16.mxu0 %v4028
    %4632 = vmatmul.mubr.bf16.gmra.mxu0 %v4027
    %v4633 = vpop.f32.mrf.mxu0
    %v4634 = vadd.f32 %v4570, %v4633
    %v4635 = vpop.f32.mrf.mxu0
    %v4636 = vpop.f32.mrf.mxu0
    %v4637 = vpop.f32.mrf.mxu0
    %4638 = vdwg.mxu0
    %4639 = vmatprep.subr.bf16.mxu0 0
    %4640 = vmatpush1.bf16.msra.mxu0 %v4374
    %4641 = vmatprep.subr.bf16.mxu0 0
    %4642 = vmatpush1.bf16.msra.mxu0 %v4373
    %4643 = vmatprep.subr.bf16.mxu0 0
    %4644 = vmatpush1.bf16.msra.mxu0 %v4372
    %4645 = vmatprep.subr.bf16.mxu0 0
    %4646 = vmatpush1.bf16.msra.mxu0 %v4371
    %4647 = vmatprep.subr.bf16.mxu0 0
    %4648 = vmatpush1.bf16.msra.mxu0 %v4370
    %4649 = vmatprep.subr.bf16.mxu0 0
    %4650 = vmatpush1.bf16.msra.mxu0 %v4369
    %4651 = vmatprep.subr.bf16.mxu0 0
    %4652 = vmatpush1.bf16.msra.mxu0 %v4368
    %4653 = vmatprep.subr.bf16.mxu0 0
    %4654 = vmatpush1.bf16.msra.mxu0 %v4367
    %4655 = vmatprep.subr.bf16.mxu0 0
    %4656 = vmatpush2.bf16.msra.mxu0 %v4382
    %4657 = vmatprep.subr.bf16.mxu0 0
    %4658 = vmatpush2.bf16.msra.mxu0 %v4381
    %4659 = vmatprep.subr.bf16.mxu0 0
    %4660 = vmatpush2.bf16.msra.mxu0 %v4380
    %4661 = vmatprep.subr.bf16.mxu0 0
    %4662 = vmatpush2.bf16.msra.mxu0 %v4379
    %4663 = vmatprep.subr.bf16.mxu0 0
    %4664 = vmatpush2.bf16.msra.mxu0 %v4378
    %4665 = vmatprep.subr.bf16.mxu0 0
    %4666 = vmatpush2.bf16.msra.mxu0 %v4377
    %4667 = vmatprep.subr.bf16.mxu0 0
    %4668 = vmatpush2.bf16.msra.mxu0 %v4376
    %4669 = vmatprep.subr.bf16.mxu0 0
    %4670 = vmatpush2.bf16.msra.mxu0 %v4375
    %4671 = vmatprep.mubr.bf16.mxu0 %v4006
    %4672 = vmatmul.mubr.bf16.gmra.mxu0 %v4005
    %v4673 = vpop.f32.mrf.mxu0
    %v4674 = vadd.f32 %v4610, %v4673
    %v4675 = vpop.f32.mrf.mxu0
    %v4676 = vpop.f32.mrf.mxu0
    %v4677 = vadd.f32 %v4613, %v4676
    %v4678 = vpop.f32.mrf.mxu0
    %4679 = vmatprep.mubr.bf16.mxu0 %v4014
    %4680 = vmatmul.mubr.bf16.gmra.mxu0 %v4013
    %v4681 = vpop.f32.mrf.mxu0
    %v4682 = vadd.f32 %v4618, %v4681
    %v4683 = vpop.f32.mrf.mxu0
    %v4684 = vpop.f32.mrf.mxu0
    %v4685 = vadd.f32 %v4621, %v4684
    %v4686 = vpop.f32.mrf.mxu0
    %4687 = vmatprep.mubr.bf16.mxu0 %v4022
    %4688 = vmatmul.mubr.bf16.gmra.mxu0 %v4021
    %v4689 = vpop.f32.mrf.mxu0
    %v4690 = vadd.f32 %v4626, %v4689
    %v4691 = vpop.f32.mrf.mxu0
    %v4692 = vpop.f32.mrf.mxu0
    %v4693 = vadd.f32 %v4629, %v4692
    %v4694 = vpop.f32.mrf.mxu0
    %4695 = vmatprep.mubr.bf16.mxu0 %v4030
    %4696 = vmatmul.mubr.bf16.gmra.mxu0 %v4029
    %v4697 = vpop.f32.mrf.mxu0
    %v4698 = vadd.f32 %v4634, %v4697
    %v4699 = vpop.f32.mrf.mxu0
    %v4700 = vpop.f32.mrf.mxu0
    %v4701 = vpop.f32.mrf.mxu0
    %4702 = vdwg.mxu0
    %v4703 = vadd.f32 %v55, %v4674
    %v4704 = vadd.f32 %v56, %v4677
    %v4705 = vadd.f32 %v57, %v4682
    %v4706 = vadd.f32 %v58, %v4685
    %v4707 = vadd.f32 %v59, %v4690
    %v4708 = vadd.f32 %v60, %v4693
    %v4709 = vadd.f32 %v61, %v4698
    %v4710 = vld [vmem:[%s9] sm:$0x1]
    %v4712 = vlaneseq
    %v4713 = vshrl.u32 %v4712, 7
    %v4714 = vsub.s32 0, %v4713
    %v4715 = vrot.slane %v4710, %v4714
    %v4717 = vadd.f32 %v4703, %v4715
    %v4718 = vadd.f32 %v4704, %v4715
    %v4719 = vadd.f32 %v4705, %v4715
    %v4720 = vadd.f32 %v4706, %v4715
    %v4721 = vadd.f32 %v4707, %v4715
    %v4722 = vadd.f32 %v4708, %v4715
    %v4723 = vadd.f32 %v4709, %v4715
    %v4724 = vld [vmem:[%s10] sm:$0x1]
    %v4726 = vlaneseq
    %v4727 = vshrl.u32 %v4726, 7
    %v4728 = vsub.s32 0, %v4727
    %v4729 = vrot.slane %v4724, %v4728
    %v4731 = vmul.f32 %v4717, %v4729
    %v4732 = vmul.f32 %v4718, %v4729
    %v4733 = vmul.f32 %v4719, %v4729
    %v4734 = vmul.f32 %v4720, %v4729
    %v4735 = vmul.f32 %v4721, %v4729
    %v4736 = vmul.f32 %v4722, %v4729
    %v4737 = vmul.f32 %v4723, %v4729
    %v4738 = vld [vmem:[%s11] sm:$0x1]
    %v4740 = vlaneseq
    %v4741 = vshrl.u32 %v4740, 7
    %v4742 = vsub.s32 0, %v4741
    %v4743 = vrot.slane %v4738, %v4742
    %v4745 = vadd.f32 %v4731, %v4743
    %v4746 = vadd.f32 %v4732, %v4743
    %v4747 = vadd.f32 %v4733, %v4743
    %v4748 = vadd.f32 %v4734, %v4743
    %v4749 = vadd.f32 %v4735, %v4743
    %v4750 = vadd.f32 %v4736, %v4743
    %v4751 = vadd.f32 %v4737, %v4743
    %v4752 = vpack.c.bf16 %v4746, %v4745
    %v4753 = vpack.c.bf16 %v4748, %v4747
    %v4754 = vpack.c.bf16 %v4750, %v4749
    %v4755 = vpack.c.bf16 %v4751, %v4751
    %v4756 = vld [vmem:[%s12] sm:$0xff]
    %v4757 = vld [vmem:[%s12 + $0x8] sm:$0xff]
    %v4758 = vld [vmem:[%s12 + $0x10] sm:$0xff]
    %v4759 = vld [vmem:[%s12 + $0x18] sm:$0xff]
    %v4760 = vld [vmem:[%s12 + $0x20] sm:$0xff]
    %v4761 = vld [vmem:[%s12 + $0x28] sm:$0xff]
    %v4762 = vld [vmem:[%s12 + $0x30] sm:$0xff]
    %v4763 = vld [vmem:[%s12 + $0x38] sm:$0xff]
    %v4764 = vld [vmem:[%s13] sm:$0x3]
    %v4766 = vlaneseq
    %v4767 = vshrl.u32 %v4766, 7
    %v4768 = vsub.s32 0, %v4767
    %v4769 = vrot.slane %v4764, %v4768
    %v4770 = vlaneseq
    %v4771 = vshrl.u32 %v4770, 7
    %v4772 = vsub.s32 1, %v4771
    %v4773 = vrot.slane %v4764, %v4772
    %v4784 = vunpack.c.l.b16 %v4756
    %v4785 = vunpack.c.h.b16 %v4756
    %v4786 = vunpack.c.l.b16 %v4757
    %v4787 = vunpack.c.h.b16 %v4757
    %v4788 = vunpack.c.l.b16 %v4758
    %v4789 = vunpack.c.h.b16 %v4758
    %v4790 = vunpack.c.l.b16 %v4759
    %v4791 = vunpack.c.h.b16 %v4759
    %v4792 = vunpack.c.l.b16 %v4760
    %v4793 = vunpack.c.h.b16 %v4760
    %v4794 = vunpack.c.l.b16 %v4761
    %v4795 = vunpack.c.h.b16 %v4761
    %v4796 = vunpack.c.l.b16 %v4762
    %v4797 = vunpack.c.h.b16 %v4762
    %v4798 = vunpack.c.l.b16 %v4763
    %v4799 = vunpack.c.h.b16 %v4763
    %v4800 = vpack.c.b16 %v4786, %v4784
    %v4801 = vpack.c.b16 %v4787, %v4785
    %v4802 = vpack.c.b16 %v4790, %v4788
    %v4803 = vpack.c.b16 %v4791, %v4789
    %v4804 = vpack.c.b16 %v4794, %v4792
    %v4805 = vpack.c.b16 %v4795, %v4793
    %v4806 = vpack.c.b16 %v4798, %v4796
    %v4807 = vpack.c.b16 %v4799, %v4797
    %v4817 = vsel %vm212, %v4752, 0
    %v4820 = vsel %vm212, %v4753, 0
    %v4823 = vsel %vm212, %v4754, 0
    %v4826 = vsel %vm212, %v4755, 0
    %4828 = vmatprep.subr.bf16.mxu0 0
    %4829 = vmatpush1.bf16.msra.mxu0 0
    %4830 = vmatprep.subr.bf16.mxu0 0
    %4831 = vmatpush1.bf16.msra.mxu0 0
    %4832 = vmatprep.subr.bf16.mxu0 0
    %4833 = vmatpush1.bf16.msra.mxu0 0
    %4834 = vmatprep.subr.bf16.mxu0 0
    %4835 = vmatpush1.bf16.msra.mxu0 0
    %4836 = vmatprep.subr.bf16.mxu0 %v4807
    %4837 = vmatpush1.bf16.msra.mxu0 %v4806
    %4838 = vmatprep.subr.bf16.mxu0 %v4805
    %4839 = vmatpush1.bf16.msra.mxu0 %v4804
    %4840 = vmatprep.subr.bf16.mxu0 %v4803
    %4841 = vmatpush1.bf16.msra.mxu0 %v4802
    %4842 = vmatprep.subr.bf16.mxu0 %v4801
    %4843 = vmatpush1.bf16.msra.mxu0 %v4800
    %4844 = vmatprep.subr.bf16.mxu0 0
    %4845 = vmatpush2.bf16.msra.mxu0 0
    %4846 = vmatprep.subr.bf16.mxu0 0
    %4847 = vmatpush2.bf16.msra.mxu0 0
    %4848 = vmatprep.subr.bf16.mxu0 0
    %4849 = vmatpush2.bf16.msra.mxu0 0
    %4850 = vmatprep.subr.bf16.mxu0 0
    %4851 = vmatpush2.bf16.msra.mxu0 0
    %4852 = vmatprep.subr.bf16.mxu0 0
    %4853 = vmatpush2.bf16.msra.mxu0 0
    %4854 = vmatprep.subr.bf16.mxu0 0
    %4855 = vmatpush2.bf16.msra.mxu0 0
    %4856 = vmatprep.subr.bf16.mxu0 0
    %4857 = vmatpush2.bf16.msra.mxu0 0
    %4858 = vmatprep.subr.bf16.mxu0 0
    %4859 = vmatpush2.bf16.msra.mxu0 0
    %4860 = vmatprep.mubr.bf16.mxu0 0
    %4861 = vmatmul.mubr.bf16.gmra.mxu0 %v4817
    %v4862 = vpop.f32.mrf.mxu0
    %v4863 = vadd.f32 %v4769, %v4862
    %v4864 = vpop.f32.mrf.mxu0
    %v4865 = vadd.f32 %v4773, %v4864
    %v4866 = vpop.f32.mrf.mxu0
    %v4867 = vadd.f32 %v4769, %v4866
    %v4868 = vpop.f32.mrf.mxu0
    %v4869 = vadd.f32 %v4773, %v4868
    %4870 = vmatprep.mubr.bf16.mxu0 0
    %4871 = vmatmul.mubr.bf16.gmra.mxu0 %v4820
    %v4872 = vpop.f32.mrf.mxu0
    %v4873 = vadd.f32 %v4769, %v4872
    %v4874 = vpop.f32.mrf.mxu0
    %v4875 = vadd.f32 %v4773, %v4874
    %v4876 = vpop.f32.mrf.mxu0
    %v4877 = vadd.f32 %v4769, %v4876
    %v4878 = vpop.f32.mrf.mxu0
    %v4879 = vadd.f32 %v4773, %v4878
    %4880 = vmatprep.mubr.bf16.mxu0 0
    %4881 = vmatmul.mubr.bf16.gmra.mxu0 %v4823
    %v4882 = vpop.f32.mrf.mxu0
    %v4883 = vadd.f32 %v4769, %v4882
    %v4884 = vpop.f32.mrf.mxu0
    %v4885 = vadd.f32 %v4773, %v4884
    %v4886 = vpop.f32.mrf.mxu0
    %v4887 = vadd.f32 %v4769, %v4886
    %v4888 = vpop.f32.mrf.mxu0
    %v4889 = vadd.f32 %v4773, %v4888
    %4890 = vmatprep.mubr.bf16.mxu0 0
    %4891 = vmatmul.mubr.bf16.gmra.mxu0 %v4826
    %v4892 = vpop.f32.mrf.mxu0
    %v4893 = vadd.f32 %v4769, %v4892
    %v4894 = vpop.f32.mrf.mxu0
    %v4895 = vadd.f32 %v4773, %v4894
    %v4896 = vpop.f32.mrf.mxu0
    %v4897 = vpop.f32.mrf.mxu0
    %4898 = vdwg.mxu0
    %v4899 = vmax.f32 %v4863, 0.0
    %v4900 = vmax.f32 %v4865, 0.0
    %v4901 = vmax.f32 %v4867, 0.0
    %v4902 = vmax.f32 %v4869, 0.0
    %v4903 = vmax.f32 %v4873, 0.0
    %v4904 = vmax.f32 %v4875, 0.0
    %v4905 = vmax.f32 %v4877, 0.0
    %v4906 = vmax.f32 %v4879, 0.0
    %v4907 = vmax.f32 %v4883, 0.0
    %v4908 = vmax.f32 %v4885, 0.0
    %v4909 = vmax.f32 %v4887, 0.0
    %v4910 = vmax.f32 %v4889, 0.0
    %v4911 = vmax.f32 %v4893, 0.0
    %v4912 = vmax.f32 %v4895, 0.0
    %v4913 = vpack.c.bf16 %v4901, %v4899
    %v4914 = vpack.c.bf16 %v4902, %v4900
    %v4915 = vpack.c.bf16 %v4905, %v4903
    %v4916 = vpack.c.bf16 %v4906, %v4904
    %v4917 = vpack.c.bf16 %v4909, %v4907
    %v4918 = vpack.c.bf16 %v4910, %v4908
    %v4919 = vpack.c.bf16 %v4911, %v4911
    %v4920 = vpack.c.bf16 %v4912, %v4912
    %v4921 = vld [vmem:[%s14] sm:$0xf]
    %v4922 = vld [vmem:[%s14 + $0x4] sm:$0xf]
    %v4923 = vld [vmem:[%s14 + $0x8] sm:$0xf]
    %v4924 = vld [vmem:[%s14 + $0xc] sm:$0xf]
    %v4925 = vld [vmem:[%s14 + $0x10] sm:$0xf]
    %v4926 = vld [vmem:[%s14 + $0x14] sm:$0xf]
    %v4927 = vld [vmem:[%s14 + $0x18] sm:$0xf]
    %v4928 = vld [vmem:[%s14 + $0x1c] sm:$0xf]
    %v4929 = vld [vmem:[%s14 + $0x20] sm:$0xf]
    %v4930 = vld [vmem:[%s14 + $0x24] sm:$0xf]
    %v4931 = vld [vmem:[%s14 + $0x28] sm:$0xf]
    %v4932 = vld [vmem:[%s14 + $0x2c] sm:$0xf]
    %v4933 = vld [vmem:[%s14 + $0x30] sm:$0xf]
    %v4934 = vld [vmem:[%s14 + $0x34] sm:$0xf]
    %v4935 = vld [vmem:[%s14 + $0x38] sm:$0xf]
    %v4936 = vld [vmem:[%s14 + $0x3c] sm:$0xf]
    %v4937 = vld [vmem:[%s14 + $0x40] sm:$0xf]
    %v4938 = vld [vmem:[%s14 + $0x44] sm:$0xf]
    %v4939 = vld [vmem:[%s14 + $0x48] sm:$0xf]
    %v4940 = vld [vmem:[%s14 + $0x4c] sm:$0xf]
    %v4941 = vld [vmem:[%s14 + $0x50] sm:$0xf]
    %v4942 = vld [vmem:[%s14 + $0x54] sm:$0xf]
    %v4943 = vld [vmem:[%s14 + $0x58] sm:$0xf]
    %v4944 = vld [vmem:[%s14 + $0x5c] sm:$0xf]
    %v4945 = vld [vmem:[%s14 + $0x60] sm:$0xf]
    %v4946 = vld [vmem:[%s14 + $0x64] sm:$0xf]
    %v4947 = vld [vmem:[%s14 + $0x68] sm:$0xf]
    %v4948 = vld [vmem:[%s14 + $0x6c] sm:$0xf]
    %v4949 = vld [vmem:[%s14 + $0x70] sm:$0xf]
    %v4950 = vld [vmem:[%s14 + $0x74] sm:$0xf]
    %v4951 = vld [vmem:[%s14 + $0x78] sm:$0xf]
    %v4952 = vld [vmem:[%s14 + $0x7c] sm:$0xf]
    %v4953 = vld [vmem:[%s15] sm:$0x1]
    %v4955 = vlaneseq
    %v4956 = vshrl.u32 %v4955, 7
    %v4957 = vsub.s32 0, %v4956
    %v4958 = vrot.slane %v4953, %v4957
    %v4992 = vunpack.c.l.b16 %v4921
    %v4993 = vunpack.c.l.b16 %v4922
    %v4994 = vunpack.c.l.b16 %v4923
    %v4995 = vunpack.c.l.b16 %v4924
    %v4996 = vunpack.c.l.b16 %v4925
    %v4997 = vunpack.c.l.b16 %v4926
    %v4998 = vunpack.c.l.b16 %v4927
    %v4999 = vunpack.c.l.b16 %v4928
    %v5000 = vunpack.c.l.b16 %v4929
    %v5001 = vunpack.c.l.b16 %v4930
    %v5002 = vunpack.c.l.b16 %v4931
    %v5003 = vunpack.c.l.b16 %v4932
    %v5004 = vunpack.c.l.b16 %v4933
    %v5005 = vunpack.c.l.b16 %v4934
    %v5006 = vunpack.c.l.b16 %v4935
    %v5007 = vunpack.c.l.b16 %v4936
    %v5008 = vunpack.c.l.b16 %v4937
    %v5009 = vunpack.c.l.b16 %v4938
    %v5010 = vunpack.c.l.b16 %v4939
    %v5011 = vunpack.c.l.b16 %v4940
    %v5012 = vunpack.c.l.b16 %v4941
    %v5013 = vunpack.c.l.b16 %v4942
    %v5014 = vunpack.c.l.b16 %v4943
    %v5015 = vunpack.c.l.b16 %v4944
    %v5016 = vunpack.c.l.b16 %v4945
    %v5017 = vunpack.c.l.b16 %v4946
    %v5018 = vunpack.c.l.b16 %v4947
    %v5019 = vunpack.c.l.b16 %v4948
    %v5020 = vunpack.c.l.b16 %v4949
    %v5021 = vunpack.c.l.b16 %v4950
    %v5022 = vunpack.c.l.b16 %v4951
    %v5023 = vunpack.c.l.b16 %v4952
    %v5024 = vpack.c.b16 %v4993, %v4992
    %v5025 = vpack.c.b16 %v4995, %v4994
    %v5026 = vpack.c.b16 %v4997, %v4996
    %v5027 = vpack.c.b16 %v4999, %v4998
    %v5028 = vpack.c.b16 %v5001, %v5000
    %v5029 = vpack.c.b16 %v5003, %v5002
    %v5030 = vpack.c.b16 %v5005, %v5004
    %v5031 = vpack.c.b16 %v5007, %v5006
    %v5032 = vpack.c.b16 %v5009, %v5008
    %v5033 = vpack.c.b16 %v5011, %v5010
    %v5034 = vpack.c.b16 %v5013, %v5012
    %v5035 = vpack.c.b16 %v5015, %v5014
    %v5036 = vpack.c.b16 %v5017, %v5016
    %v5037 = vpack.c.b16 %v5019, %v5018
    %v5038 = vpack.c.b16 %v5021, %v5020
    %v5039 = vpack.c.b16 %v5023, %v5022
    %5056 = vmatprep.subr.bf16.mxu0 0
    %5057 = vmatpush1.bf16.msra.mxu0 %v5031
    %5058 = vmatprep.subr.bf16.mxu0 0
    %5059 = vmatpush1.bf16.msra.mxu0 %v5030
    %5060 = vmatprep.subr.bf16.mxu0 0
    %5061 = vmatpush1.bf16.msra.mxu0 %v5029
    %5062 = vmatprep.subr.bf16.mxu0 0
    %5063 = vmatpush1.bf16.msra.mxu0 %v5028
    %5064 = vmatprep.subr.bf16.mxu0 0
    %5065 = vmatpush1.bf16.msra.mxu0 %v5027
    %5066 = vmatprep.subr.bf16.mxu0 0
    %5067 = vmatpush1.bf16.msra.mxu0 %v5026
    %5068 = vmatprep.subr.bf16.mxu0 0
    %5069 = vmatpush1.bf16.msra.mxu0 %v5025
    %5070 = vmatprep.subr.bf16.mxu0 0
    %5071 = vmatpush1.bf16.msra.mxu0 %v5024
    %5072 = vmatprep.subr.bf16.mxu0 0
    %5073 = vmatpush2.bf16.msra.mxu0 %v5039
    %5074 = vmatprep.subr.bf16.mxu0 0
    %5075 = vmatpush2.bf16.msra.mxu0 %v5038
    %5076 = vmatprep.subr.bf16.mxu0 0
    %5077 = vmatpush2.bf16.msra.mxu0 %v5037
    %5078 = vmatprep.subr.bf16.mxu0 0
    %5079 = vmatpush2.bf16.msra.mxu0 %v5036
    %5080 = vmatprep.subr.bf16.mxu0 0
    %5081 = vmatpush2.bf16.msra.mxu0 %v5035
    %5082 = vmatprep.subr.bf16.mxu0 0
    %5083 = vmatpush2.bf16.msra.mxu0 %v5034
    %5084 = vmatprep.subr.bf16.mxu0 0
    %5085 = vmatpush2.bf16.msra.mxu0 %v5033
    %5086 = vmatprep.subr.bf16.mxu0 0
    %5087 = vmatpush2.bf16.msra.mxu0 %v5032
    %5088 = vmatprep.mubr.bf16.mxu0 %v4914
    %5089 = vmatmul.mubr.bf16.gmra.mxu0 %v4913
    %v5090 = vpop.f32.mrf.mxu0
    %v5091 = vadd.f32 %v4958, %v5090
    %v5092 = vpop.f32.mrf.mxu0
    %v5093 = vpop.f32.mrf.mxu0
    %v5094 = vadd.f32 %v4958, %v5093
    %v5095 = vpop.f32.mrf.mxu0
    %5096 = vmatprep.mubr.bf16.mxu0 %v4916
    %5097 = vmatmul.mubr.bf16.gmra.mxu0 %v4915
    %v5098 = vpop.f32.mrf.mxu0
    %v5099 = vadd.f32 %v4958, %v5098
    %v5100 = vpop.f32.mrf.mxu0
    %v5101 = vpop.f32.mrf.mxu0
    %v5102 = vadd.f32 %v4958, %v5101
    %v5103 = vpop.f32.mrf.mxu0
    %5104 = vmatprep.mubr.bf16.mxu0 %v4918
    %5105 = vmatmul.mubr.bf16.gmra.mxu0 %v4917
    %v5106 = vpop.f32.mrf.mxu0
    %v5107 = vadd.f32 %v4958, %v5106
    %v5108 = vpop.f32.mrf.mxu0
    %v5109 = vpop.f32.mrf.mxu0
    %v5110 = vadd.f32 %v4958, %v5109
    %v5111 = vpop.f32.mrf.mxu0
    %5112 = vmatprep.mubr.bf16.mxu0 %v4920
    %5113 = vmatmul.mubr.bf16.gmra.mxu0 %v4919
    %v5114 = vpop.f32.mrf.mxu0
    %v5115 = vadd.f32 %v4958, %v5114
    %v5116 = vpop.f32.mrf.mxu0
    %v5117 = vpop.f32.mrf.mxu0
    %v5118 = vpop.f32.mrf.mxu0
    %5119 = vdwg.mxu0
    %v5120 = vadd.f32 %v4717, %v5091
    %v5121 = vadd.f32 %v4718, %v5094
    %v5122 = vadd.f32 %v4719, %v5099
    %v5123 = vadd.f32 %v4720, %v5102
    %v5124 = vadd.f32 %v4721, %v5107
    %v5125 = vadd.f32 %v4722, %v5110
    %v5126 = vadd.f32 %v4723, %v5115
    %5127 = vst.msk [vmem:[#allocation3] sm:$0xff] %vm212, %v5120
    %5128 = vst.msk [vmem:[#allocation3 + $0x8] sm:$0xff] %vm212, %v5121
    %5129 = vst.msk [vmem:[#allocation3 + $0x10] sm:$0xff] %vm212, %v5122
    %5130 = vst.msk [vmem:[#allocation3 + $0x18] sm:$0xff] %vm212, %v5123
    %5131 = vst.msk [vmem:[#allocation3 + $0x20] sm:$0xff] %vm212, %v5124
    %5132 = vst.msk [vmem:[#allocation3 + $0x28] sm:$0xff] %vm212, %v5125
    %5133 = vst.msk [vmem:[#allocation3 + $0x30] sm:$0xff] %vm212, %v5126
    // Predicated region
    $region66: #{tpu_custom_call.1} parent=1 // pred_check
      _
    $region67: #{tpu_custom_call.1} parent=1 // pred_check_branch
      %5135 = sbr.rel (0) target = $region69
    $region68: #{tpu_custom_call.1} parent=1 // pred_region
      %s5137 = ssub.s32 896, 896
      %5138 = vsyncadd [#allocation4], %s5137
      %s5139 = sshll.u32 [#allocation3], 4
      %s5140 = int_to_ptr.vmem [resolvable:$true] %s5139
      %5145 = dma.vmem_to_hbm [thread:$0]  %s5140, 896, %s16, [#allocation4], 128, 128, 8
    $region69: #{tpu_custom_call.1} parent=1 // pred_fallthru
      _
    // Predicated region
    $region70: #{tpu_custom_call.1} parent=1 // pred_check
      _
    $region71: #{tpu_custom_call.1} parent=1 // pred_check_branch
      %5147 = sbr.rel (0) target = $region73
    $region72: #{tpu_custom_call.1} parent=1 // pred_region
      %5148 = dma.done [#allocation4], 896
    $region73: #{tpu_custom_call.1} parent=1 // pred_fallthru
      _
    %5149 = vsyncpa [#allocation4], 1

</llo_original>
